<compile_context>
chip_gen: v7x
topology: tpu7x:2x2x1
jax: 0.10.0
libtpu: 0.0.40
codegen_flags: <defaults>
</compile_context>

<pallas_src>
import functools

import numpy as np

import jax
import jax.numpy as jnp
from jax.experimental import pallas as pl
from jax.experimental.pallas import tpu as pltpu


def _dgcnn_kernel(*refs, tb, seq_len, c_in, c_out, k_size, dilation, pad,
                  fuse_gate, has_mask):
    """One grid step = a (TB, L, C) batch block.

    Ref order (inputs, outputs, scratch):
      x_ref   : (TB, L, C_in)            f32   (cast to bf16 on-chip)
      fused   : w_ref (k*C_in, 2*C_out) bf16, b_ref (1, 2*C_out) f32
      split   : wm/wg (k*C_in, C_out)   bf16, bm/bg (1, C_out)  f32
      w1_ref  : (C_out, C_in)            bf16  (conv_1 weight, pre-transposed)
      b1_ref  : (C_out, 1)               f32
      [mask_ref: (TB, L, 1) f32]
      out_ref : (TB, L, C_out)           out dtype
      xpad_ref: (TB, L + 2*pad, C_in)    bf16  persistent halo scratch
    """
    it = iter(refs)
    x_ref = next(it)
    if fuse_gate:
        w_ref, b_ref = next(it), next(it)
    else:
        wm_ref, wg_ref, bm_ref, bg_ref = next(it), next(it), next(it), next(it)
    w1t_ref, b1_ref = next(it), next(it)
    mask_ref = next(it) if has_mask else None
    out_ref = next(it)
    xpad_ref = next(it)

    # ---- in-kernel bf16 cast + 'same' halo in a persistent VMEM scratch ----
    x_bf = x_ref[...].astype(jnp.bfloat16)                 # (TB, L, C_in)
    xpad_ref[:, pad:pad + seq_len, :] = x_bf
    if pad > 0:
        # Re-zero only the tiny halo strips each step (scratch is per-core, so
        # a once-only init under pl.when(program_id==0) is not megacore-safe).
        zeros = jnp.zeros((tb, pad, c_in), jnp.bfloat16)
        xpad_ref[:, 0:pad, :] = zeros
        xpad_ref[:, pad + seq_len:pad + seq_len + pad, :] = zeros

    # ---- im2col: fold the k dilated taps into the contraction dimension ----
    taps = [xpad_ref[:, t * dilation:t * dilation + seq_len, :]
            for t in range(k_size)]                        # each (TB, L, C_in)
    xcol = taps[0] if k_size == 1 else jnp.concatenate(taps, axis=-1)
    xcol = xcol.reshape(tb * seq_len, k_size * c_in)       # (TB*L, k*C_in) bf16

    # ---- conv_layer: one (or two) big MXU matmuls with f32 accumulation ----
    if fuse_gate:
        conv = jnp.dot(xcol, w_ref[...],
                       preferred_element_type=jnp.float32) + b_ref[...]
        x_main = conv[:, :c_out]                           # lane-aligned slice
        g = jax.nn.sigmoid(conv[:, c_out:])
    else:
        x_main = jnp.dot(xcol, wm_ref[...],
                         preferred_element_type=jnp.float32) + bm_ref[...]
        g = jax.nn.sigmoid(jnp.dot(xcol, wg_ref[...],
                                   preferred_element_type=jnp.float32)
                           + bg_ref[...])
    # nn.Dropout on g is identity at inference (eval mode).

    x_main = x_main.reshape(tb, seq_len, c_out)
    g = g.reshape(tb, seq_len, c_out)

    # ---- conv_1 skip branch + blend, unrolled over the TB batch elements ----
    # Emit each skip tile already transposed ([C_out, L]) by contracting the
    # channel dims of both operands -- reproduces PyTorch's NCL-vs-NLC
    # broadcast (requires L == C_out, asserted in the wrapper).
    # TODO(synk): verify via pl.lower_as_mlir that this trans-B contraction does
    # not insert a vxpose of x; it is the form that lowered cleanly previously.
    for b in range(tb):                                    # static unroll (TB <= 8)
        skip_t = jax.lax.dot_general(
            w1t_ref[...], x_bf[b],
            dimension_numbers=(((1,), (1,)), ((), ())),
            preferred_element_type=jnp.float32) + b1_ref[...]   # (C_out, L) f32
        out_b = skip_t * (1.0 - g[b]) + x_main[b] * g[b]        # (L, C_out)
        if has_mask:
            out_b = out_b * mask_ref[b]                         # (L, 1) broadcast
        out_ref[b] = out_b.astype(out_ref.dtype)


def _pick_tb(B, L, C_in, C_out, k_size, pad, out_bytes,
             budget_bytes, max_unroll=8):
    """Largest divisor of B that fits the VMEM budget, capped for unrolling and
    leaving >= 2 grid steps (so v7x's 2 TensorCores can share the batch axis)."""
    per_elem = (
        2 * L * C_in * 4                    # f32 x block, double-buffered
        + 2 * L * C_out * out_bytes         # out block, double-buffered
        + (L + 2 * pad) * C_in * 2          # bf16 halo scratch
        + L * k_size * C_in * 2             # bf16 im2col value
        + 6 * L * C_out * 4                 # f32 conv/main/gate/skip temps (generous)
    )
    tb_max = max(1, min(max_unroll, budget_bytes // max(per_elem, 1)))
    best = 1
    for d in range(1, B + 1):
        if B % d != 0 or d > tb_max:
            continue
        if d == B and B > 1:
            continue                        # keep grid length >= 2
        best = max(best, d)
    return best


def dgcnn_layer(x, params, mask=None, *, k_size=3, dilation_rate=1,
                out_dtype=jnp.bfloat16, vmem_budget_bytes=24 * 1024 * 1024):
    """x: [B, L, C_in] float32, mask: None or [B, L].  Returns [B, L, C_out]."""
    B, L, C_in = x.shape
    w_conv, b_conv, w1, b1 = params            # (K, C_in, 2*C_out), (2*C_out,), (C_in, C_out), (C_out,)
    C_out = w_conv.shape[-1] // 2
    assert w_conv.shape == (k_size, C_in, 2 * C_out)
    assert L == C_out, "PyTorch module broadcast requires seq_len == out_channels"
    assert (dilation_rate * (k_size - 1)) % 2 == 0, (
        "symmetric 'same' padding only matches PyTorch when dilation*(k-1) is even")
    pad = (dilation_rate * (k_size - 1)) // 2

    fuse_gate = (C_out % 128 == 0)             # fill the 256-wide MXU N on v6e/v7x

    x = x.astype(jnp.float32)                  # kernel casts to bf16 on-chip
    w1_t = jnp.transpose(w1).astype(jnp.bfloat16)          # (C_out, C_in)
    b1_col = b1.reshape(C_out, 1).astype(jnp.float32)

    if fuse_gate:
        weight_args = [
            w_conv.reshape(k_size * C_in, 2 * C_out).astype(jnp.bfloat16),
            b_conv.reshape(1, 2 * C_out).astype(jnp.float32),
        ]
        weight_specs = [
            pl.BlockSpec((k_size * C_in, 2 * C_out), lambda b: (0, 0)),
            pl.BlockSpec((1, 2 * C_out), lambda b: (0, 0)),
        ]
    else:
        weight_args = [
            w_conv[:, :, :C_out].reshape(k_size * C_in, C_out).astype(jnp.bfloat16),
            w_conv[:, :, C_out:].reshape(k_size * C_in, C_out).astype(jnp.bfloat16),
            b_conv[:C_out].reshape(1, C_out).astype(jnp.float32),
            b_conv[C_out:].reshape(1, C_out).astype(jnp.float32),
        ]
        weight_specs = [
            pl.BlockSpec((k_size * C_in, C_out), lambda b: (0, 0)),
            pl.BlockSpec((k_size * C_in, C_out), lambda b: (0, 0)),
            pl.BlockSpec((1, C_out), lambda b: (0, 0)),
            pl.BlockSpec((1, C_out), lambda b: (0, 0)),
        ]

    has_mask = mask is not None
    out_bytes = np.dtype(out_dtype).itemsize
    tb = _pick_tb(B, L, C_in, C_out, k_size, pad, out_bytes, vmem_budget_bytes)
    grid = (B // tb,)

    kernel = functools.partial(
        _dgcnn_kernel, tb=tb, seq_len=L, c_in=C_in, c_out=C_out,
        k_size=k_size, dilation=dilation_rate, pad=pad,
        fuse_gate=fuse_gate, has_mask=has_mask)

    in_specs = [pl.BlockSpec((tb, L, C_in), lambda b: (b, 0, 0))]
    in_specs += weight_specs
    in_specs += [
        pl.BlockSpec((C_out, C_in), lambda b: (0, 0)),
        pl.BlockSpec((C_out, 1), lambda b: (0, 0)),
    ]
    args = [x] + weight_args + [w1_t, b1_col]
    if has_mask:
        # mask enters as (B, L, 1) and is lane-broadcast on-chip -- never
        # materialise the (B, L, C_out) repeat from the PyTorch code.
        args.append(mask.astype(jnp.float32).reshape(B, L, 1))
        in_specs.append(pl.BlockSpec((tb, L, 1), lambda b: (b, 0, 0)))

    # TODO(synk): if production C_out < 128 and this becomes store-bound, present
    # a lane-dense (TB, L*C_out) output slab instead of a sub-128 minor dim.
    return pl.pallas_call(
        kernel,
        out_shape=jax.ShapeDtypeStruct((B, L, C_out), out_dtype),
        grid_spec=pltpu.PrefetchScalarGridSpec(
            num_scalar_prefetch=0,
            grid=grid,
            in_specs=in_specs,
            out_specs=pl.BlockSpec((tb, L, C_out), lambda b: (b, 0, 0)),
            scratch_shapes=[pltpu.VMEM((tb, L + 2 * pad, C_in), jnp.bfloat16)],
        ),
        compiler_params=pltpu.CompilerParams(
            dimension_semantics=("parallel",),
            # > v5e's 16 MiB scoped default, < v7x's 64 MiB physical VMEM.
            vmem_limit_bytes=48 * 1024 * 1024,
        ),
    )(*args)


def _reference(x, params, k_size=3, dilation_rate=1):
    """Pure-JAX f32 reference reproducing the PyTorch forward (eval, no mask)."""
    w_conv, b_conv, w1, b1 = params
    C_out = w_conv.shape[-1] // 2
    pad = int(dilation_rate * (k_size - 1) / 2)
    x_ncl = jnp.transpose(x, (0, 2, 1))                          # [B, C_in, L]
    w_oik = jnp.transpose(w_conv, (2, 1, 0))                     # [2*C_out, C_in, K]
    conv = jax.lax.conv_general_dilated(
        x_ncl, w_oik, window_strides=(1,), padding=[(pad, pad)],
        rhs_dilation=(dilation_rate,),
        dimension_numbers=("NCH", "OIH", "NCH")) + b_conv[None, :, None]
    conv = jnp.transpose(conv, (0, 2, 1))                        # [B, L, 2*C_out]
    xm, g = conv[:, :, :C_out], jax.nn.sigmoid(conv[:, :, C_out:])
    skip = jnp.einsum("bct,co->bot", x_ncl, w1) + b1[None, :, None]  # [B, C_out, L]
    return skip * (1.0 - g) + xm * g                             # relies on L == C_out


if __name__ == "__main__":
    def _run_case(seed, B, L, C_in, C_out, K, DIL, use_mask, out_dtype, tol):
        ks = jax.random.split(jax.random.PRNGKey(seed), 6)
        x = jax.random.normal(ks[0], (B, L, C_in), jnp.float32)
        w_conv = 0.1 * jax.random.normal(ks[1], (K, C_in, 2 * C_out), jnp.float32)
        b_conv = 0.05 * jax.random.normal(ks[2], (2 * C_out,), jnp.float32)
        w1 = 0.1 * jax.random.normal(ks[3], (C_in, C_out), jnp.float32)
        b1 = 0.05 * jax.random.normal(ks[4], (C_out,), jnp.float32)
        params = (w_conv, b_conv, w1, b1)
        mask = None
        if use_mask:
            mask = (jax.random.uniform(ks[5], (B, L)) > 0.3).astype(jnp.float32)

        out = dgcnn_layer(x, params, mask=mask, k_size=K, dilation_rate=DIL,
                          out_dtype=out_dtype)
        out = jax.block_until_ready(out)
        assert out.shape == (B, L, C_out)
        assert out.dtype == np.dtype(out_dtype)

        ref = _reference(x, params, k_size=K, dilation_rate=DIL)
        if mask is not None:
            ref = ref * mask[:, :, None]
        err = float(jnp.max(jnp.abs(out.astype(jnp.float32) - ref)))
        assert jnp.allclose(out.astype(jnp.float32), ref, atol=tol, rtol=tol), (
            f"mismatch vs reference (max abs err {err:.4f})")

    # Fused main+gate path (C_out % 128 == 0 -> one wide MXU matmul per block),
    # lane-dense bf16 output, batch-blocked grid of length 2 (TB = 4).
    _run_case(seed=0, B=8, L=128, C_in=64, C_out=128, K=3, DIL=1,
              use_mask=False, out_dtype=jnp.bfloat16, tol=5e-2)
    # Small split-gate path (C_out = 16 not 128-aligned), masked, f32 output.
    _run_case(seed=1, B=2, L=16, C_in=8, C_out=16, K=3, DIL=1,
              use_mask=True, out_dtype=jnp.float32, tol=2e-2)

    print("KERNEL_OK")
</pallas_src>

<mosaic_0001>
module attributes {stable_mosaic.version = 11 : i64} {
  func.func @_dgcnn_kernel(%arg0: i32, %arg1: memref<4x128x64xf32, #tpu.memory_space<vmem>>, %arg2: memref<192x256xbf16, #tpu.memory_space<vmem>>, %arg3: memref<1x256xf32, #tpu.memory_space<vmem>>, %arg4: memref<128x64xbf16, #tpu.memory_space<vmem>>, %arg5: memref<128x1xf32, #tpu.memory_space<vmem>>, %arg6: memref<4x128x128xbf16, #tpu.memory_space<vmem>>, %arg7: memref<4x130x64xbf16, #tpu.memory_space<vmem>>) attributes {dimension_semantics = [#tpu.dimension_semantics<parallel>], iteration_bounds = array<i64: 2>, scalar_prefetch = 0 : i64, scratch_operands = 1 : i64, tpu.core_type = #tpu.core_type<tc>, window_params = [{transform_indices = @transform_0, window_bounds = array<i64: 4, 128, 64>}, {pipeline_mode = #tpu.pipeline_mode<synchronous>, transform_indices = @transform_1, window_bounds = array<i64: 192, 256>}, {pipeline_mode = #tpu.pipeline_mode<synchronous>, transform_indices = @transform_2, window_bounds = array<i64: 1, 256>}, {pipeline_mode = #tpu.pipeline_mode<synchronous>, transform_indices = @transform_3, window_bounds = array<i64: 128, 64>}, {pipeline_mode = #tpu.pipeline_mode<synchronous>, transform_indices = @transform_4, window_bounds = array<i64: 128, 1>}, {transform_indices = @transform_5, window_bounds = array<i64: 4, 128, 128>}]} {
    %c0 = arith.constant 0 : index
    %c0_0 = arith.constant 0 : index
    %c0_1 = arith.constant 0 : index
    %0 = vector.load %arg1[%c0, %c0_0, %c0_1] : memref<4x128x64xf32, #tpu.memory_space<vmem>>, vector<4x128x64xf32>
    %1 = arith.truncf %0 : vector<4x128x64xf32> to vector<4x128x64xbf16>
    %c0_2 = arith.constant 0 : index
    %c1 = arith.constant 1 : index
    %c0_3 = arith.constant 0 : index
    %2 = vector.load %arg7[%c0_2, %c1, %c0_3] : memref<4x130x64xbf16, #tpu.memory_space<vmem>>, vector<4x128x64xbf16>
    tpu.vector_store %arg7[%c0_2, %c1, %c0_3], %1 {strides = array<i32>} : memref<4x130x64xbf16, #tpu.memory_space<vmem>>, vector<4x128x64xbf16>,
    %cst = arith.constant 0.000000e+00 : bf16
    %3 = vector.broadcast %cst : bf16 to vector<4x1x64xbf16>
    %c0_4 = arith.constant 0 : index
    %c0_5 = arith.constant 0 : index
    %c0_6 = arith.constant 0 : index
    %4 = vector.load %arg7[%c0_4, %c0_5, %c0_6] : memref<4x130x64xbf16, #tpu.memory_space<vmem>>, vector<4x1x64xbf16>
    tpu.vector_store %arg7[%c0_4, %c0_5, %c0_6], %3 {strides = array<i32>} : memref<4x130x64xbf16, #tpu.memory_space<vmem>>, vector<4x1x64xbf16>,
    %c0_7 = arith.constant 0 : index
    %c129 = arith.constant 129 : index
    %c0_8 = arith.constant 0 : index
    %5 = vector.load %arg7[%c0_7, %c129, %c0_8] : memref<4x130x64xbf16, #tpu.memory_space<vmem>>, vector<4x1x64xbf16>
    tpu.vector_store %arg7[%c0_7, %c129, %c0_8], %3 {strides = array<i32>} : memref<4x130x64xbf16, #tpu.memory_space<vmem>>, vector<4x1x64xbf16>,
    %c0_9 = arith.constant 0 : index
    %c0_10 = arith.constant 0 : index
    %c0_11 = arith.constant 0 : index
    %6 = vector.load %arg7[%c0_9, %c0_10, %c0_11] : memref<4x130x64xbf16, #tpu.memory_space<vmem>>, vector<4x128x64xbf16>
    %c0_12 = arith.constant 0 : index
    %c1_13 = arith.constant 1 : index
    %c0_14 = arith.constant 0 : index
    %7 = vector.load %arg7[%c0_12, %c1_13, %c0_14] : memref<4x130x64xbf16, #tpu.memory_space<vmem>>, vector<4x128x64xbf16>
    %c0_15 = arith.constant 0 : index
    %c2 = arith.constant 2 : index
    %c0_16 = arith.constant 0 : index
    %8 = vector.load %arg7[%c0_15, %c2, %c0_16] : memref<4x130x64xbf16, #tpu.memory_space<vmem>>, vector<4x128x64xbf16>
    %9 = tpu.concatenate %6, %7, %8 in 2 : vector<4x128x64xbf16>, vector<4x128x64xbf16>, vector<4x128x64xbf16> -> vector<4x128x192xbf16>
    %10 = vector.shape_cast %9 : vector<4x128x192xbf16> to vector<512x192xbf16>
    %c0_17 = arith.constant 0 : index
    %c0_18 = arith.constant 0 : index
    %11 = vector.load %arg2[%c0_17, %c0_18] : memref<192x256xbf16, #tpu.memory_space<vmem>>, vector<192x256xbf16>
    %cst_19 = arith.constant dense<0.000000e+00> : vector<512x256xf32>
    %12 = tpu.matmul %10, %11, %cst_19 {dimension_numbers = #tpu.dot_dimension_numbers<[1], [0], [0], [1], [0, 0, 1, 1], [], []>} : vector<512x192xbf16>, vector<192x256xbf16>, vector<512x256xf32> -> vector<512x256xf32>
    %c0_20 = arith.constant 0 : index
    %c0_21 = arith.constant 0 : index
    %13 = vector.load %arg3[%c0_20, %c0_21] : memref<1x256xf32, #tpu.memory_space<vmem>>, vector<1x256xf32>
    %14 = vector.broadcast %13 : vector<1x256xf32> to vector<512x256xf32>
    %15 = arith.addf %12, %14 : vector<512x256xf32>
    %16 = vector.extract_strided_slice %15 {offsets = [0, 0], sizes = [512, 128], strides = [1, 1]} : vector<512x256xf32> to vector<512x128xf32>
    %17 = vector.extract_strided_slice %15 {offsets = [0, 128], sizes = [512, 128], strides = [1, 1]} : vector<512x256xf32> to vector<512x128xf32>
    %18 = arith.negf %17 : vector<512x128xf32>
    %19 = math.exp %18 : vector<512x128xf32>
    %cst_22 = arith.constant 1.000000e+00 : f32
    %20 = vector.broadcast %cst_22 : f32 to vector<512x128xf32>
    %21 = arith.addf %20, %19 : vector<512x128xf32>
    %22 = arith.divf %20, %21 : vector<512x128xf32>
    %23 = vector.shape_cast %16 : vector<512x128xf32> to vector<4x128x128xf32>
    %24 = vector.shape_cast %22 : vector<512x128xf32> to vector<4x128x128xf32>
    %c0_23 = arith.constant 0 : index
    %c0_24 = arith.constant 0 : index
    %25 = vector.load %arg4[%c0_23, %c0_24] : memref<128x64xbf16, #tpu.memory_space<vmem>>, vector<128x64xbf16>
    %26 = vector.extract_strided_slice %1 {offsets = [0, 0, 0], sizes = [1, 128, 64], strides = [1, 1, 1]} : vector<4x128x64xbf16> to vector<1x128x64xbf16>
    %27 = vector.shape_cast %26 : vector<1x128x64xbf16> to vector<128x64xbf16>
    %cst_25 = arith.constant dense<0.000000e+00> : vector<128x128xf32>
    %28 = tpu.matmul %25, %27, %cst_25 {dimension_numbers = #tpu.dot_dimension_numbers<[1], [1], [0], [0], [0, 0, 1, 0], [], []>} : vector<128x64xbf16>, vector<128x64xbf16>, vector<128x128xf32> -> vector<128x128xf32>
    %c0_26 = arith.constant 0 : index
    %c0_27 = arith.constant 0 : index
    %29 = vector.load %arg5[%c0_26, %c0_27] : memref<128x1xf32, #tpu.memory_space<vmem>>, vector<128x1xf32>
    %30 = vector.broadcast %29 : vector<128x1xf32> to vector<128x128xf32>
    %31 = arith.addf %28, %30 : vector<128x128xf32>
    %32 = vector.extract_strided_slice %24 {offsets = [0, 0, 0], sizes = [1, 128, 128], strides = [1, 1, 1]} : vector<4x128x128xf32> to vector<1x128x128xf32>
    %33 = vector.shape_cast %32 : vector<1x128x128xf32> to vector<128x128xf32>
    %cst_28 = arith.constant 1.000000e+00 : f32
    %34 = vector.broadcast %cst_28 : f32 to vector<128x128xf32>
    %35 = arith.subf %34, %33 : vector<128x128xf32>
    %36 = arith.mulf %31, %35 : vector<128x128xf32>
    %37 = vector.extract_strided_slice %23 {offsets = [0, 0, 0], sizes = [1, 128, 128], strides = [1, 1, 1]} : vector<4x128x128xf32> to vector<1x128x128xf32>
    %38 = vector.shape_cast %37 : vector<1x128x128xf32> to vector<128x128xf32>
    %39 = vector.extract_strided_slice %24 {offsets = [0, 0, 0], sizes = [1, 128, 128], strides = [1, 1, 1]} : vector<4x128x128xf32> to vector<1x128x128xf32>
    %40 = vector.shape_cast %39 : vector<1x128x128xf32> to vector<128x128xf32>
    %41 = arith.mulf %38, %40 : vector<128x128xf32>
    %42 = arith.addf %36, %41 : vector<128x128xf32>
    %43 = arith.truncf %42 : vector<128x128xf32> to vector<128x128xbf16>
    %c0_29 = arith.constant 0 : index
    %c0_30 = arith.constant 0 : index
    %c0_31 = arith.constant 0 : index
    %44 = vector.load %arg6[%c0_29, %c0_30, %c0_31] : memref<4x128x128xbf16, #tpu.memory_space<vmem>>, vector<1x128x128xbf16>
    %45 = vector.shape_cast %44 : vector<1x128x128xbf16> to vector<128x128xbf16>
    %46 = vector.shape_cast %43 : vector<128x128xbf16> to vector<1x128x128xbf16>
    tpu.vector_store %arg6[%c0_29, %c0_30, %c0_31], %46 {strides = array<i32>} : memref<4x128x128xbf16, #tpu.memory_space<vmem>>, vector<1x128x128xbf16>,
    %c0_32 = arith.constant 0 : index
    %c0_33 = arith.constant 0 : index
    %47 = vector.load %arg4[%c0_32, %c0_33] : memref<128x64xbf16, #tpu.memory_space<vmem>>, vector<128x64xbf16>
    %48 = vector.extract_strided_slice %1 {offsets = [1, 0, 0], sizes = [1, 128, 64], strides = [1, 1, 1]} : vector<4x128x64xbf16> to vector<1x128x64xbf16>
    %49 = vector.shape_cast %48 : vector<1x128x64xbf16> to vector<128x64xbf16>
    %cst_34 = arith.constant dense<0.000000e+00> : vector<128x128xf32>
    %50 = tpu.matmul %47, %49, %cst_34 {dimension_numbers = #tpu.dot_dimension_numbers<[1], [1], [0], [0], [0, 0, 1, 0], [], []>} : vector<128x64xbf16>, vector<128x64xbf16>, vector<128x128xf32> -> vector<128x128xf32>
    %c0_35 = arith.constant 0 : index
    %c0_36 = arith.constant 0 : index
    %51 = vector.load %arg5[%c0_35, %c0_36] : memref<128x1xf32, #tpu.memory_space<vmem>>, vector<128x1xf32>
    %52 = vector.broadcast %51 : vector<128x1xf32> to vector<128x128xf32>
    %53 = arith.addf %50, %52 : vector<128x128xf32>
    %54 = vector.extract_strided_slice %24 {offsets = [1, 0, 0], sizes = [1, 128, 128], strides = [1, 1, 1]} : vector<4x128x128xf32> to vector<1x128x128xf32>
    %55 = vector.shape_cast %54 : vector<1x128x128xf32> to vector<128x128xf32>
    %cst_37 = arith.constant 1.000000e+00 : f32
    %56 = vector.broadcast %cst_37 : f32 to vector<128x128xf32>
    %57 = arith.subf %56, %55 : vector<128x128xf32>
    %58 = arith.mulf %53, %57 : vector<128x128xf32>
    %59 = vector.extract_strided_slice %23 {offsets = [1, 0, 0], sizes = [1, 128, 128], strides = [1, 1, 1]} : vector<4x128x128xf32> to vector<1x128x128xf32>
    %60 = vector.shape_cast %59 : vector<1x128x128xf32> to vector<128x128xf32>
    %61 = vector.extract_strided_slice %24 {offsets = [1, 0, 0], sizes = [1, 128, 128], strides = [1, 1, 1]} : vector<4x128x128xf32> to vector<1x128x128xf32>
    %62 = vector.shape_cast %61 : vector<1x128x128xf32> to vector<128x128xf32>
    %63 = arith.mulf %60, %62 : vector<128x128xf32>
    %64 = arith.addf %58, %63 : vector<128x128xf32>
    %65 = arith.truncf %64 : vector<128x128xf32> to vector<128x128xbf16>
    %c1_38 = arith.constant 1 : index
    %c0_39 = arith.constant 0 : index
    %c0_40 = arith.constant 0 : index
    %66 = vector.load %arg6[%c1_38, %c0_39, %c0_40] : memref<4x128x128xbf16, #tpu.memory_space<vmem>>, vector<1x128x128xbf16>
    %67 = vector.shape_cast %66 : vector<1x128x128xbf16> to vector<128x128xbf16>
    %68 = vector.shape_cast %65 : vector<128x128xbf16> to vector<1x128x128xbf16>
    tpu.vector_store %arg6[%c1_38, %c0_39, %c0_40], %68 {strides = array<i32>} : memref<4x128x128xbf16, #tpu.memory_space<vmem>>, vector<1x128x128xbf16>,
    %c0_41 = arith.constant 0 : index
    %c0_42 = arith.constant 0 : index
    %69 = vector.load %arg4[%c0_41, %c0_42] : memref<128x64xbf16, #tpu.memory_space<vmem>>, vector<128x64xbf16>
    %70 = vector.extract_strided_slice %1 {offsets = [2, 0, 0], sizes = [1, 128, 64], strides = [1, 1, 1]} : vector<4x128x64xbf16> to vector<1x128x64xbf16>
    %71 = vector.shape_cast %70 : vector<1x128x64xbf16> to vector<128x64xbf16>
    %cst_43 = arith.constant dense<0.000000e+00> : vector<128x128xf32>
    %72 = tpu.matmul %69, %71, %cst_43 {dimension_numbers = #tpu.dot_dimension_numbers<[1], [1], [0], [0], [0, 0, 1, 0], [], []>} : vector<128x64xbf16>, vector<128x64xbf16>, vector<128x128xf32> -> vector<128x128xf32>
    %c0_44 = arith.constant 0 : index
    %c0_45 = arith.constant 0 : index
    %73 = vector.load %arg5[%c0_44, %c0_45] : memref<128x1xf32, #tpu.memory_space<vmem>>, vector<128x1xf32>
    %74 = vector.broadcast %73 : vector<128x1xf32> to vector<128x128xf32>
    %75 = arith.addf %72, %74 : vector<128x128xf32>
    %76 = vector.extract_strided_slice %24 {offsets = [2, 0, 0], sizes = [1, 128, 128], strides = [1, 1, 1]} : vector<4x128x128xf32> to vector<1x128x128xf32>
    %77 = vector.shape_cast %76 : vector<1x128x128xf32> to vector<128x128xf32>
    %cst_46 = arith.constant 1.000000e+00 : f32
    %78 = vector.broadcast %cst_46 : f32 to vector<128x128xf32>
    %79 = arith.subf %78, %77 : vector<128x128xf32>
    %80 = arith.mulf %75, %79 : vector<128x128xf32>
    %81 = vector.extract_strided_slice %23 {offsets = [2, 0, 0], sizes = [1, 128, 128], strides = [1, 1, 1]} : vector<4x128x128xf32> to vector<1x128x128xf32>
    %82 = vector.shape_cast %81 : vector<1x128x128xf32> to vector<128x128xf32>
    %83 = vector.extract_strided_slice %24 {offsets = [2, 0, 0], sizes = [1, 128, 128], strides = [1, 1, 1]} : vector<4x128x128xf32> to vector<1x128x128xf32>
    %84 = vector.shape_cast %83 : vector<1x128x128xf32> to vector<128x128xf32>
    %85 = arith.mulf %82, %84 : vector<128x128xf32>
    %86 = arith.addf %80, %85 : vector<128x128xf32>
    %87 = arith.truncf %86 : vector<128x128xf32> to vector<128x128xbf16>
    %c2_47 = arith.constant 2 : index
    %c0_48 = arith.constant 0 : index
    %c0_49 = arith.constant 0 : index
    %88 = vector.load %arg6[%c2_47, %c0_48, %c0_49] : memref<4x128x128xbf16, #tpu.memory_space<vmem>>, vector<1x128x128xbf16>
    %89 = vector.shape_cast %88 : vector<1x128x128xbf16> to vector<128x128xbf16>
    %90 = vector.shape_cast %87 : vector<128x128xbf16> to vector<1x128x128xbf16>
    tpu.vector_store %arg6[%c2_47, %c0_48, %c0_49], %90 {strides = array<i32>} : memref<4x128x128xbf16, #tpu.memory_space<vmem>>, vector<1x128x128xbf16>,
    %c0_50 = arith.constant 0 : index
    %c0_51 = arith.constant 0 : index
    %91 = vector.load %arg4[%c0_50, %c0_51] : memref<128x64xbf16, #tpu.memory_space<vmem>>, vector<128x64xbf16>
    %92 = vector.extract_strided_slice %1 {offsets = [3, 0, 0], sizes = [1, 128, 64], strides = [1, 1, 1]} : vector<4x128x64xbf16> to vector<1x128x64xbf16>
    %93 = vector.shape_cast %92 : vector<1x128x64xbf16> to vector<128x64xbf16>
    %cst_52 = arith.constant dense<0.000000e+00> : vector<128x128xf32>
    %94 = tpu.matmul %91, %93, %cst_52 {dimension_numbers = #tpu.dot_dimension_numbers<[1], [1], [0], [0], [0, 0, 1, 0], [], []>} : vector<128x64xbf16>, vector<128x64xbf16>, vector<128x128xf32> -> vector<128x128xf32>
    %c0_53 = arith.constant 0 : index
    %c0_54 = arith.constant 0 : index
    %95 = vector.load %arg5[%c0_53, %c0_54] : memref<128x1xf32, #tpu.memory_space<vmem>>, vector<128x1xf32>
    %96 = vector.broadcast %95 : vector<128x1xf32> to vector<128x128xf32>
    %97 = arith.addf %94, %96 : vector<128x128xf32>
    %98 = vector.extract_strided_slice %24 {offsets = [3, 0, 0], sizes = [1, 128, 128], strides = [1, 1, 1]} : vector<4x128x128xf32> to vector<1x128x128xf32>
    %99 = vector.shape_cast %98 : vector<1x128x128xf32> to vector<128x128xf32>
    %cst_55 = arith.constant 1.000000e+00 : f32
    %100 = vector.broadcast %cst_55 : f32 to vector<128x128xf32>
    %101 = arith.subf %100, %99 : vector<128x128xf32>
    %102 = arith.mulf %97, %101 : vector<128x128xf32>
    %103 = vector.extract_strided_slice %23 {offsets = [3, 0, 0], sizes = [1, 128, 128], strides = [1, 1, 1]} : vector<4x128x128xf32> to vector<1x128x128xf32>
    %104 = vector.shape_cast %103 : vector<1x128x128xf32> to vector<128x128xf32>
    %105 = vector.extract_strided_slice %24 {offsets = [3, 0, 0], sizes = [1, 128, 128], strides = [1, 1, 1]} : vector<4x128x128xf32> to vector<1x128x128xf32>
    %106 = vector.shape_cast %105 : vector<1x128x128xf32> to vector<128x128xf32>
    %107 = arith.mulf %104, %106 : vector<128x128xf32>
    %108 = arith.addf %102, %107 : vector<128x128xf32>
    %109 = arith.truncf %108 : vector<128x128xf32> to vector<128x128xbf16>
    %c3 = arith.constant 3 : index
    %c0_56 = arith.constant 0 : index
    %c0_57 = arith.constant 0 : index
    %110 = vector.load %arg6[%c3, %c0_56, %c0_57] : memref<4x128x128xbf16, #tpu.memory_space<vmem>>, vector<1x128x128xbf16>
    %111 = vector.shape_cast %110 : vector<1x128x128xbf16> to vector<128x128xbf16>
    %112 = vector.shape_cast %109 : vector<128x128xbf16> to vector<1x128x128xbf16>
    tpu.vector_store %arg6[%c3, %c0_56, %c0_57], %112 {strides = array<i32>} : memref<4x128x128xbf16, #tpu.memory_space<vmem>>, vector<1x128x128xbf16>,
    return
  }
  func.func @transform_0(%arg0: i32) -> (i32, i32, i32) {
    %c0_i32 = arith.constant 0 : i32
    %c0_i32_0 = arith.constant 0 : i32
    %c0_i32_1 = arith.constant 0 : i32
    return %arg0, %c0_i32, %c0_i32_0 : i32, i32, i32
  }
  func.func @transform_1(%arg0: i32) -> (i32, i32) {
    %c0_i32 = arith.constant 0 : i32
    %c0_i32_0 = arith.constant 0 : i32
    %c0_i32_1 = arith.constant 0 : i32
    return %c0_i32, %c0_i32_0 : i32, i32
  }
  func.func @transform_2(%arg0: i32) -> (i32, i32) {
    %c0_i32 = arith.constant 0 : i32
    %c0_i32_0 = arith.constant 0 : i32
    %c0_i32_1 = arith.constant 0 : i32
    return %c0_i32, %c0_i32_0 : i32, i32
  }
  func.func @transform_3(%arg0: i32) -> (i32, i32) {
    %c0_i32 = arith.constant 0 : i32
    %c0_i32_0 = arith.constant 0 : i32
    %c0_i32_1 = arith.constant 0 : i32
    return %c0_i32, %c0_i32_0 : i32, i32
  }
  func.func @transform_4(%arg0: i32) -> (i32, i32) {
    %c0_i32 = arith.constant 0 : i32
    %c0_i32_0 = arith.constant 0 : i32
    %c0_i32_1 = arith.constant 0 : i32
    return %c0_i32, %c0_i32_0 : i32, i32
  }
  func.func @transform_5(%arg0: i32) -> (i32, i32, i32) {
    %c0_i32 = arith.constant 0 : i32
    %c0_i32_0 = arith.constant 0 : i32
    %c0_i32_1 = arith.constant 0 : i32
    return %arg0, %c0_i32, %c0_i32_0 : i32, i32, i32
  }
}

</mosaic_0001>

<llo_original>
// kernel: tpu_custom_call.1
$region0: #{tpu_custom_call.1}
  #allocation0 [shape = 'u32[]', space=smem, size = 0x4, offset = 0x4, fixed_abs, tag = 'smem constant byte address 0x4 - core index']
  #allocation1 [shape = 'u32[144,128]{1,0:T(1,128)}', space=vmem, size = 0x12000, scoped, tag = 'internal scratch']
  #allocation2 [shape = 'bf16[4,130,64]{2,1,0:T(8,128)(2,1)}', space=vmem, size = 0x22000, scoped, tag = 'scratch operand']
  %s0 = inlined_call_operand.vmem [shape: f32[8,128,64], index: 0, kind: input, shape index: {}]
  %s1 = inlined_call_operand.vmem [shape: bf16[192,256], index: 1, kind: input, shape index: {}]
  %s2 = inlined_call_operand.vmem [shape: f32[1,256], index: 2, kind: input, shape index: {}]
  %s3 = inlined_call_operand.vmem [shape: bf16[128,64], index: 3, kind: input, shape index: {}]
  %s4 = inlined_call_operand.vmem [shape: f32[128,1], index: 4, kind: input, shape index: {}]
  %s5 = inlined_call_operand.hbm [shape: bf16[8,128,128], index: 5, kind: output, shape index: {}]
  %s6 = sld [smem:[#allocation0]]
  $region53: #{tpu_custom_call.1} parent=0
    _
  %s8 = ssub.s32 1, %s6
  %s9 = scalar_select 0, %s8, %s6
  $region1: #{tpu_custom_call.1} parent=0
    #allocation3 [shape = 'u8[262144]{0}', space=vmem, size = 0x40000, scoped, tag = 'output window, operand 0']
    #allocation4 [shape = 's32[2]{0}', space=sflag, size = 0x8, scoped, tag = 'scoped memory for tpu_custom_call.1']
    %10 = vsyncpa [#allocation4], 0
    %s11 = scalar_lea.sflag [#allocation4], 1
    %12 = vsyncpa %s11, 0
    loop: start=0, step=1, limit=4
    $region2: #{tpu_custom_call.1} parent=1 // loop_pre_header
      _
    $region3: #{tpu_custom_call.1} parent=1 // loop_header
      %s14 = sphi 0, %s18
      %p15 = scmp.ge.s32.totalorder %s14, 4
      %s24 = sphi 0, %s26
      %s27 = sphi 0, %s24
      %s28 = sphi 0, %s27
      %s44 = sphi 0, %s28
      %s48 = sphi 0, %s48
      %s50 = sphi 0, %s48
      %s51 = sphi 0, %s50
      %s65 = sphi 0, %s51
      %s69 = sphi 0, %s69
      %s71 = sphi 0, %s69
      %s72 = sphi 0, %s71
      %s86 = sphi 0, %s72
      %s90 = sphi 0, %s90
      %s92 = sphi 0, %s90
      %s93 = sphi 0, %s92
      %s107 = sphi 0, %s93
      %s111 = sphi 0, %s111
      %s113 = sphi 0, %s111
      %s114 = sphi 0, %s113
      %s128 = sphi 0, %s114
      %s134 = sphi 0, %s136
      %s137 = sphi 0, %s134
      %s138 = sphi 0, %s137
      %s154 = sphi 0, %s138
    $region4: #{tpu_custom_call.1} parent=1 // loop_header_branch
      %17 = sbr.rel (%p15) target = $region8
    $region5: #{tpu_custom_call.1} parent=1 // loop_body
      %s19 = ssub.s32 %s14, 1
      %s20 = ssub.s32 %s14, 2
      %s21 = sadd.s32 %s14, 1
      %s22 = ssub.s32 %s14, %s21
      %p23 = scmp.eq.s32.totalorder %s22, 0
      %s25 = sadd.s32 %s24, 1
      %s26 = scalar_select %p23, %s24, %s25
      %p29 = pneg %p23
      %p30 = scmp.eq.s32.totalorder %s14, 1
      %p31 = por %p29, %p30
      %p32 = scmp.ne.s32.totalorder %s24, %s27
      %p33 = scmp.eq.s32.totalorder %s14, 0
      %p34 = por %p32, %p33
      %p35 = scmp.ne.s32.totalorder %s24, %s27
      %p36 = scmp.eq.s32.totalorder %s19, 1
      %p37 = por %p35, %p36
      %p38 = scmp.ne.s32.totalorder %s27, %s28
      %p39 = scmp.eq.s32.totalorder %s19, 0
      %p40 = por %p38, %p39
      %p41 = scmp.ne.s32.totalorder %s27, %s28
      %p42 = scmp.eq.s32.totalorder %s20, 1
      %p43 = por %p41, %p42
      %p45 = scmp.ne.s32.totalorder %s28, %s44
      %p46 = scmp.eq.s32.totalorder %s20, 0
      %p47 = por %p45, %p46
      %s49 = sadd.s32 %s48, 1
      %p52 = scmp.eq.s32.totalorder %s14, 1
      %p53 = scmp.ne.s32.totalorder %s48, %s50
      %p54 = scmp.eq.s32.totalorder %s14, 0
      %p55 = por %p53, %p54
      %p56 = scmp.ne.s32.totalorder %s48, %s50
      %p57 = scmp.eq.s32.totalorder %s19, 1
      %p58 = por %p56, %p57
      %p59 = scmp.ne.s32.totalorder %s50, %s51
      %p60 = scmp.eq.s32.totalorder %s19, 0
      %p61 = por %p59, %p60
      %p62 = scmp.ne.s32.totalorder %s50, %s51
      %p63 = scmp.eq.s32.totalorder %s20, 1
      %p64 = por %p62, %p63
      %p66 = scmp.ne.s32.totalorder %s51, %s65
      %p67 = scmp.eq.s32.totalorder %s20, 0
      %p68 = por %p66, %p67
      %s70 = sadd.s32 %s69, 1
      %p73 = scmp.eq.s32.totalorder %s14, 1
      %p74 = scmp.ne.s32.totalorder %s69, %s71
      %p75 = scmp.eq.s32.totalorder %s14, 0
      %p76 = por %p74, %p75
      %p77 = scmp.ne.s32.totalorder %s69, %s71
      %p78 = scmp.eq.s32.totalorder %s19, 1
      %p79 = por %p77, %p78
      %p80 = scmp.ne.s32.totalorder %s71, %s72
      %p81 = scmp.eq.s32.totalorder %s19, 0
      %p82 = por %p80, %p81
      %p83 = scmp.ne.s32.totalorder %s71, %s72
      %p84 = scmp.eq.s32.totalorder %s20, 1
      %p85 = por %p83, %p84
      %p87 = scmp.ne.s32.totalorder %s72, %s86
      %p88 = scmp.eq.s32.totalorder %s20, 0
      %p89 = por %p87, %p88
      %s91 = sadd.s32 %s90, 1
      %p94 = scmp.eq.s32.totalorder %s14, 1
      %p95 = scmp.ne.s32.totalorder %s90, %s92
      %p96 = scmp.eq.s32.totalorder %s14, 0
      %p97 = por %p95, %p96
      %p98 = scmp.ne.s32.totalorder %s90, %s92
      %p99 = scmp.eq.s32.totalorder %s19, 1
      %p100 = por %p98, %p99
      %p101 = scmp.ne.s32.totalorder %s92, %s93
      %p102 = scmp.eq.s32.totalorder %s19, 0
      %p103 = por %p101, %p102
      %p104 = scmp.ne.s32.totalorder %s92, %s93
      %p105 = scmp.eq.s32.totalorder %s20, 1
      %p106 = por %p104, %p105
      %p108 = scmp.ne.s32.totalorder %s93, %s107
      %p109 = scmp.eq.s32.totalorder %s20, 0
      %p110 = por %p108, %p109
      %s112 = sadd.s32 %s111, 1
      %p115 = scmp.eq.s32.totalorder %s14, 1
      %p116 = scmp.ne.s32.totalorder %s111, %s113
      %p117 = scmp.eq.s32.totalorder %s14, 0
      %p118 = por %p116, %p117
      %p119 = scmp.ne.s32.totalorder %s111, %s113
      %p120 = scmp.eq.s32.totalorder %s19, 1
      %p121 = por %p119, %p120
      %p122 = scmp.ne.s32.totalorder %s113, %s114
      %p123 = scmp.eq.s32.totalorder %s19, 0
      %p124 = por %p122, %p123
      %p125 = scmp.ne.s32.totalorder %s113, %s114
      %p126 = scmp.eq.s32.totalorder %s20, 1
      %p127 = por %p125, %p126
      %p129 = scmp.ne.s32.totalorder %s114, %s128
      %p130 = scmp.eq.s32.totalorder %s20, 0
      %p131 = por %p129, %p130
      %s132 = ssub.s32 %s14, %s21
      %p133 = scmp.eq.s32.totalorder %s132, 0
      %s135 = sadd.s32 %s134, 1
      %s136 = scalar_select %p133, %s134, %s135
      %p139 = pneg %p133
      %p140 = scmp.eq.s32.totalorder %s14, 1
      %p141 = por %p139, %p140
      %p142 = scmp.ne.s32.totalorder %s134, %s137
      %p143 = scmp.eq.s32.totalorder %s14, 0
      %p144 = por %p142, %p143
      %p145 = scmp.ne.s32.totalorder %s134, %s137
      %p146 = scmp.eq.s32.totalorder %s19, 1
      %p147 = por %p145, %p146
      %p148 = scmp.ne.s32.totalorder %s137, %s138
      %p149 = scmp.eq.s32.totalorder %s19, 0
      %p150 = por %p148, %p149
      %p151 = scmp.ne.s32.totalorder %s137, %s138
      %p152 = scmp.eq.s32.totalorder %s20, 1
      %p153 = por %p151, %p152
      %p155 = scmp.ne.s32.totalorder %s138, %s154
      %p156 = scmp.eq.s32.totalorder %s20, 0
      %p157 = por %p155, %p156
      %p158 = scmp.le.s32.totalorder 1, %s14
      %p159 = scmp.lt.s32.totalorder %s14, 3
      %p160 = pnand %p158, %p159
      %p161 = pneg %p160
      // Predicated region
      $region9: #{tpu_custom_call.1} parent=5 // pred_check
        _
      $region10: #{tpu_custom_call.1} parent=5 // pred_check_branch
        %163 = sbr.rel (%p160) target = $region12
      $region11: #{tpu_custom_call.1} parent=5 // pred_region
        %s164 = ssub.s32 %s14, 1
        // Predicated region
        $region13: #{tpu_custom_call.1} parent=11 // pred_check
          %p165 = pneg %p61
        $region14: #{tpu_custom_call.1} parent=11 // pred_check_branch
          %167 = sbr.rel (%p165) target = $region16
        $region15: #{tpu_custom_call.1} parent=11 // pred_region
          _
        $region16: #{tpu_custom_call.1} parent=11 // pred_fallthru
          _
        // Predicated region
        $region17: #{tpu_custom_call.1} parent=11 // pred_check
          %p168 = pneg %p82
        $region18: #{tpu_custom_call.1} parent=11 // pred_check_branch
          %170 = sbr.rel (%p168) target = $region20
        $region19: #{tpu_custom_call.1} parent=11 // pred_region
          _
        $region20: #{tpu_custom_call.1} parent=11 // pred_fallthru
          _
        // Predicated region
        $region21: #{tpu_custom_call.1} parent=11 // pred_check
          %p171 = pneg %p103
        $region22: #{tpu_custom_call.1} parent=11 // pred_check_branch
          %173 = sbr.rel (%p171) target = $region24
        $region23: #{tpu_custom_call.1} parent=11 // pred_region
          _
        $region24: #{tpu_custom_call.1} parent=11 // pred_fallthru
          _
        // Predicated region
        $region25: #{tpu_custom_call.1} parent=11 // pred_check
          %p174 = pneg %p124
        $region26: #{tpu_custom_call.1} parent=11 // pred_check_branch
          %176 = sbr.rel (%p174) target = $region28
        $region27: #{tpu_custom_call.1} parent=11 // pred_region
          _
        $region28: #{tpu_custom_call.1} parent=11 // pred_fallthru
          _
      $region12: #{tpu_custom_call.1} parent=5 // pred_fallthru
        _
      %p177 = scmp.lt.s32.totalorder %s14, 2
      // Predicated region
      $region29: #{tpu_custom_call.1} parent=5 // pred_check
        %p178 = pneg %p177
      $region30: #{tpu_custom_call.1} parent=5 // pred_check_branch
        %180 = sbr.rel (%p178) target = $region32
      $region31: #{tpu_custom_call.1} parent=5 // pred_region
        // Predicated region
        $region33: #{tpu_custom_call.1} parent=31 // pred_check
          %p181 = pneg %p34
        $region34: #{tpu_custom_call.1} parent=31 // pred_check_branch
          %183 = sbr.rel (%p181) target = $region36
        $region35: #{tpu_custom_call.1} parent=31 // pred_region
          %s184 = smul.u32 4, %s14
          %p185 = scmp.lt.s32.totalorder %s184, 7
          %s186 = scalar_select %p185, %s184, 7
          %s187 = smul.addr %s186, 16
          %s188 = smul.addr %s187, 8
          %s189 = scalar_lea.vmem %s0, %s188
          %s190 = smul.u32 4, %s14
        $region36: #{tpu_custom_call.1} parent=31 // pred_fallthru
          _
      $region32: #{tpu_custom_call.1} parent=5 // pred_fallthru
        _
      %p191 = scmp.le.s32.totalorder 1, %s14
      %p192 = scmp.lt.s32.totalorder %s14, 3
      %p193 = pnand %p191, %p192
      %p194 = pneg %p193
      // Predicated region
      $region37: #{tpu_custom_call.1} parent=5 // pred_check
        _
      $region38: #{tpu_custom_call.1} parent=5 // pred_check_branch
        %196 = sbr.rel (%p193) target = $region40
      $region39: #{tpu_custom_call.1} parent=5 // pred_region
        %s197 = ssub.s32 %s14, 1
        %s198 = smul.u32 4, %s19
        %p199 = scmp.lt.s32.totalorder %s198, 7
        %s200 = scalar_select %p199, %s198, 7
        %s201 = smul.addr %s200, 16
        %s202 = smul.addr %s201, 8
        %s203 = scalar_lea.vmem %s0, %s202
        %p204 = pneg %p40
        %p205 = pneg %p37
        %p206 = pneg %p61
        %p207 = pneg %p58
        %p208 = pneg %p82
        %p209 = pneg %p79
        %p210 = pneg %p103
        %p211 = pneg %p100
        %p212 = pneg %p124
        %p213 = pneg %p121
        %p214 = pneg %p150
        %p215 = pneg %p147
        %s216 = sand.u32 %s137, 1
        %s217 = scalar_lea.sflag [#allocation4], %s216
        %s218 = sand.u32 %s137, 1
        %s219 = smul.addr %s218, 256
        %s220 = scalar_lea.vmem [#allocation3], %s219
        %s221 = smul.u32 4, %s19
        %p222 = scmp.lt.s32.totalorder %s221, 7
        %s223 = scalar_select %p222, %s221, 7
        %s224 = smul.addr %s223, 16
        %s225 = smul.addr %s224, 8
        %s226 = scalar_lea.vmem %s0, %s225
        %s227 = smul.u32 4, %s19
        %s228 = smul.u32 4, %s19
        %v230 = vld [vmem:[%s226] sm:$0xff]
        %v231 = vld [vmem:[%s226 + $0x8] sm:$0xff]
        %v232 = vld [vmem:[%s226 + $0x10] sm:$0xff]
        %v233 = vld [vmem:[%s226 + $0x18] sm:$0xff]
        %v234 = vld [vmem:[%s226 + $0x20] sm:$0xff]
        %v235 = vld [vmem:[%s226 + $0x28] sm:$0xff]
        %v236 = vld [vmem:[%s226 + $0x30] sm:$0xff]
        %v237 = vld [vmem:[%s226 + $0x38] sm:$0xff]
        %v238 = vld [vmem:[%s226 + $0x40] sm:$0xff]
        %v239 = vld [vmem:[%s226 + $0x48] sm:$0xff]
        %v240 = vld [vmem:[%s226 + $0x50] sm:$0xff]
        %v241 = vld [vmem:[%s226 + $0x58] sm:$0xff]
        %v242 = vld [vmem:[%s226 + $0x60] sm:$0xff]
        %v243 = vld [vmem:[%s226 + $0x68] sm:$0xff]
        %v244 = vld [vmem:[%s226 + $0x70] sm:$0xff]
        %v245 = vld [vmem:[%s226 + $0x78] sm:$0xff]
        %v246 = vld [vmem:[%s226 + $0x80] sm:$0xff]
        %v247 = vld [vmem:[%s226 + $0x88] sm:$0xff]
        %v248 = vld [vmem:[%s226 + $0x90] sm:$0xff]
        %v249 = vld [vmem:[%s226 + $0x98] sm:$0xff]
        %v250 = vld [vmem:[%s226 + $0xa0] sm:$0xff]
        %v251 = vld [vmem:[%s226 + $0xa8] sm:$0xff]
        %v252 = vld [vmem:[%s226 + $0xb0] sm:$0xff]
        %v253 = vld [vmem:[%s226 + $0xb8] sm:$0xff]
        %v254 = vld [vmem:[%s226 + $0xc0] sm:$0xff]
        %v255 = vld [vmem:[%s226 + $0xc8] sm:$0xff]
        %v256 = vld [vmem:[%s226 + $0xd0] sm:$0xff]
        %v257 = vld [vmem:[%s226 + $0xd8] sm:$0xff]
        %v258 = vld [vmem:[%s226 + $0xe0] sm:$0xff]
        %v259 = vld [vmem:[%s226 + $0xe8] sm:$0xff]
        %v260 = vld [vmem:[%s226 + $0xf0] sm:$0xff]
        %v261 = vld [vmem:[%s226 + $0xf8] sm:$0xff]
        %v262 = vld [vmem:[%s226 + $0x100] sm:$0xff]
        %v263 = vld [vmem:[%s226 + $0x108] sm:$0xff]
        %v264 = vld [vmem:[%s226 + $0x110] sm:$0xff]
        %v265 = vld [vmem:[%s226 + $0x118] sm:$0xff]
        %v266 = vld [vmem:[%s226 + $0x120] sm:$0xff]
        %v267 = vld [vmem:[%s226 + $0x128] sm:$0xff]
        %v268 = vld [vmem:[%s226 + $0x130] sm:$0xff]
        %v269 = vld [vmem:[%s226 + $0x138] sm:$0xff]
        %v270 = vld [vmem:[%s226 + $0x140] sm:$0xff]
        %v271 = vld [vmem:[%s226 + $0x148] sm:$0xff]
        %v272 = vld [vmem:[%s226 + $0x150] sm:$0xff]
        %v273 = vld [vmem:[%s226 + $0x158] sm:$0xff]
        %v274 = vld [vmem:[%s226 + $0x160] sm:$0xff]
        %v275 = vld [vmem:[%s226 + $0x168] sm:$0xff]
        %v276 = vld [vmem:[%s226 + $0x170] sm:$0xff]
        %v277 = vld [vmem:[%s226 + $0x178] sm:$0xff]
        %v278 = vld [vmem:[%s226 + $0x180] sm:$0xff]
        %v279 = vld [vmem:[%s226 + $0x188] sm:$0xff]
        %v280 = vld [vmem:[%s226 + $0x190] sm:$0xff]
        %v281 = vld [vmem:[%s226 + $0x198] sm:$0xff]
        %v282 = vld [vmem:[%s226 + $0x1a0] sm:$0xff]
        %v283 = vld [vmem:[%s226 + $0x1a8] sm:$0xff]
        %v284 = vld [vmem:[%s226 + $0x1b0] sm:$0xff]
        %v285 = vld [vmem:[%s226 + $0x1b8] sm:$0xff]
        %v286 = vld [vmem:[%s226 + $0x1c0] sm:$0xff]
        %v287 = vld [vmem:[%s226 + $0x1c8] sm:$0xff]
        %v288 = vld [vmem:[%s226 + $0x1d0] sm:$0xff]
        %v289 = vld [vmem:[%s226 + $0x1d8] sm:$0xff]
        %v290 = vld [vmem:[%s226 + $0x1e0] sm:$0xff]
        %v291 = vld [vmem:[%s226 + $0x1e8] sm:$0xff]
        %v292 = vld [vmem:[%s226 + $0x1f0] sm:$0xff]
        %v293 = vld [vmem:[%s226 + $0x1f8] sm:$0xff]
        %v294 = vpack.c.bf16 %v231, %v230
        %v295 = vpack.c.bf16 %v233, %v232
        %v296 = vpack.c.bf16 %v235, %v234
        %v297 = vpack.c.bf16 %v237, %v236
        %v298 = vpack.c.bf16 %v239, %v238
        %v299 = vpack.c.bf16 %v241, %v240
        %v300 = vpack.c.bf16 %v243, %v242
        %v301 = vpack.c.bf16 %v245, %v244
        %v302 = vpack.c.bf16 %v247, %v246
        %v303 = vpack.c.bf16 %v249, %v248
        %v304 = vpack.c.bf16 %v251, %v250
        %v305 = vpack.c.bf16 %v253, %v252
        %v306 = vpack.c.bf16 %v255, %v254
        %v307 = vpack.c.bf16 %v257, %v256
        %v308 = vpack.c.bf16 %v259, %v258
        %v309 = vpack.c.bf16 %v261, %v260
        %v310 = vpack.c.bf16 %v263, %v262
        %v311 = vpack.c.bf16 %v265, %v264
        %v312 = vpack.c.bf16 %v267, %v266
        %v313 = vpack.c.bf16 %v269, %v268
        %v314 = vpack.c.bf16 %v271, %v270
        %v315 = vpack.c.bf16 %v273, %v272
        %v316 = vpack.c.bf16 %v275, %v274
        %v317 = vpack.c.bf16 %v277, %v276
        %v318 = vpack.c.bf16 %v279, %v278
        %v319 = vpack.c.bf16 %v281, %v280
        %v320 = vpack.c.bf16 %v283, %v282
        %v321 = vpack.c.bf16 %v285, %v284
        %v322 = vpack.c.bf16 %v287, %v286
        %v323 = vpack.c.bf16 %v289, %v288
        %v324 = vpack.c.bf16 %v291, %v290
        %v325 = vpack.c.bf16 %v293, %v292
        %v358 = vunpack.c.l.b16 %v294
        %v359 = vunpack.c.h.b16 %v294
        %v360 = vunpack.c.l.b16 %v295
        %v361 = vunpack.c.h.b16 %v295
        %v362 = vunpack.c.l.b16 %v296
        %v363 = vunpack.c.h.b16 %v296
        %v364 = vunpack.c.l.b16 %v297
        %v365 = vunpack.c.h.b16 %v297
        %v366 = vunpack.c.l.b16 %v298
        %v367 = vunpack.c.h.b16 %v298
        %v368 = vunpack.c.l.b16 %v299
        %v369 = vunpack.c.h.b16 %v299
        %v370 = vunpack.c.l.b16 %v300
        %v371 = vunpack.c.h.b16 %v300
        %v372 = vunpack.c.l.b16 %v301
        %v373 = vunpack.c.h.b16 %v301
        %v374 = vunpack.c.l.b16 %v302
        %v375 = vunpack.c.h.b16 %v302
        %v376 = vunpack.c.l.b16 %v303
        %v377 = vunpack.c.h.b16 %v303
        %v378 = vunpack.c.l.b16 %v304
        %v379 = vunpack.c.h.b16 %v304
        %v380 = vunpack.c.l.b16 %v305
        %v381 = vunpack.c.h.b16 %v305
        %v382 = vunpack.c.l.b16 %v306
        %v383 = vunpack.c.h.b16 %v306
        %v384 = vunpack.c.l.b16 %v307
        %v385 = vunpack.c.h.b16 %v307
        %v386 = vunpack.c.l.b16 %v308
        %v387 = vunpack.c.h.b16 %v308
        %v388 = vunpack.c.l.b16 %v309
        %v389 = vunpack.c.h.b16 %v309
        %v390 = vunpack.c.l.b16 %v310
        %v391 = vunpack.c.h.b16 %v310
        %v392 = vunpack.c.l.b16 %v311
        %v393 = vunpack.c.h.b16 %v311
        %v394 = vunpack.c.l.b16 %v312
        %v395 = vunpack.c.h.b16 %v312
        %v396 = vunpack.c.l.b16 %v313
        %v397 = vunpack.c.h.b16 %v313
        %v398 = vunpack.c.l.b16 %v314
        %v399 = vunpack.c.h.b16 %v314
        %v400 = vunpack.c.l.b16 %v315
        %v401 = vunpack.c.h.b16 %v315
        %v402 = vunpack.c.l.b16 %v316
        %v403 = vunpack.c.h.b16 %v316
        %v404 = vunpack.c.l.b16 %v317
        %v405 = vunpack.c.h.b16 %v317
        %v406 = vunpack.c.l.b16 %v318
        %v407 = vunpack.c.h.b16 %v318
        %v408 = vunpack.c.l.b16 %v319
        %v409 = vunpack.c.h.b16 %v319
        %v410 = vunpack.c.l.b16 %v320
        %v411 = vunpack.c.h.b16 %v320
        %v412 = vunpack.c.l.b16 %v321
        %v413 = vunpack.c.h.b16 %v321
        %v414 = vunpack.c.l.b16 %v322
        %v415 = vunpack.c.h.b16 %v322
        %v416 = vunpack.c.l.b16 %v323
        %v417 = vunpack.c.h.b16 %v323
        %v418 = vunpack.c.l.b16 %v324
        %v419 = vunpack.c.h.b16 %v324
        %v420 = vunpack.c.l.b16 %v325
        %v421 = vunpack.c.h.b16 %v325
        %v422 = vpack.c.b16 %v358, %v358
        %v423 = vpack.c.b16 %v359, %v359
        %v424 = vpack.c.b16 %v360, %v360
        %v425 = vpack.c.b16 %v361, %v361
        %v426 = vpack.c.b16 %v362, %v362
        %v427 = vpack.c.b16 %v363, %v363
        %v428 = vpack.c.b16 %v364, %v364
        %v429 = vpack.c.b16 %v365, %v365
        %v430 = vpack.c.b16 %v366, %v366
        %v431 = vpack.c.b16 %v367, %v367
        %v432 = vpack.c.b16 %v368, %v368
        %v433 = vpack.c.b16 %v369, %v369
        %v434 = vpack.c.b16 %v370, %v370
        %v435 = vpack.c.b16 %v371, %v371
        %v436 = vpack.c.b16 %v372, %v372
        %v437 = vpack.c.b16 %v373, %v373
        %v438 = vpack.c.b16 %v374, %v374
        %v439 = vpack.c.b16 %v375, %v375
        %v440 = vpack.c.b16 %v376, %v376
        %v441 = vpack.c.b16 %v377, %v377
        %v442 = vpack.c.b16 %v378, %v378
        %v443 = vpack.c.b16 %v379, %v379
        %v444 = vpack.c.b16 %v380, %v380
        %v445 = vpack.c.b16 %v381, %v381
        %v446 = vpack.c.b16 %v382, %v382
        %v447 = vpack.c.b16 %v383, %v383
        %v448 = vpack.c.b16 %v384, %v384
        %v449 = vpack.c.b16 %v385, %v385
        %v450 = vpack.c.b16 %v386, %v386
        %v451 = vpack.c.b16 %v387, %v387
        %v452 = vpack.c.b16 %v388, %v388
        %v453 = vpack.c.b16 %v389, %v389
        %v454 = vpack.c.b16 %v390, %v390
        %v455 = vpack.c.b16 %v391, %v391
        %v456 = vpack.c.b16 %v392, %v392
        %v457 = vpack.c.b16 %v393, %v393
        %v458 = vpack.c.b16 %v394, %v394
        %v459 = vpack.c.b16 %v395, %v395
        %v460 = vpack.c.b16 %v396, %v396
        %v461 = vpack.c.b16 %v397, %v397
        %v462 = vpack.c.b16 %v398, %v398
        %v463 = vpack.c.b16 %v399, %v399
        %v464 = vpack.c.b16 %v400, %v400
        %v465 = vpack.c.b16 %v401, %v401
        %v466 = vpack.c.b16 %v402, %v402
        %v467 = vpack.c.b16 %v403, %v403
        %v468 = vpack.c.b16 %v404, %v404
        %v469 = vpack.c.b16 %v405, %v405
        %v470 = vpack.c.b16 %v406, %v406
        %v471 = vpack.c.b16 %v407, %v407
        %v472 = vpack.c.b16 %v408, %v408
        %v473 = vpack.c.b16 %v409, %v409
        %v474 = vpack.c.b16 %v410, %v410
        %v475 = vpack.c.b16 %v411, %v411
        %v476 = vpack.c.b16 %v412, %v412
        %v477 = vpack.c.b16 %v413, %v413
        %v478 = vpack.c.b16 %v414, %v414
        %v479 = vpack.c.b16 %v415, %v415
        %v480 = vpack.c.b16 %v416, %v416
        %v481 = vpack.c.b16 %v417, %v417
        %v482 = vpack.c.b16 %v418, %v418
        %v483 = vpack.c.b16 %v419, %v419
        %v484 = vpack.c.b16 %v420, %v420
        %v485 = vpack.c.b16 %v421, %v421
        %vm486 = vsmask.f32 256
        %vm487 = vsmask.f32 4368
        %vm488 = vmor %vm486, %vm487
        %v490 = vshrl.u32 %v422, 16
        %v492 = vrot.slane %v490, 7
        %v493 = vshll.u32 %v422, 16
        %v495 = vor.u32 %v492, %v493
        %v496 = vrot.slane %v492, 4
        %v498 = vshrl.u32 %v423, 16
        %v500 = vrot.slane %v498, 7
        %v501 = vshll.u32 %v423, 16
        %v503 = vor.u32 %v500, %v501
        %v504 = vsel %vm488, %v496, %v503
        %v505 = vrot.slane %v500, 4
        %v507 = vshrl.u32 %v424, 16
        %v509 = vrot.slane %v507, 7
        %v510 = vshll.u32 %v424, 16
        %v512 = vor.u32 %v509, %v510
        %v513 = vsel %vm488, %v505, %v512
        %v514 = vrot.slane %v509, 4
        %v516 = vshrl.u32 %v425, 16
        %v518 = vrot.slane %v516, 7
        %v519 = vshll.u32 %v425, 16
        %v521 = vor.u32 %v518, %v519
        %v522 = vsel %vm488, %v514, %v521
        %v523 = vrot.slane %v518, 4
        %v525 = vshrl.u32 %v426, 16
        %v527 = vrot.slane %v525, 7
        %v528 = vshll.u32 %v426, 16
        %v530 = vor.u32 %v527, %v528
        %v531 = vsel %vm488, %v523, %v530
        %v532 = vrot.slane %v527, 4
        %v534 = vshrl.u32 %v427, 16
        %v536 = vrot.slane %v534, 7
        %v537 = vshll.u32 %v427, 16
        %v539 = vor.u32 %v536, %v537
        %v540 = vsel %vm488, %v532, %v539
        %v541 = vrot.slane %v536, 4
        %v543 = vshrl.u32 %v428, 16
        %v545 = vrot.slane %v543, 7
        %v546 = vshll.u32 %v428, 16
        %v548 = vor.u32 %v545, %v546
        %v549 = vsel %vm488, %v541, %v548
        %v550 = vrot.slane %v545, 4
        %v552 = vshrl.u32 %v429, 16
        %v554 = vrot.slane %v552, 7
        %v555 = vshll.u32 %v429, 16
        %v557 = vor.u32 %v554, %v555
        %v558 = vsel %vm488, %v550, %v557
        %v559 = vrot.slane %v554, 4
        %v561 = vshrl.u32 %v430, 16
        %v563 = vrot.slane %v561, 7
        %v564 = vshll.u32 %v430, 16
        %v566 = vor.u32 %v563, %v564
        %v567 = vsel %vm488, %v559, %v566
        %v568 = vrot.slane %v563, 4
        %v570 = vshrl.u32 %v431, 16
        %v572 = vrot.slane %v570, 7
        %v573 = vshll.u32 %v431, 16
        %v575 = vor.u32 %v572, %v573
        %v576 = vsel %vm488, %v568, %v575
        %v577 = vrot.slane %v572, 4
        %v579 = vshrl.u32 %v432, 16
        %v581 = vrot.slane %v579, 7
        %v582 = vshll.u32 %v432, 16
        %v584 = vor.u32 %v581, %v582
        %v585 = vsel %vm488, %v577, %v584
        %v586 = vrot.slane %v581, 4
        %v588 = vshrl.u32 %v433, 16
        %v590 = vrot.slane %v588, 7
        %v591 = vshll.u32 %v433, 16
        %v593 = vor.u32 %v590, %v591
        %v594 = vsel %vm488, %v586, %v593
        %v595 = vrot.slane %v590, 4
        %v597 = vshrl.u32 %v434, 16
        %v599 = vrot.slane %v597, 7
        %v600 = vshll.u32 %v434, 16
        %v602 = vor.u32 %v599, %v600
        %v603 = vsel %vm488, %v595, %v602
        %v604 = vrot.slane %v599, 4
        %v606 = vshrl.u32 %v435, 16
        %v608 = vrot.slane %v606, 7
        %v609 = vshll.u32 %v435, 16
        %v611 = vor.u32 %v608, %v609
        %v612 = vsel %vm488, %v604, %v611
        %v613 = vrot.slane %v608, 4
        %v615 = vshrl.u32 %v436, 16
        %v617 = vrot.slane %v615, 7
        %v618 = vshll.u32 %v436, 16
        %v620 = vor.u32 %v617, %v618
        %v621 = vsel %vm488, %v613, %v620
        %v622 = vrot.slane %v617, 4
        %v624 = vshrl.u32 %v437, 16
        %v626 = vrot.slane %v624, 7
        %v627 = vshll.u32 %v437, 16
        %v629 = vor.u32 %v626, %v627
        %v630 = vsel %vm488, %v622, %v629
        %v631 = vrot.slane %v626, 4
        %v633 = vshrl.u32 %v438, 16
        %v635 = vrot.slane %v633, 7
        %v636 = vshll.u32 %v438, 16
        %v638 = vor.u32 %v635, %v636
        %v639 = vrot.slane %v635, 4
        %v641 = vshrl.u32 %v439, 16
        %v643 = vrot.slane %v641, 7
        %v644 = vshll.u32 %v439, 16
        %v646 = vor.u32 %v643, %v644
        %v647 = vsel %vm488, %v639, %v646
        %v648 = vrot.slane %v643, 4
        %v650 = vshrl.u32 %v440, 16
        %v652 = vrot.slane %v650, 7
        %v653 = vshll.u32 %v440, 16
        %v655 = vor.u32 %v652, %v653
        %v656 = vsel %vm488, %v648, %v655
        %v657 = vrot.slane %v652, 4
        %v659 = vshrl.u32 %v441, 16
        %v661 = vrot.slane %v659, 7
        %v662 = vshll.u32 %v441, 16
        %v664 = vor.u32 %v661, %v662
        %v665 = vsel %vm488, %v657, %v664
        %v666 = vrot.slane %v661, 4
        %v668 = vshrl.u32 %v442, 16
        %v670 = vrot.slane %v668, 7
        %v671 = vshll.u32 %v442, 16
        %v673 = vor.u32 %v670, %v671
        %v674 = vsel %vm488, %v666, %v673
        %v675 = vrot.slane %v670, 4
        %v677 = vshrl.u32 %v443, 16
        %v679 = vrot.slane %v677, 7
        %v680 = vshll.u32 %v443, 16
        %v682 = vor.u32 %v679, %v680
        %v683 = vsel %vm488, %v675, %v682
        %v684 = vrot.slane %v679, 4
        %v686 = vshrl.u32 %v444, 16
        %v688 = vrot.slane %v686, 7
        %v689 = vshll.u32 %v444, 16
        %v691 = vor.u32 %v688, %v689
        %v692 = vsel %vm488, %v684, %v691
        %v693 = vrot.slane %v688, 4
        %v695 = vshrl.u32 %v445, 16
        %v697 = vrot.slane %v695, 7
        %v698 = vshll.u32 %v445, 16
        %v700 = vor.u32 %v697, %v698
        %v701 = vsel %vm488, %v693, %v700
        %v702 = vrot.slane %v697, 4
        %v704 = vshrl.u32 %v446, 16
        %v706 = vrot.slane %v704, 7
        %v707 = vshll.u32 %v446, 16
        %v709 = vor.u32 %v706, %v707
        %v710 = vsel %vm488, %v702, %v709
        %v711 = vrot.slane %v706, 4
        %v713 = vshrl.u32 %v447, 16
        %v715 = vrot.slane %v713, 7
        %v716 = vshll.u32 %v447, 16
        %v718 = vor.u32 %v715, %v716
        %v719 = vsel %vm488, %v711, %v718
        %v720 = vrot.slane %v715, 4
        %v722 = vshrl.u32 %v448, 16
        %v724 = vrot.slane %v722, 7
        %v725 = vshll.u32 %v448, 16
        %v727 = vor.u32 %v724, %v725
        %v728 = vsel %vm488, %v720, %v727
        %v729 = vrot.slane %v724, 4
        %v731 = vshrl.u32 %v449, 16
        %v733 = vrot.slane %v731, 7
        %v734 = vshll.u32 %v449, 16
        %v736 = vor.u32 %v733, %v734
        %v737 = vsel %vm488, %v729, %v736
        %v738 = vrot.slane %v733, 4
        %v740 = vshrl.u32 %v450, 16
        %v742 = vrot.slane %v740, 7
        %v743 = vshll.u32 %v450, 16
        %v745 = vor.u32 %v742, %v743
        %v746 = vsel %vm488, %v738, %v745
        %v747 = vrot.slane %v742, 4
        %v749 = vshrl.u32 %v451, 16
        %v751 = vrot.slane %v749, 7
        %v752 = vshll.u32 %v451, 16
        %v754 = vor.u32 %v751, %v752
        %v755 = vsel %vm488, %v747, %v754
        %v756 = vrot.slane %v751, 4
        %v758 = vshrl.u32 %v452, 16
        %v760 = vrot.slane %v758, 7
        %v761 = vshll.u32 %v452, 16
        %v763 = vor.u32 %v760, %v761
        %v764 = vsel %vm488, %v756, %v763
        %v765 = vrot.slane %v760, 4
        %v767 = vshrl.u32 %v453, 16
        %v769 = vrot.slane %v767, 7
        %v770 = vshll.u32 %v453, 16
        %v772 = vor.u32 %v769, %v770
        %v773 = vsel %vm488, %v765, %v772
        %v774 = vrot.slane %v769, 4
        %v776 = vshrl.u32 %v454, 16
        %v778 = vrot.slane %v776, 7
        %v779 = vshll.u32 %v454, 16
        %v781 = vor.u32 %v778, %v779
        %v782 = vrot.slane %v778, 4
        %v784 = vshrl.u32 %v455, 16
        %v786 = vrot.slane %v784, 7
        %v787 = vshll.u32 %v455, 16
        %v789 = vor.u32 %v786, %v787
        %v790 = vsel %vm488, %v782, %v789
        %v791 = vrot.slane %v786, 4
        %v793 = vshrl.u32 %v456, 16
        %v795 = vrot.slane %v793, 7
        %v796 = vshll.u32 %v456, 16
        %v798 = vor.u32 %v795, %v796
        %v799 = vsel %vm488, %v791, %v798
        %v800 = vrot.slane %v795, 4
        %v802 = vshrl.u32 %v457, 16
        %v804 = vrot.slane %v802, 7
        %v805 = vshll.u32 %v457, 16
        %v807 = vor.u32 %v804, %v805
        %v808 = vsel %vm488, %v800, %v807
        %v809 = vrot.slane %v804, 4
        %v811 = vshrl.u32 %v458, 16
        %v813 = vrot.slane %v811, 7
        %v814 = vshll.u32 %v458, 16
        %v816 = vor.u32 %v813, %v814
        %v817 = vsel %vm488, %v809, %v816
        %v818 = vrot.slane %v813, 4
        %v820 = vshrl.u32 %v459, 16
        %v822 = vrot.slane %v820, 7
        %v823 = vshll.u32 %v459, 16
        %v825 = vor.u32 %v822, %v823
        %v826 = vsel %vm488, %v818, %v825
        %v827 = vrot.slane %v822, 4
        %v829 = vshrl.u32 %v460, 16
        %v831 = vrot.slane %v829, 7
        %v832 = vshll.u32 %v460, 16
        %v834 = vor.u32 %v831, %v832
        %v835 = vsel %vm488, %v827, %v834
        %v836 = vrot.slane %v831, 4
        %v838 = vshrl.u32 %v461, 16
        %v840 = vrot.slane %v838, 7
        %v841 = vshll.u32 %v461, 16
        %v843 = vor.u32 %v840, %v841
        %v844 = vsel %vm488, %v836, %v843
        %v845 = vrot.slane %v840, 4
        %v847 = vshrl.u32 %v462, 16
        %v849 = vrot.slane %v847, 7
        %v850 = vshll.u32 %v462, 16
        %v852 = vor.u32 %v849, %v850
        %v853 = vsel %vm488, %v845, %v852
        %v854 = vrot.slane %v849, 4
        %v856 = vshrl.u32 %v463, 16
        %v858 = vrot.slane %v856, 7
        %v859 = vshll.u32 %v463, 16
        %v861 = vor.u32 %v858, %v859
        %v862 = vsel %vm488, %v854, %v861
        %v863 = vrot.slane %v858, 4
        %v865 = vshrl.u32 %v464, 16
        %v867 = vrot.slane %v865, 7
        %v868 = vshll.u32 %v464, 16
        %v870 = vor.u32 %v867, %v868
        %v871 = vsel %vm488, %v863, %v870
        %v872 = vrot.slane %v867, 4
        %v874 = vshrl.u32 %v465, 16
        %v876 = vrot.slane %v874, 7
        %v877 = vshll.u32 %v465, 16
        %v879 = vor.u32 %v876, %v877
        %v880 = vsel %vm488, %v872, %v879
        %v881 = vrot.slane %v876, 4
        %v883 = vshrl.u32 %v466, 16
        %v885 = vrot.slane %v883, 7
        %v886 = vshll.u32 %v466, 16
        %v888 = vor.u32 %v885, %v886
        %v889 = vsel %vm488, %v881, %v888
        %v890 = vrot.slane %v885, 4
        %v892 = vshrl.u32 %v467, 16
        %v894 = vrot.slane %v892, 7
        %v895 = vshll.u32 %v467, 16
        %v897 = vor.u32 %v894, %v895
        %v898 = vsel %vm488, %v890, %v897
        %v899 = vrot.slane %v894, 4
        %v901 = vshrl.u32 %v468, 16
        %v903 = vrot.slane %v901, 7
        %v904 = vshll.u32 %v468, 16
        %v906 = vor.u32 %v903, %v904
        %v907 = vsel %vm488, %v899, %v906
        %v908 = vrot.slane %v903, 4
        %v910 = vshrl.u32 %v469, 16
        %v912 = vrot.slane %v910, 7
        %v913 = vshll.u32 %v469, 16
        %v915 = vor.u32 %v912, %v913
        %v916 = vsel %vm488, %v908, %v915
        %v917 = vrot.slane %v912, 4
        %v919 = vshrl.u32 %v470, 16
        %v921 = vrot.slane %v919, 7
        %v922 = vshll.u32 %v470, 16
        %v924 = vor.u32 %v921, %v922
        %v925 = vrot.slane %v921, 4
        %v927 = vshrl.u32 %v471, 16
        %v929 = vrot.slane %v927, 7
        %v930 = vshll.u32 %v471, 16
        %v932 = vor.u32 %v929, %v930
        %v933 = vsel %vm488, %v925, %v932
        %v934 = vrot.slane %v929, 4
        %v936 = vshrl.u32 %v472, 16
        %v938 = vrot.slane %v936, 7
        %v939 = vshll.u32 %v472, 16
        %v941 = vor.u32 %v938, %v939
        %v942 = vsel %vm488, %v934, %v941
        %v943 = vrot.slane %v938, 4
        %v945 = vshrl.u32 %v473, 16
        %v947 = vrot.slane %v945, 7
        %v948 = vshll.u32 %v473, 16
        %v950 = vor.u32 %v947, %v948
        %v951 = vsel %vm488, %v943, %v950
        %v952 = vrot.slane %v947, 4
        %v954 = vshrl.u32 %v474, 16
        %v956 = vrot.slane %v954, 7
        %v957 = vshll.u32 %v474, 16
        %v959 = vor.u32 %v956, %v957
        %v960 = vsel %vm488, %v952, %v959
        %v961 = vrot.slane %v956, 4
        %v963 = vshrl.u32 %v475, 16
        %v965 = vrot.slane %v963, 7
        %v966 = vshll.u32 %v475, 16
        %v968 = vor.u32 %v965, %v966
        %v969 = vsel %vm488, %v961, %v968
        %v970 = vrot.slane %v965, 4
        %v972 = vshrl.u32 %v476, 16
        %v974 = vrot.slane %v972, 7
        %v975 = vshll.u32 %v476, 16
        %v977 = vor.u32 %v974, %v975
        %v978 = vsel %vm488, %v970, %v977
        %v979 = vrot.slane %v974, 4
        %v981 = vshrl.u32 %v477, 16
        %v983 = vrot.slane %v981, 7
        %v984 = vshll.u32 %v477, 16
        %v986 = vor.u32 %v983, %v984
        %v987 = vsel %vm488, %v979, %v986
        %v988 = vrot.slane %v983, 4
        %v990 = vshrl.u32 %v478, 16
        %v992 = vrot.slane %v990, 7
        %v993 = vshll.u32 %v478, 16
        %v995 = vor.u32 %v992, %v993
        %v996 = vsel %vm488, %v988, %v995
        %v997 = vrot.slane %v992, 4
        %v999 = vshrl.u32 %v479, 16
        %v1001 = vrot.slane %v999, 7
        %v1002 = vshll.u32 %v479, 16
        %v1004 = vor.u32 %v1001, %v1002
        %v1005 = vsel %vm488, %v997, %v1004
        %v1006 = vrot.slane %v1001, 4
        %v1008 = vshrl.u32 %v480, 16
        %v1010 = vrot.slane %v1008, 7
        %v1011 = vshll.u32 %v480, 16
        %v1013 = vor.u32 %v1010, %v1011
        %v1014 = vsel %vm488, %v1006, %v1013
        %v1015 = vrot.slane %v1010, 4
        %v1017 = vshrl.u32 %v481, 16
        %v1019 = vrot.slane %v1017, 7
        %v1020 = vshll.u32 %v481, 16
        %v1022 = vor.u32 %v1019, %v1020
        %v1023 = vsel %vm488, %v1015, %v1022
        %v1024 = vrot.slane %v1019, 4
        %v1026 = vshrl.u32 %v482, 16
        %v1028 = vrot.slane %v1026, 7
        %v1029 = vshll.u32 %v482, 16
        %v1031 = vor.u32 %v1028, %v1029
        %v1032 = vsel %vm488, %v1024, %v1031
        %v1033 = vrot.slane %v1028, 4
        %v1035 = vshrl.u32 %v483, 16
        %v1037 = vrot.slane %v1035, 7
        %v1038 = vshll.u32 %v483, 16
        %v1040 = vor.u32 %v1037, %v1038
        %v1041 = vsel %vm488, %v1033, %v1040
        %v1042 = vrot.slane %v1037, 4
        %v1044 = vshrl.u32 %v484, 16
        %v1046 = vrot.slane %v1044, 7
        %v1047 = vshll.u32 %v484, 16
        %v1049 = vor.u32 %v1046, %v1047
        %v1050 = vsel %vm488, %v1042, %v1049
        %v1051 = vrot.slane %v1046, 4
        %v1053 = vshrl.u32 %v485, 16
        %v1055 = vrot.slane %v1053, 7
        %v1056 = vshll.u32 %v485, 16
        %v1058 = vor.u32 %v1055, %v1056
        %v1059 = vsel %vm488, %v1051, %v1058
        %v1060 = vrot.slane %v1055, 4
        %vm1129 = vcmask 519168
        %vm1130 = vsmask.f32 7938
        %vm1131 = vmand %vm1129, %vm1130
        %v1132 = vld [vmem:[#allocation2] sm:$0xf]
        %v1133 = vsel %vm1131, %v495, %v1132
        %1134 = vst [vmem:[#allocation2] sm:$0xf] %v1133
        %vm1135 = vcmask 519168
        %1136 = vst.msk [vmem:[#allocation2 + $0x4] sm:$0xf] %vm1135, %v504
        %1137 = vst.msk [vmem:[#allocation2 + $0x8] sm:$0xf] %vm1135, %v513
        %1138 = vst.msk [vmem:[#allocation2 + $0xc] sm:$0xf] %vm1135, %v522
        %1139 = vst.msk [vmem:[#allocation2 + $0x10] sm:$0xf] %vm1135, %v531
        %1140 = vst.msk [vmem:[#allocation2 + $0x14] sm:$0xf] %vm1135, %v540
        %1141 = vst.msk [vmem:[#allocation2 + $0x18] sm:$0xf] %vm1135, %v549
        %1142 = vst.msk [vmem:[#allocation2 + $0x1c] sm:$0xf] %vm1135, %v558
        %1143 = vst.msk [vmem:[#allocation2 + $0x20] sm:$0xf] %vm1135, %v567
        %1144 = vst.msk [vmem:[#allocation2 + $0x24] sm:$0xf] %vm1135, %v576
        %1145 = vst.msk [vmem:[#allocation2 + $0x28] sm:$0xf] %vm1135, %v585
        %1146 = vst.msk [vmem:[#allocation2 + $0x2c] sm:$0xf] %vm1135, %v594
        %1147 = vst.msk [vmem:[#allocation2 + $0x30] sm:$0xf] %vm1135, %v603
        %1148 = vst.msk [vmem:[#allocation2 + $0x34] sm:$0xf] %vm1135, %v612
        %1149 = vst.msk [vmem:[#allocation2 + $0x38] sm:$0xf] %vm1135, %v621
        %1150 = vst.msk [vmem:[#allocation2 + $0x3c] sm:$0xf] %vm1135, %v630
        %vm1151 = vcmask 516096
        %vm1152 = vmand %vm1151, %vm486
        %v1153 = vld [vmem:[#allocation2 + $0x40] sm:$0x1]
        %v1154 = vsel %vm1152, %v631, %v1153
        %1155 = vst [vmem:[#allocation2 + $0x40] sm:$0x1] %v1154
        %v1156 = vld [vmem:[#allocation2 + $0x44] sm:$0xf]
        %v1157 = vsel %vm1131, %v638, %v1156
        %1158 = vst [vmem:[#allocation2 + $0x44] sm:$0xf] %v1157
        %1159 = vst.msk [vmem:[#allocation2 + $0x48] sm:$0xf] %vm1135, %v647
        %1160 = vst.msk [vmem:[#allocation2 + $0x4c] sm:$0xf] %vm1135, %v656
        %1161 = vst.msk [vmem:[#allocation2 + $0x50] sm:$0xf] %vm1135, %v665
        %1162 = vst.msk [vmem:[#allocation2 + $0x54] sm:$0xf] %vm1135, %v674
        %1163 = vst.msk [vmem:[#allocation2 + $0x58] sm:$0xf] %vm1135, %v683
        %1164 = vst.msk [vmem:[#allocation2 + $0x5c] sm:$0xf] %vm1135, %v692
        %1165 = vst.msk [vmem:[#allocation2 + $0x60] sm:$0xf] %vm1135, %v701
        %1166 = vst.msk [vmem:[#allocation2 + $0x64] sm:$0xf] %vm1135, %v710
        %1167 = vst.msk [vmem:[#allocation2 + $0x68] sm:$0xf] %vm1135, %v719
        %1168 = vst.msk [vmem:[#allocation2 + $0x6c] sm:$0xf] %vm1135, %v728
        %1169 = vst.msk [vmem:[#allocation2 + $0x70] sm:$0xf] %vm1135, %v737
        %1170 = vst.msk [vmem:[#allocation2 + $0x74] sm:$0xf] %vm1135, %v746
        %1171 = vst.msk [vmem:[#allocation2 + $0x78] sm:$0xf] %vm1135, %v755
        %1172 = vst.msk [vmem:[#allocation2 + $0x7c] sm:$0xf] %vm1135, %v764
        %1173 = vst.msk [vmem:[#allocation2 + $0x80] sm:$0xf] %vm1135, %v773
        %v1174 = vld [vmem:[#allocation2 + $0x84] sm:$0x1]
        %v1175 = vsel %vm1152, %v774, %v1174
        %1176 = vst [vmem:[#allocation2 + $0x84] sm:$0x1] %v1175
        %v1177 = vld [vmem:[#allocation2 + $0x88] sm:$0xf]
        %v1178 = vsel %vm1131, %v781, %v1177
        %1179 = vst [vmem:[#allocation2 + $0x88] sm:$0xf] %v1178
        %1180 = vst.msk [vmem:[#allocation2 + $0x8c] sm:$0xf] %vm1135, %v790
        %1181 = vst.msk [vmem:[#allocation2 + $0x90] sm:$0xf] %vm1135, %v799
        %1182 = vst.msk [vmem:[#allocation2 + $0x94] sm:$0xf] %vm1135, %v808
        %1183 = vst.msk [vmem:[#allocation2 + $0x98] sm:$0xf] %vm1135, %v817
        %1184 = vst.msk [vmem:[#allocation2 + $0x9c] sm:$0xf] %vm1135, %v826
        %1185 = vst.msk [vmem:[#allocation2 + $0xa0] sm:$0xf] %vm1135, %v835
        %1186 = vst.msk [vmem:[#allocation2 + $0xa4] sm:$0xf] %vm1135, %v844
        %1187 = vst.msk [vmem:[#allocation2 + $0xa8] sm:$0xf] %vm1135, %v853
        %1188 = vst.msk [vmem:[#allocation2 + $0xac] sm:$0xf] %vm1135, %v862
        %1189 = vst.msk [vmem:[#allocation2 + $0xb0] sm:$0xf] %vm1135, %v871
        %1190 = vst.msk [vmem:[#allocation2 + $0xb4] sm:$0xf] %vm1135, %v880
        %1191 = vst.msk [vmem:[#allocation2 + $0xb8] sm:$0xf] %vm1135, %v889
        %1192 = vst.msk [vmem:[#allocation2 + $0xbc] sm:$0xf] %vm1135, %v898
        %1193 = vst.msk [vmem:[#allocation2 + $0xc0] sm:$0xf] %vm1135, %v907
        %1194 = vst.msk [vmem:[#allocation2 + $0xc4] sm:$0xf] %vm1135, %v916
        %v1195 = vld [vmem:[#allocation2 + $0xc8] sm:$0x1]
        %v1196 = vsel %vm1152, %v917, %v1195
        %1197 = vst [vmem:[#allocation2 + $0xc8] sm:$0x1] %v1196
        %v1198 = vld [vmem:[#allocation2 + $0xcc] sm:$0xf]
        %v1199 = vsel %vm1131, %v924, %v1198
        %1200 = vst [vmem:[#allocation2 + $0xcc] sm:$0xf] %v1199
        %1201 = vst.msk [vmem:[#allocation2 + $0xd0] sm:$0xf] %vm1135, %v933
        %1202 = vst.msk [vmem:[#allocation2 + $0xd4] sm:$0xf] %vm1135, %v942
        %1203 = vst.msk [vmem:[#allocation2 + $0xd8] sm:$0xf] %vm1135, %v951
        %1204 = vst.msk [vmem:[#allocation2 + $0xdc] sm:$0xf] %vm1135, %v960
        %1205 = vst.msk [vmem:[#allocation2 + $0xe0] sm:$0xf] %vm1135, %v969
        %1206 = vst.msk [vmem:[#allocation2 + $0xe4] sm:$0xf] %vm1135, %v978
        %1207 = vst.msk [vmem:[#allocation2 + $0xe8] sm:$0xf] %vm1135, %v987
        %1208 = vst.msk [vmem:[#allocation2 + $0xec] sm:$0xf] %vm1135, %v996
        %1209 = vst.msk [vmem:[#allocation2 + $0xf0] sm:$0xf] %vm1135, %v1005
        %1210 = vst.msk [vmem:[#allocation2 + $0xf4] sm:$0xf] %vm1135, %v1014
        %1211 = vst.msk [vmem:[#allocation2 + $0xf8] sm:$0xf] %vm1135, %v1023
        %1212 = vst.msk [vmem:[#allocation2 + $0xfc] sm:$0xf] %vm1135, %v1032
        %1213 = vst.msk [vmem:[#allocation2 + $0x100] sm:$0xf] %vm1135, %v1041
        %1214 = vst.msk [vmem:[#allocation2 + $0x104] sm:$0xf] %vm1135, %v1050
        %1215 = vst.msk [vmem:[#allocation2 + $0x108] sm:$0xf] %vm1135, %v1059
        %v1216 = vld [vmem:[#allocation2 + $0x10c] sm:$0x1]
        %v1217 = vsel %vm1152, %v1060, %v1216
        %1218 = vst [vmem:[#allocation2 + $0x10c] sm:$0x1] %v1217
        %v1219 = vld [vmem:[#allocation2] sm:$0x1]
        %v1220 = vsel %vm1152, 0, %v1219
        %1221 = vst [vmem:[#allocation2] sm:$0x1] %v1220
        %v1222 = vld [vmem:[#allocation2 + $0x44] sm:$0x1]
        %v1223 = vsel %vm1152, 0, %v1222
        %1224 = vst [vmem:[#allocation2 + $0x44] sm:$0x1] %v1223
        %v1225 = vld [vmem:[#allocation2 + $0x88] sm:$0x1]
        %v1226 = vsel %vm1152, 0, %v1225
        %1227 = vst [vmem:[#allocation2 + $0x88] sm:$0x1] %v1226
        %v1228 = vld [vmem:[#allocation2 + $0xcc] sm:$0x1]
        %v1229 = vsel %vm1152, 0, %v1228
        %1230 = vst [vmem:[#allocation2 + $0xcc] sm:$0x1] %v1229
        %vm1231 = vmand %vm1151, %vm1130
        %v1232 = vld [vmem:[#allocation2 + $0x40] sm:$0x1]
        %v1233 = vsel %vm1231, 0, %v1232
        %1234 = vst [vmem:[#allocation2 + $0x40] sm:$0x1] %v1233
        %v1235 = vld [vmem:[#allocation2 + $0x84] sm:$0x1]
        %v1236 = vsel %vm1231, 0, %v1235
        %1237 = vst [vmem:[#allocation2 + $0x84] sm:$0x1] %v1236
        %v1238 = vld [vmem:[#allocation2 + $0xc8] sm:$0x1]
        %v1239 = vsel %vm1231, 0, %v1238
        %1240 = vst [vmem:[#allocation2 + $0xc8] sm:$0x1] %v1239
        %v1241 = vld [vmem:[#allocation2 + $0x10c] sm:$0x1]
        %v1242 = vsel %vm1231, 0, %v1241
        %1243 = vst [vmem:[#allocation2 + $0x10c] sm:$0x1] %v1242
        %v1244 = vld [vmem:[#allocation2] sm:$0xf]
        %v1245 = vld [vmem:[#allocation2 + $0x4] sm:$0xf]
        %v1246 = vld [vmem:[#allocation2 + $0x8] sm:$0xf]
        %v1247 = vld [vmem:[#allocation2 + $0xc] sm:$0xf]
        %v1248 = vld [vmem:[#allocation2 + $0x10] sm:$0xf]
        %v1249 = vld [vmem:[#allocation2 + $0x14] sm:$0xf]
        %v1250 = vld [vmem:[#allocation2 + $0x18] sm:$0xf]
        %v1251 = vld [vmem:[#allocation2 + $0x1c] sm:$0xf]
        %v1252 = vld [vmem:[#allocation2 + $0x20] sm:$0xf]
        %v1253 = vld [vmem:[#allocation2 + $0x24] sm:$0xf]
        %v1254 = vld [vmem:[#allocation2 + $0x28] sm:$0xf]
        %v1255 = vld [vmem:[#allocation2 + $0x2c] sm:$0xf]
        %v1256 = vld [vmem:[#allocation2 + $0x30] sm:$0xf]
        %v1257 = vld [vmem:[#allocation2 + $0x34] sm:$0xf]
        %v1258 = vld [vmem:[#allocation2 + $0x38] sm:$0xf]
        %v1259 = vld [vmem:[#allocation2 + $0x3c] sm:$0xf]
        %v1260 = vld [vmem:[#allocation2 + $0x44] sm:$0xf]
        %v1261 = vld [vmem:[#allocation2 + $0x48] sm:$0xf]
        %v1262 = vld [vmem:[#allocation2 + $0x4c] sm:$0xf]
        %v1263 = vld [vmem:[#allocation2 + $0x50] sm:$0xf]
        %v1264 = vld [vmem:[#allocation2 + $0x54] sm:$0xf]
        %v1265 = vld [vmem:[#allocation2 + $0x58] sm:$0xf]
        %v1266 = vld [vmem:[#allocation2 + $0x5c] sm:$0xf]
        %v1267 = vld [vmem:[#allocation2 + $0x60] sm:$0xf]
        %v1268 = vld [vmem:[#allocation2 + $0x64] sm:$0xf]
        %v1269 = vld [vmem:[#allocation2 + $0x68] sm:$0xf]
        %v1270 = vld [vmem:[#allocation2 + $0x6c] sm:$0xf]
        %v1271 = vld [vmem:[#allocation2 + $0x70] sm:$0xf]
        %v1272 = vld [vmem:[#allocation2 + $0x74] sm:$0xf]
        %v1273 = vld [vmem:[#allocation2 + $0x78] sm:$0xf]
        %v1274 = vld [vmem:[#allocation2 + $0x7c] sm:$0xf]
        %v1275 = vld [vmem:[#allocation2 + $0x80] sm:$0xf]
        %v1276 = vld [vmem:[#allocation2 + $0x88] sm:$0xf]
        %v1277 = vld [vmem:[#allocation2 + $0x8c] sm:$0xf]
        %v1278 = vld [vmem:[#allocation2 + $0x90] sm:$0xf]
        %v1279 = vld [vmem:[#allocation2 + $0x94] sm:$0xf]
        %v1280 = vld [vmem:[#allocation2 + $0x98] sm:$0xf]
        %v1281 = vld [vmem:[#allocation2 + $0x9c] sm:$0xf]
        %v1282 = vld [vmem:[#allocation2 + $0xa0] sm:$0xf]
        %v1283 = vld [vmem:[#allocation2 + $0xa4] sm:$0xf]
        %v1284 = vld [vmem:[#allocation2 + $0xa8] sm:$0xf]
        %v1285 = vld [vmem:[#allocation2 + $0xac] sm:$0xf]
        %v1286 = vld [vmem:[#allocation2 + $0xb0] sm:$0xf]
        %v1287 = vld [vmem:[#allocation2 + $0xb4] sm:$0xf]
        %v1288 = vld [vmem:[#allocation2 + $0xb8] sm:$0xf]
        %v1289 = vld [vmem:[#allocation2 + $0xbc] sm:$0xf]
        %v1290 = vld [vmem:[#allocation2 + $0xc0] sm:$0xf]
        %v1291 = vld [vmem:[#allocation2 + $0xc4] sm:$0xf]
        %v1292 = vld [vmem:[#allocation2 + $0xcc] sm:$0xf]
        %v1293 = vld [vmem:[#allocation2 + $0xd0] sm:$0xf]
        %v1294 = vld [vmem:[#allocation2 + $0xd4] sm:$0xf]
        %v1295 = vld [vmem:[#allocation2 + $0xd8] sm:$0xf]
        %v1296 = vld [vmem:[#allocation2 + $0xdc] sm:$0xf]
        %v1297 = vld [vmem:[#allocation2 + $0xe0] sm:$0xf]
        %v1298 = vld [vmem:[#allocation2 + $0xe4] sm:$0xf]
        %v1299 = vld [vmem:[#allocation2 + $0xe8] sm:$0xf]
        %v1300 = vld [vmem:[#allocation2 + $0xec] sm:$0xf]
        %v1301 = vld [vmem:[#allocation2 + $0xf0] sm:$0xf]
        %v1302 = vld [vmem:[#allocation2 + $0xf4] sm:$0xf]
        %v1303 = vld [vmem:[#allocation2 + $0xf8] sm:$0xf]
        %v1304 = vld [vmem:[#allocation2 + $0xfc] sm:$0xf]
        %v1305 = vld [vmem:[#allocation2 + $0x100] sm:$0xf]
        %v1306 = vld [vmem:[#allocation2 + $0x104] sm:$0xf]
        %v1307 = vld [vmem:[#allocation2 + $0x108] sm:$0xf]
        %v1308 = vld [vmem:[#allocation2 + $0x40] sm:$0x1]
        %v1309 = vld [vmem:[#allocation2 + $0x84] sm:$0x1]
        %v1310 = vld [vmem:[#allocation2 + $0xc8] sm:$0x1]
        %v1311 = vld [vmem:[#allocation2 + $0x10c] sm:$0x1]
        %v1312 = vld [vmem:[#allocation2] sm:$0xe]
        %v1313 = vld [vmem:[#allocation2 + $0x44] sm:$0xe]
        %v1314 = vld [vmem:[#allocation2 + $0x88] sm:$0xe]
        %v1315 = vld [vmem:[#allocation2 + $0xcc] sm:$0xe]
        %v1380 = vunpack.c.l.b16 %v1244
        %v1381 = vunpack.c.l.b16 %v1245
        %v1382 = vunpack.c.l.b16 %v1246
        %v1383 = vunpack.c.l.b16 %v1247
        %v1384 = vunpack.c.l.b16 %v1248
        %v1385 = vunpack.c.l.b16 %v1249
        %v1386 = vunpack.c.l.b16 %v1250
        %v1387 = vunpack.c.l.b16 %v1251
        %v1388 = vunpack.c.l.b16 %v1252
        %v1389 = vunpack.c.l.b16 %v1253
        %v1390 = vunpack.c.l.b16 %v1254
        %v1391 = vunpack.c.l.b16 %v1255
        %v1392 = vunpack.c.l.b16 %v1256
        %v1393 = vunpack.c.l.b16 %v1257
        %v1394 = vunpack.c.l.b16 %v1258
        %v1395 = vunpack.c.l.b16 %v1259
        %v1396 = vunpack.c.l.b16 %v1260
        %v1397 = vunpack.c.l.b16 %v1261
        %v1398 = vunpack.c.l.b16 %v1262
        %v1399 = vunpack.c.l.b16 %v1263
        %v1400 = vunpack.c.l.b16 %v1264
        %v1401 = vunpack.c.l.b16 %v1265
        %v1402 = vunpack.c.l.b16 %v1266
        %v1403 = vunpack.c.l.b16 %v1267
        %v1404 = vunpack.c.l.b16 %v1268
        %v1405 = vunpack.c.l.b16 %v1269
        %v1406 = vunpack.c.l.b16 %v1270
        %v1407 = vunpack.c.l.b16 %v1271
        %v1408 = vunpack.c.l.b16 %v1272
        %v1409 = vunpack.c.l.b16 %v1273
        %v1410 = vunpack.c.l.b16 %v1274
        %v1411 = vunpack.c.l.b16 %v1275
        %v1412 = vunpack.c.l.b16 %v1276
        %v1413 = vunpack.c.l.b16 %v1277
        %v1414 = vunpack.c.l.b16 %v1278
        %v1415 = vunpack.c.l.b16 %v1279
        %v1416 = vunpack.c.l.b16 %v1280
        %v1417 = vunpack.c.l.b16 %v1281
        %v1418 = vunpack.c.l.b16 %v1282
        %v1419 = vunpack.c.l.b16 %v1283
        %v1420 = vunpack.c.l.b16 %v1284
        %v1421 = vunpack.c.l.b16 %v1285
        %v1422 = vunpack.c.l.b16 %v1286
        %v1423 = vunpack.c.l.b16 %v1287
        %v1424 = vunpack.c.l.b16 %v1288
        %v1425 = vunpack.c.l.b16 %v1289
        %v1426 = vunpack.c.l.b16 %v1290
        %v1427 = vunpack.c.l.b16 %v1291
        %v1428 = vunpack.c.l.b16 %v1292
        %v1429 = vunpack.c.l.b16 %v1293
        %v1430 = vunpack.c.l.b16 %v1294
        %v1431 = vunpack.c.l.b16 %v1295
        %v1432 = vunpack.c.l.b16 %v1296
        %v1433 = vunpack.c.l.b16 %v1297
        %v1434 = vunpack.c.l.b16 %v1298
        %v1435 = vunpack.c.l.b16 %v1299
        %v1436 = vunpack.c.l.b16 %v1300
        %v1437 = vunpack.c.l.b16 %v1301
        %v1438 = vunpack.c.l.b16 %v1302
        %v1439 = vunpack.c.l.b16 %v1303
        %v1440 = vunpack.c.l.b16 %v1304
        %v1441 = vunpack.c.l.b16 %v1305
        %v1442 = vunpack.c.l.b16 %v1306
        %v1443 = vunpack.c.l.b16 %v1307
        %v1444 = vpack.c.b16 %v1381, %v1380
        %v1445 = vpack.c.b16 %v1383, %v1382
        %v1446 = vpack.c.b16 %v1385, %v1384
        %v1447 = vpack.c.b16 %v1387, %v1386
        %v1448 = vpack.c.b16 %v1389, %v1388
        %v1449 = vpack.c.b16 %v1391, %v1390
        %v1450 = vpack.c.b16 %v1393, %v1392
        %v1451 = vpack.c.b16 %v1395, %v1394
        %v1452 = vpack.c.b16 %v1397, %v1396
        %v1453 = vpack.c.b16 %v1399, %v1398
        %v1454 = vpack.c.b16 %v1401, %v1400
        %v1455 = vpack.c.b16 %v1403, %v1402
        %v1456 = vpack.c.b16 %v1405, %v1404
        %v1457 = vpack.c.b16 %v1407, %v1406
        %v1458 = vpack.c.b16 %v1409, %v1408
        %v1459 = vpack.c.b16 %v1411, %v1410
        %v1460 = vpack.c.b16 %v1413, %v1412
        %v1461 = vpack.c.b16 %v1415, %v1414
        %v1462 = vpack.c.b16 %v1417, %v1416
        %v1463 = vpack.c.b16 %v1419, %v1418
        %v1464 = vpack.c.b16 %v1421, %v1420
        %v1465 = vpack.c.b16 %v1423, %v1422
        %v1466 = vpack.c.b16 %v1425, %v1424
        %v1467 = vpack.c.b16 %v1427, %v1426
        %v1468 = vpack.c.b16 %v1429, %v1428
        %v1469 = vpack.c.b16 %v1431, %v1430
        %v1470 = vpack.c.b16 %v1433, %v1432
        %v1471 = vpack.c.b16 %v1435, %v1434
        %v1472 = vpack.c.b16 %v1437, %v1436
        %v1473 = vpack.c.b16 %v1439, %v1438
        %v1474 = vpack.c.b16 %v1441, %v1440
        %v1475 = vpack.c.b16 %v1443, %v1442
        %v1480 = vunpack.c.l.b16 %v1308
        %v1481 = vunpack.c.l.b16 %v1309
        %v1482 = vunpack.c.l.b16 %v1310
        %v1483 = vunpack.c.l.b16 %v1311
        %v1484 = vpack.c.b16 %v1480, %v1480
        %v1485 = vpack.c.b16 %v1481, %v1481
        %v1486 = vpack.c.b16 %v1482, %v1482
        %v1487 = vpack.c.b16 %v1483, %v1483
        %vm1488 = vsmask.f32 7424
        %v1490 = vshrl.u32 %v1444, 16
        %v1492 = vshll.u32 %v1444, 16
        %v1494 = vrot.slane %v1492, 1
        %v1495 = vor.u32 %v1490, %v1494
        %v1497 = vshll.u32 %v1445, 16
        %v1499 = vrot.slane %v1497, 1
        %v1500 = vsel %vm1488, %v1495, %v1499
        %v1501 = vshrl.u32 %v1445, 16
        %v1503 = vor.u32 %v1501, %v1499
        %v1505 = vshll.u32 %v1446, 16
        %v1507 = vrot.slane %v1505, 1
        %v1508 = vsel %vm1488, %v1503, %v1507
        %v1509 = vshrl.u32 %v1446, 16
        %v1511 = vor.u32 %v1509, %v1507
        %v1513 = vshll.u32 %v1447, 16
        %v1515 = vrot.slane %v1513, 1
        %v1516 = vsel %vm1488, %v1511, %v1515
        %v1517 = vshrl.u32 %v1447, 16
        %v1519 = vor.u32 %v1517, %v1515
        %v1521 = vshll.u32 %v1448, 16
        %v1523 = vrot.slane %v1521, 1
        %v1524 = vsel %vm1488, %v1519, %v1523
        %v1525 = vshrl.u32 %v1448, 16
        %v1527 = vor.u32 %v1525, %v1523
        %v1529 = vshll.u32 %v1449, 16
        %v1531 = vrot.slane %v1529, 1
        %v1532 = vsel %vm1488, %v1527, %v1531
        %v1533 = vshrl.u32 %v1449, 16
        %v1535 = vor.u32 %v1533, %v1531
        %v1537 = vshll.u32 %v1450, 16
        %v1539 = vrot.slane %v1537, 1
        %v1540 = vsel %vm1488, %v1535, %v1539
        %v1541 = vshrl.u32 %v1450, 16
        %v1543 = vor.u32 %v1541, %v1539
        %v1545 = vshll.u32 %v1451, 16
        %v1547 = vrot.slane %v1545, 1
        %v1548 = vsel %vm1488, %v1543, %v1547
        %v1549 = vshrl.u32 %v1451, 16
        %v1551 = vor.u32 %v1549, %v1547
        %v1553 = vshll.u32 %v1484, 16
        %v1555 = vrot.slane %v1553, 1
        %v1556 = vsel %vm1488, %v1551, %v1555
        %v1558 = vshrl.u32 %v1452, 16
        %v1560 = vshll.u32 %v1452, 16
        %v1562 = vrot.slane %v1560, 1
        %v1563 = vor.u32 %v1558, %v1562
        %v1565 = vshll.u32 %v1453, 16
        %v1567 = vrot.slane %v1565, 1
        %v1568 = vsel %vm1488, %v1563, %v1567
        %v1569 = vshrl.u32 %v1453, 16
        %v1571 = vor.u32 %v1569, %v1567
        %v1573 = vshll.u32 %v1454, 16
        %v1575 = vrot.slane %v1573, 1
        %v1576 = vsel %vm1488, %v1571, %v1575
        %v1577 = vshrl.u32 %v1454, 16
        %v1579 = vor.u32 %v1577, %v1575
        %v1581 = vshll.u32 %v1455, 16
        %v1583 = vrot.slane %v1581, 1
        %v1584 = vsel %vm1488, %v1579, %v1583
        %v1585 = vshrl.u32 %v1455, 16
        %v1587 = vor.u32 %v1585, %v1583
        %v1589 = vshll.u32 %v1456, 16
        %v1591 = vrot.slane %v1589, 1
        %v1592 = vsel %vm1488, %v1587, %v1591
        %v1593 = vshrl.u32 %v1456, 16
        %v1595 = vor.u32 %v1593, %v1591
        %v1597 = vshll.u32 %v1457, 16
        %v1599 = vrot.slane %v1597, 1
        %v1600 = vsel %vm1488, %v1595, %v1599
        %v1601 = vshrl.u32 %v1457, 16
        %v1603 = vor.u32 %v1601, %v1599
        %v1605 = vshll.u32 %v1458, 16
        %v1607 = vrot.slane %v1605, 1
        %v1608 = vsel %vm1488, %v1603, %v1607
        %v1609 = vshrl.u32 %v1458, 16
        %v1611 = vor.u32 %v1609, %v1607
        %v1613 = vshll.u32 %v1459, 16
        %v1615 = vrot.slane %v1613, 1
        %v1616 = vsel %vm1488, %v1611, %v1615
        %v1617 = vshrl.u32 %v1459, 16
        %v1619 = vor.u32 %v1617, %v1615
        %v1621 = vshll.u32 %v1485, 16
        %v1623 = vrot.slane %v1621, 1
        %v1624 = vsel %vm1488, %v1619, %v1623
        %v1626 = vshrl.u32 %v1460, 16
        %v1628 = vshll.u32 %v1460, 16
        %v1630 = vrot.slane %v1628, 1
        %v1631 = vor.u32 %v1626, %v1630
        %v1633 = vshll.u32 %v1461, 16
        %v1635 = vrot.slane %v1633, 1
        %v1636 = vsel %vm1488, %v1631, %v1635
        %v1637 = vshrl.u32 %v1461, 16
        %v1639 = vor.u32 %v1637, %v1635
        %v1641 = vshll.u32 %v1462, 16
        %v1643 = vrot.slane %v1641, 1
        %v1644 = vsel %vm1488, %v1639, %v1643
        %v1645 = vshrl.u32 %v1462, 16
        %v1647 = vor.u32 %v1645, %v1643
        %v1649 = vshll.u32 %v1463, 16
        %v1651 = vrot.slane %v1649, 1
        %v1652 = vsel %vm1488, %v1647, %v1651
        %v1653 = vshrl.u32 %v1463, 16
        %v1655 = vor.u32 %v1653, %v1651
        %v1657 = vshll.u32 %v1464, 16
        %v1659 = vrot.slane %v1657, 1
        %v1660 = vsel %vm1488, %v1655, %v1659
        %v1661 = vshrl.u32 %v1464, 16
        %v1663 = vor.u32 %v1661, %v1659
        %v1665 = vshll.u32 %v1465, 16
        %v1667 = vrot.slane %v1665, 1
        %v1668 = vsel %vm1488, %v1663, %v1667
        %v1669 = vshrl.u32 %v1465, 16
        %v1671 = vor.u32 %v1669, %v1667
        %v1673 = vshll.u32 %v1466, 16
        %v1675 = vrot.slane %v1673, 1
        %v1676 = vsel %vm1488, %v1671, %v1675
        %v1677 = vshrl.u32 %v1466, 16
        %v1679 = vor.u32 %v1677, %v1675
        %v1681 = vshll.u32 %v1467, 16
        %v1683 = vrot.slane %v1681, 1
        %v1684 = vsel %vm1488, %v1679, %v1683
        %v1685 = vshrl.u32 %v1467, 16
        %v1687 = vor.u32 %v1685, %v1683
        %v1689 = vshll.u32 %v1486, 16
        %v1691 = vrot.slane %v1689, 1
        %v1692 = vsel %vm1488, %v1687, %v1691
        %v1694 = vshrl.u32 %v1468, 16
        %v1696 = vshll.u32 %v1468, 16
        %v1698 = vrot.slane %v1696, 1
        %v1699 = vor.u32 %v1694, %v1698
        %v1701 = vshll.u32 %v1469, 16
        %v1703 = vrot.slane %v1701, 1
        %v1704 = vsel %vm1488, %v1699, %v1703
        %v1705 = vshrl.u32 %v1469, 16
        %v1707 = vor.u32 %v1705, %v1703
        %v1709 = vshll.u32 %v1470, 16
        %v1711 = vrot.slane %v1709, 1
        %v1712 = vsel %vm1488, %v1707, %v1711
        %v1713 = vshrl.u32 %v1470, 16
        %v1715 = vor.u32 %v1713, %v1711
        %v1717 = vshll.u32 %v1471, 16
        %v1719 = vrot.slane %v1717, 1
        %v1720 = vsel %vm1488, %v1715, %v1719
        %v1721 = vshrl.u32 %v1471, 16
        %v1723 = vor.u32 %v1721, %v1719
        %v1725 = vshll.u32 %v1472, 16
        %v1727 = vrot.slane %v1725, 1
        %v1728 = vsel %vm1488, %v1723, %v1727
        %v1729 = vshrl.u32 %v1472, 16
        %v1731 = vor.u32 %v1729, %v1727
        %v1733 = vshll.u32 %v1473, 16
        %v1735 = vrot.slane %v1733, 1
        %v1736 = vsel %vm1488, %v1731, %v1735
        %v1737 = vshrl.u32 %v1473, 16
        %v1739 = vor.u32 %v1737, %v1735
        %v1741 = vshll.u32 %v1474, 16
        %v1743 = vrot.slane %v1741, 1
        %v1744 = vsel %vm1488, %v1739, %v1743
        %v1745 = vshrl.u32 %v1474, 16
        %v1747 = vor.u32 %v1745, %v1743
        %v1749 = vshll.u32 %v1475, 16
        %v1751 = vrot.slane %v1749, 1
        %v1752 = vsel %vm1488, %v1747, %v1751
        %v1753 = vshrl.u32 %v1475, 16
        %v1755 = vor.u32 %v1753, %v1751
        %v1757 = vshll.u32 %v1487, 16
        %v1759 = vrot.slane %v1757, 1
        %v1760 = vsel %vm1488, %v1755, %v1759
        %1761 = vrot.lane.b32.xlu0 %v1500, 64
        %v1762 = vpop.permute.xlu0 %1761
        %1763 = vrot.lane.b32.xlu0 %v1508, 64
        %v1764 = vpop.permute.xlu0 %1763
        %1765 = vrot.lane.b32.xlu0 %v1516, 64
        %v1766 = vpop.permute.xlu0 %1765
        %1767 = vrot.lane.b32.xlu0 %v1524, 64
        %v1768 = vpop.permute.xlu0 %1767
        %1769 = vrot.lane.b32.xlu0 %v1532, 64
        %v1770 = vpop.permute.xlu0 %1769
        %1771 = vrot.lane.b32.xlu0 %v1540, 64
        %v1772 = vpop.permute.xlu0 %1771
        %1773 = vrot.lane.b32.xlu0 %v1548, 64
        %v1774 = vpop.permute.xlu0 %1773
        %1775 = vrot.lane.b32.xlu0 %v1556, 64
        %v1776 = vpop.permute.xlu0 %1775
        %1777 = vrot.lane.b32.xlu0 %v1568, 64
        %v1778 = vpop.permute.xlu0 %1777
        %1779 = vrot.lane.b32.xlu0 %v1576, 64
        %v1780 = vpop.permute.xlu0 %1779
        %1781 = vrot.lane.b32.xlu0 %v1584, 64
        %v1782 = vpop.permute.xlu0 %1781
        %1783 = vrot.lane.b32.xlu0 %v1592, 64
        %v1784 = vpop.permute.xlu0 %1783
        %1785 = vrot.lane.b32.xlu0 %v1600, 64
        %v1786 = vpop.permute.xlu0 %1785
        %1787 = vrot.lane.b32.xlu0 %v1608, 64
        %v1788 = vpop.permute.xlu0 %1787
        %1789 = vrot.lane.b32.xlu0 %v1616, 64
        %v1790 = vpop.permute.xlu0 %1789
        %1791 = vrot.lane.b32.xlu0 %v1624, 64
        %v1792 = vpop.permute.xlu0 %1791
        %1793 = vrot.lane.b32.xlu0 %v1636, 64
        %v1794 = vpop.permute.xlu0 %1793
        %1795 = vrot.lane.b32.xlu0 %v1644, 64
        %v1796 = vpop.permute.xlu0 %1795
        %1797 = vrot.lane.b32.xlu0 %v1652, 64
        %v1798 = vpop.permute.xlu0 %1797
        %1799 = vrot.lane.b32.xlu0 %v1660, 64
        %v1800 = vpop.permute.xlu0 %1799
        %1801 = vrot.lane.b32.xlu0 %v1668, 64
        %v1802 = vpop.permute.xlu0 %1801
        %1803 = vrot.lane.b32.xlu0 %v1676, 64
        %v1804 = vpop.permute.xlu0 %1803
        %1805 = vrot.lane.b32.xlu0 %v1684, 64
        %v1806 = vpop.permute.xlu0 %1805
        %1807 = vrot.lane.b32.xlu0 %v1692, 64
        %v1808 = vpop.permute.xlu0 %1807
        %1809 = vrot.lane.b32.xlu0 %v1704, 64
        %v1810 = vpop.permute.xlu0 %1809
        %1811 = vrot.lane.b32.xlu0 %v1712, 64
        %v1812 = vpop.permute.xlu0 %1811
        %1813 = vrot.lane.b32.xlu0 %v1720, 64
        %v1814 = vpop.permute.xlu0 %1813
        %1815 = vrot.lane.b32.xlu0 %v1728, 64
        %v1816 = vpop.permute.xlu0 %1815
        %1817 = vrot.lane.b32.xlu0 %v1736, 64
        %v1818 = vpop.permute.xlu0 %1817
        %1819 = vrot.lane.b32.xlu0 %v1744, 64
        %v1820 = vpop.permute.xlu0 %1819
        %1821 = vrot.lane.b32.xlu0 %v1752, 64
        %v1822 = vpop.permute.xlu0 %1821
        %1823 = vrot.lane.b32.xlu0 %v1760, 64
        %v1824 = vpop.permute.xlu0 %1823
        %v1829 = vunpack.c.l.b16 %v1312
        %v1830 = vunpack.c.l.b16 %v1313
        %v1831 = vunpack.c.l.b16 %v1314
        %v1832 = vunpack.c.l.b16 %v1315
        %v1833 = vpack.c.b16 %v1381, %v1829
        %v1834 = vpack.c.b16 %v1397, %v1830
        %v1835 = vpack.c.b16 %v1413, %v1831
        %v1836 = vpack.c.b16 %v1429, %v1832
        %vm1837 = vcmask 1046528
        %v1838 = vrot.slane %v1833, 1
        %v1839 = vrot.slane %v1445, 1
        %v1840 = vsel %vm1837, %v1838, %v1839
        %v1841 = vrot.slane %v1446, 1
        %v1842 = vsel %vm1837, %v1839, %v1841
        %v1843 = vrot.slane %v1447, 1
        %v1844 = vsel %vm1837, %v1841, %v1843
        %v1845 = vrot.slane %v1448, 1
        %v1846 = vsel %vm1837, %v1843, %v1845
        %v1847 = vrot.slane %v1449, 1
        %v1848 = vsel %vm1837, %v1845, %v1847
        %v1849 = vrot.slane %v1450, 1
        %v1850 = vsel %vm1837, %v1847, %v1849
        %v1851 = vrot.slane %v1451, 1
        %v1852 = vsel %vm1837, %v1849, %v1851
        %v1853 = vrot.slane %v1484, 1
        %v1854 = vsel %vm1837, %v1851, %v1853
        %v1855 = vrot.slane %v1834, 1
        %v1856 = vrot.slane %v1453, 1
        %v1857 = vsel %vm1837, %v1855, %v1856
        %v1858 = vrot.slane %v1454, 1
        %v1859 = vsel %vm1837, %v1856, %v1858
        %v1860 = vrot.slane %v1455, 1
        %v1861 = vsel %vm1837, %v1858, %v1860
        %v1862 = vrot.slane %v1456, 1
        %v1863 = vsel %vm1837, %v1860, %v1862
        %v1864 = vrot.slane %v1457, 1
        %v1865 = vsel %vm1837, %v1862, %v1864
        %v1866 = vrot.slane %v1458, 1
        %v1867 = vsel %vm1837, %v1864, %v1866
        %v1868 = vrot.slane %v1459, 1
        %v1869 = vsel %vm1837, %v1866, %v1868
        %v1870 = vrot.slane %v1485, 1
        %v1871 = vsel %vm1837, %v1868, %v1870
        %v1872 = vrot.slane %v1835, 1
        %v1873 = vrot.slane %v1461, 1
        %v1874 = vsel %vm1837, %v1872, %v1873
        %v1875 = vrot.slane %v1462, 1
        %v1876 = vsel %vm1837, %v1873, %v1875
        %v1877 = vrot.slane %v1463, 1
        %v1878 = vsel %vm1837, %v1875, %v1877
        %v1879 = vrot.slane %v1464, 1
        %v1880 = vsel %vm1837, %v1877, %v1879
        %v1881 = vrot.slane %v1465, 1
        %v1882 = vsel %vm1837, %v1879, %v1881
        %v1883 = vrot.slane %v1466, 1
        %v1884 = vsel %vm1837, %v1881, %v1883
        %v1885 = vrot.slane %v1467, 1
        %v1886 = vsel %vm1837, %v1883, %v1885
        %v1887 = vrot.slane %v1486, 1
        %v1888 = vsel %vm1837, %v1885, %v1887
        %v1889 = vrot.slane %v1836, 1
        %v1890 = vrot.slane %v1469, 1
        %v1891 = vsel %vm1837, %v1889, %v1890
        %v1892 = vrot.slane %v1470, 1
        %v1893 = vsel %vm1837, %v1890, %v1892
        %v1894 = vrot.slane %v1471, 1
        %v1895 = vsel %vm1837, %v1892, %v1894
        %v1896 = vrot.slane %v1472, 1
        %v1897 = vsel %vm1837, %v1894, %v1896
        %v1898 = vrot.slane %v1473, 1
        %v1899 = vsel %vm1837, %v1896, %v1898
        %v1900 = vrot.slane %v1474, 1
        %v1901 = vsel %vm1837, %v1898, %v1900
        %v1902 = vrot.slane %v1475, 1
        %v1903 = vsel %vm1837, %v1900, %v1902
        %v1904 = vrot.slane %v1487, 1
        %v1905 = vsel %vm1837, %v1902, %v1904
        %vm1906 = vcmask 523264
        %v1908 = vsel %vm1906, %v1444, %v1762
        %v1911 = vsel %vm1906, %v1445, %v1764
        %v1914 = vsel %vm1906, %v1446, %v1766
        %v1917 = vsel %vm1906, %v1447, %v1768
        %v1920 = vsel %vm1906, %v1448, %v1770
        %v1923 = vsel %vm1906, %v1449, %v1772
        %v1926 = vsel %vm1906, %v1450, %v1774
        %v1929 = vsel %vm1906, %v1451, %v1776
        %v1932 = vsel %vm1906, %v1452, %v1778
        %v1935 = vsel %vm1906, %v1453, %v1780
        %v1938 = vsel %vm1906, %v1454, %v1782
        %v1941 = vsel %vm1906, %v1455, %v1784
        %v1944 = vsel %vm1906, %v1456, %v1786
        %v1947 = vsel %vm1906, %v1457, %v1788
        %v1950 = vsel %vm1906, %v1458, %v1790
        %v1953 = vsel %vm1906, %v1459, %v1792
        %v1956 = vsel %vm1906, %v1460, %v1794
        %v1959 = vsel %vm1906, %v1461, %v1796
        %v1962 = vsel %vm1906, %v1462, %v1798
        %v1965 = vsel %vm1906, %v1463, %v1800
        %v1968 = vsel %vm1906, %v1464, %v1802
        %v1971 = vsel %vm1906, %v1465, %v1804
        %v1974 = vsel %vm1906, %v1466, %v1806
        %v1977 = vsel %vm1906, %v1467, %v1808
        %v1980 = vsel %vm1906, %v1468, %v1810
        %v1983 = vsel %vm1906, %v1469, %v1812
        %v1986 = vsel %vm1906, %v1470, %v1814
        %v1989 = vsel %vm1906, %v1471, %v1816
        %v1992 = vsel %vm1906, %v1472, %v1818
        %v1995 = vsel %vm1906, %v1473, %v1820
        %v1998 = vsel %vm1906, %v1474, %v1822
        %v2001 = vsel %vm1906, %v1475, %v1824
        %v2003 = vld [vmem:[%s1] sm:$0xff]
        %v2004 = vld [vmem:[%s1 + $0x8] sm:$0xff]
        %v2005 = vld [vmem:[%s1 + $0x10] sm:$0xff]
        %v2006 = vld [vmem:[%s1 + $0x18] sm:$0xff]
        %v2007 = vld [vmem:[%s1 + $0x20] sm:$0xff]
        %v2008 = vld [vmem:[%s1 + $0x28] sm:$0xff]
        %v2009 = vld [vmem:[%s1 + $0x30] sm:$0xff]
        %v2010 = vld [vmem:[%s1 + $0x38] sm:$0xff]
        %v2011 = vld [vmem:[%s1 + $0x40] sm:$0xff]
        %v2012 = vld [vmem:[%s1 + $0x48] sm:$0xff]
        %v2013 = vld [vmem:[%s1 + $0x50] sm:$0xff]
        %v2014 = vld [vmem:[%s1 + $0x58] sm:$0xff]
        %v2015 = vld [vmem:[%s1 + $0x60] sm:$0xff]
        %v2016 = vld [vmem:[%s1 + $0x68] sm:$0xff]
        %v2017 = vld [vmem:[%s1 + $0x70] sm:$0xff]
        %v2018 = vld [vmem:[%s1 + $0x78] sm:$0xff]
        %v2019 = vld [vmem:[%s1 + $0x80] sm:$0xff]
        %v2020 = vld [vmem:[%s1 + $0x88] sm:$0xff]
        %v2021 = vld [vmem:[%s1 + $0x90] sm:$0xff]
        %v2022 = vld [vmem:[%s1 + $0x98] sm:$0xff]
        %v2023 = vld [vmem:[%s1 + $0xa0] sm:$0xff]
        %v2024 = vld [vmem:[%s1 + $0xa8] sm:$0xff]
        %v2025 = vld [vmem:[%s1 + $0xb0] sm:$0xff]
        %v2026 = vld [vmem:[%s1 + $0xb8] sm:$0xff]
        %v2027 = vld [vmem:[%s2] sm:$0x3]
        %v2029 = vlaneseq
        %v2030 = vshrl.u32 %v2029, 7
        %v2031 = vsub.s32 0, %v2030
        %v2032 = vrot.slane %v2027, %v2031
        %v2033 = vlaneseq
        %v2034 = vshrl.u32 %v2033, 7
        %v2035 = vsub.s32 1, %v2034
        %v2036 = vrot.slane %v2027, %v2035
        %v2063 = vunpack.c.l.b16 %v2003
        %v2064 = vunpack.c.h.b16 %v2003
        %v2065 = vunpack.c.l.b16 %v2004
        %v2066 = vunpack.c.h.b16 %v2004
        %v2067 = vunpack.c.l.b16 %v2005
        %v2068 = vunpack.c.h.b16 %v2005
        %v2069 = vunpack.c.l.b16 %v2006
        %v2070 = vunpack.c.h.b16 %v2006
        %v2071 = vunpack.c.l.b16 %v2007
        %v2072 = vunpack.c.h.b16 %v2007
        %v2073 = vunpack.c.l.b16 %v2008
        %v2074 = vunpack.c.h.b16 %v2008
        %v2075 = vunpack.c.l.b16 %v2009
        %v2076 = vunpack.c.h.b16 %v2009
        %v2077 = vunpack.c.l.b16 %v2010
        %v2078 = vunpack.c.h.b16 %v2010
        %v2079 = vunpack.c.l.b16 %v2011
        %v2080 = vunpack.c.h.b16 %v2011
        %v2081 = vunpack.c.l.b16 %v2012
        %v2082 = vunpack.c.h.b16 %v2012
        %v2083 = vunpack.c.l.b16 %v2013
        %v2084 = vunpack.c.h.b16 %v2013
        %v2085 = vunpack.c.l.b16 %v2014
        %v2086 = vunpack.c.h.b16 %v2014
        %v2087 = vunpack.c.l.b16 %v2015
        %v2088 = vunpack.c.h.b16 %v2015
        %v2089 = vunpack.c.l.b16 %v2016
        %v2090 = vunpack.c.h.b16 %v2016
        %v2091 = vunpack.c.l.b16 %v2017
        %v2092 = vunpack.c.h.b16 %v2017
        %v2093 = vunpack.c.l.b16 %v2018
        %v2094 = vunpack.c.h.b16 %v2018
        %v2095 = vunpack.c.l.b16 %v2019
        %v2096 = vunpack.c.h.b16 %v2019
        %v2097 = vunpack.c.l.b16 %v2020
        %v2098 = vunpack.c.h.b16 %v2020
        %v2099 = vunpack.c.l.b16 %v2021
        %v2100 = vunpack.c.h.b16 %v2021
        %v2101 = vunpack.c.l.b16 %v2022
        %v2102 = vunpack.c.h.b16 %v2022
        %v2103 = vunpack.c.l.b16 %v2023
        %v2104 = vunpack.c.h.b16 %v2023
        %v2105 = vunpack.c.l.b16 %v2024
        %v2106 = vunpack.c.h.b16 %v2024
        %v2107 = vunpack.c.l.b16 %v2025
        %v2108 = vunpack.c.h.b16 %v2025
        %v2109 = vunpack.c.l.b16 %v2026
        %v2110 = vunpack.c.h.b16 %v2026
        %v2111 = vpack.c.b16 %v2065, %v2063
        %v2112 = vpack.c.b16 %v2066, %v2064
        %v2113 = vpack.c.b16 %v2069, %v2067
        %v2114 = vpack.c.b16 %v2070, %v2068
        %v2115 = vpack.c.b16 %v2073, %v2071
        %v2116 = vpack.c.b16 %v2074, %v2072
        %v2117 = vpack.c.b16 %v2077, %v2075
        %v2118 = vpack.c.b16 %v2078, %v2076
        %v2119 = vpack.c.b16 %v2081, %v2079
        %v2120 = vpack.c.b16 %v2082, %v2080
        %v2121 = vpack.c.b16 %v2085, %v2083
        %v2122 = vpack.c.b16 %v2086, %v2084
        %v2123 = vpack.c.b16 %v2089, %v2087
        %v2124 = vpack.c.b16 %v2090, %v2088
        %v2125 = vpack.c.b16 %v2093, %v2091
        %v2126 = vpack.c.b16 %v2094, %v2092
        %v2127 = vpack.c.b16 %v2097, %v2095
        %v2128 = vpack.c.b16 %v2098, %v2096
        %v2129 = vpack.c.b16 %v2101, %v2099
        %v2130 = vpack.c.b16 %v2102, %v2100
        %v2131 = vpack.c.b16 %v2105, %v2103
        %v2132 = vpack.c.b16 %v2106, %v2104
        %v2133 = vpack.c.b16 %v2109, %v2107
        %v2134 = vpack.c.b16 %v2110, %v2108
        %v2160 = vsel %vm1906, %v1840, 0
        %v2163 = vsel %vm1906, %v1842, 0
        %v2166 = vsel %vm1906, %v1844, 0
        %v2169 = vsel %vm1906, %v1846, 0
        %v2172 = vsel %vm1906, %v1848, 0
        %v2175 = vsel %vm1906, %v1850, 0
        %v2178 = vsel %vm1906, %v1852, 0
        %v2181 = vsel %vm1906, %v1854, 0
        %v2184 = vsel %vm1906, %v1857, 0
        %v2187 = vsel %vm1906, %v1859, 0
        %v2190 = vsel %vm1906, %v1861, 0
        %v2193 = vsel %vm1906, %v1863, 0
        %v2196 = vsel %vm1906, %v1865, 0
        %v2199 = vsel %vm1906, %v1867, 0
        %v2202 = vsel %vm1906, %v1869, 0
        %v2205 = vsel %vm1906, %v1871, 0
        %v2208 = vsel %vm1906, %v1874, 0
        %v2211 = vsel %vm1906, %v1876, 0
        %v2214 = vsel %vm1906, %v1878, 0
        %v2217 = vsel %vm1906, %v1880, 0
        %v2220 = vsel %vm1906, %v1882, 0
        %v2223 = vsel %vm1906, %v1884, 0
        %v2226 = vsel %vm1906, %v1886, 0
        %v2229 = vsel %vm1906, %v1888, 0
        %v2232 = vsel %vm1906, %v1891, 0
        %v2235 = vsel %vm1906, %v1893, 0
        %v2238 = vsel %vm1906, %v1895, 0
        %v2241 = vsel %vm1906, %v1897, 0
        %v2244 = vsel %vm1906, %v1899, 0
        %v2247 = vsel %vm1906, %v1901, 0
        %v2250 = vsel %vm1906, %v1903, 0
        %v2253 = vsel %vm1906, %v1905, 0
        %2255 = vmatprep.subr.bf16.mxu0 %v2112
        %2256 = vmatpush1.bf16.msra.mxu0 %v2111
        %2257 = vmatprep.subr.bf16.mxu0 %v2114
        %2258 = vmatpush1.bf16.msra.mxu0 %v2113
        %2259 = vmatprep.subr.bf16.mxu0 %v2116
        %2260 = vmatpush1.bf16.msra.mxu0 %v2115
        %2261 = vmatprep.subr.bf16.mxu0 %v2118
        %2262 = vmatpush1.bf16.msra.mxu0 %v2117
        %2263 = vmatprep.subr.bf16.mxu0 %v2120
        %2264 = vmatpush1.bf16.msra.mxu0 %v2119
        %2265 = vmatprep.subr.bf16.mxu0 %v2122
        %2266 = vmatpush1.bf16.msra.mxu0 %v2121
        %2267 = vmatprep.subr.bf16.mxu0 %v2124
        %2268 = vmatpush1.bf16.msra.mxu0 %v2123
        %2269 = vmatprep.subr.bf16.mxu0 %v2126
        %2270 = vmatpush1.bf16.msra.mxu0 %v2125
        %2271 = vmatprep.subr.bf16.mxu0 %v2128
        %2272 = vmatpush1.bf16.msra.mxu0 %v2127
        %2273 = vmatprep.subr.bf16.mxu0 %v2130
        %2274 = vmatpush1.bf16.msra.mxu0 %v2129
        %2275 = vmatprep.subr.bf16.mxu0 %v2132
        %2276 = vmatpush1.bf16.msra.mxu0 %v2131
        %2277 = vmatprep.subr.bf16.mxu0 %v2134
        %2278 = vmatpush1.bf16.msra.mxu0 %v2133
        %2279 = vmatprep.subr.bf16.mxu0 0
        %2280 = vmatpush1.bf16.msra.mxu0 0
        %2281 = vmatprep.subr.bf16.mxu0 0
        %2282 = vmatpush1.bf16.msra.mxu0 0
        %2283 = vmatprep.subr.bf16.mxu0 0
        %2284 = vmatpush1.bf16.msra.mxu0 0
        %2285 = vmatprep.subr.bf16.mxu0 0
        %2286 = vmatpush1.bf16.msra.mxu0 0
        %2287 = vmatprep.mubr.bf16.mxu0 %v2160
        %2288 = vmatmul.mubr.bf16.gmra.mrb[0].mxu0 %v1908
        %v2289 = vpop.f32.mrb[0].mxu0
        %v2290 = vadd.f32 %v2032, %v2289
        %v2291 = vpop.f32.mrb[0].mxu0
        %v2292 = vadd.f32 %v2036, %v2291
        %v2293 = vpop.f32.mrb[0].mxu0
        %v2294 = vadd.f32 %v2032, %v2293
        %v2295 = vpop.f32.mrb[0].mxu0
        %v2296 = vadd.f32 %v2036, %v2295
        %2297 = vmatprep.mubr.bf16.mxu0 %v2163
        %2298 = vmatmul.mubr.bf16.gmra.mrb[0].mxu0 %v1911
        %v2299 = vpop.f32.mrb[0].mxu0
        %v2300 = vadd.f32 %v2032, %v2299
        %v2301 = vpop.f32.mrb[0].mxu0
        %v2302 = vadd.f32 %v2036, %v2301
        %v2303 = vpop.f32.mrb[0].mxu0
        %v2304 = vadd.f32 %v2032, %v2303
        %v2305 = vpop.f32.mrb[0].mxu0
        %v2306 = vadd.f32 %v2036, %v2305
        %2307 = vmatprep.mubr.bf16.mxu0 %v2166
        %2308 = vmatmul.mubr.bf16.gmra.mrb[0].mxu0 %v1914
        %v2309 = vpop.f32.mrb[0].mxu0
        %v2310 = vadd.f32 %v2032, %v2309
        %v2311 = vpop.f32.mrb[0].mxu0
        %v2312 = vadd.f32 %v2036, %v2311
        %v2313 = vpop.f32.mrb[0].mxu0
        %v2314 = vadd.f32 %v2032, %v2313
        %v2315 = vpop.f32.mrb[0].mxu0
        %v2316 = vadd.f32 %v2036, %v2315
        %2317 = vmatprep.mubr.bf16.mxu0 %v2169
        %2318 = vmatmul.mubr.bf16.gmra.mrb[0].mxu0 %v1917
        %v2319 = vpop.f32.mrb[0].mxu0
        %v2320 = vadd.f32 %v2032, %v2319
        %v2321 = vpop.f32.mrb[0].mxu0
        %v2322 = vadd.f32 %v2036, %v2321
        %v2323 = vpop.f32.mrb[0].mxu0
        %v2324 = vadd.f32 %v2032, %v2323
        %v2325 = vpop.f32.mrb[0].mxu0
        %v2326 = vadd.f32 %v2036, %v2325
        %2327 = vmatprep.mubr.bf16.mxu0 %v2172
        %2328 = vmatmul.mubr.bf16.gmra.mrb[0].mxu0 %v1920
        %v2329 = vpop.f32.mrb[0].mxu0
        %v2330 = vadd.f32 %v2032, %v2329
        %v2331 = vpop.f32.mrb[0].mxu0
        %v2332 = vadd.f32 %v2036, %v2331
        %v2333 = vpop.f32.mrb[0].mxu0
        %v2334 = vadd.f32 %v2032, %v2333
        %v2335 = vpop.f32.mrb[0].mxu0
        %v2336 = vadd.f32 %v2036, %v2335
        %2337 = vmatprep.mubr.bf16.mxu0 %v2175
        %2338 = vmatmul.mubr.bf16.gmra.mrb[0].mxu0 %v1923
        %v2339 = vpop.f32.mrb[0].mxu0
        %v2340 = vadd.f32 %v2032, %v2339
        %v2341 = vpop.f32.mrb[0].mxu0
        %v2342 = vadd.f32 %v2036, %v2341
        %v2343 = vpop.f32.mrb[0].mxu0
        %v2344 = vadd.f32 %v2032, %v2343
        %v2345 = vpop.f32.mrb[0].mxu0
        %v2346 = vadd.f32 %v2036, %v2345
        %2347 = vmatprep.mubr.bf16.mxu0 %v2178
        %2348 = vmatmul.mubr.bf16.gmra.mrb[0].mxu0 %v1926
        %v2349 = vpop.f32.mrb[0].mxu0
        %v2350 = vadd.f32 %v2032, %v2349
        %v2351 = vpop.f32.mrb[0].mxu0
        %v2352 = vadd.f32 %v2036, %v2351
        %v2353 = vpop.f32.mrb[0].mxu0
        %v2354 = vadd.f32 %v2032, %v2353
        %v2355 = vpop.f32.mrb[0].mxu0
        %v2356 = vadd.f32 %v2036, %v2355
        %2357 = vmatprep.mubr.bf16.mxu0 %v2181
        %2358 = vmatmul.mubr.bf16.gmra.mrb[0].mxu0 %v1929
        %v2359 = vpop.f32.mrb[0].mxu0
        %v2360 = vadd.f32 %v2032, %v2359
        %v2361 = vpop.f32.mrb[0].mxu0
        %v2362 = vadd.f32 %v2036, %v2361
        %v2363 = vpop.f32.mrb[0].mxu0
        %v2364 = vadd.f32 %v2032, %v2363
        %v2365 = vpop.f32.mrb[0].mxu0
        %v2366 = vadd.f32 %v2036, %v2365
        %2367 = vmatprep.mubr.bf16.mxu0 %v2184
        %2368 = vmatmul.mubr.bf16.gmra.mrb[0].mxu0 %v1932
        %v2369 = vpop.f32.mrb[0].mxu0
        %v2370 = vadd.f32 %v2032, %v2369
        %v2371 = vpop.f32.mrb[0].mxu0
        %v2372 = vadd.f32 %v2036, %v2371
        %v2373 = vpop.f32.mrb[0].mxu0
        %v2374 = vadd.f32 %v2032, %v2373
        %v2375 = vpop.f32.mrb[0].mxu0
        %v2376 = vadd.f32 %v2036, %v2375
        %2377 = vmatprep.mubr.bf16.mxu0 %v2187
        %2378 = vmatmul.mubr.bf16.gmra.mrb[0].mxu0 %v1935
        %v2379 = vpop.f32.mrb[0].mxu0
        %v2380 = vadd.f32 %v2032, %v2379
        %v2381 = vpop.f32.mrb[0].mxu0
        %v2382 = vadd.f32 %v2036, %v2381
        %v2383 = vpop.f32.mrb[0].mxu0
        %v2384 = vadd.f32 %v2032, %v2383
        %v2385 = vpop.f32.mrb[0].mxu0
        %v2386 = vadd.f32 %v2036, %v2385
        %2387 = vmatprep.mubr.bf16.mxu0 %v2190
        %2388 = vmatmul.mubr.bf16.gmra.mrb[0].mxu0 %v1938
        %v2389 = vpop.f32.mrb[0].mxu0
        %v2390 = vadd.f32 %v2032, %v2389
        %v2391 = vpop.f32.mrb[0].mxu0
        %v2392 = vadd.f32 %v2036, %v2391
        %v2393 = vpop.f32.mrb[0].mxu0
        %v2394 = vadd.f32 %v2032, %v2393
        %v2395 = vpop.f32.mrb[0].mxu0
        %v2396 = vadd.f32 %v2036, %v2395
        %2397 = vmatprep.mubr.bf16.mxu0 %v2193
        %2398 = vmatmul.mubr.bf16.gmra.mrb[0].mxu0 %v1941
        %v2399 = vpop.f32.mrb[0].mxu0
        %v2400 = vadd.f32 %v2032, %v2399
        %v2401 = vpop.f32.mrb[0].mxu0
        %v2402 = vadd.f32 %v2036, %v2401
        %v2403 = vpop.f32.mrb[0].mxu0
        %v2404 = vadd.f32 %v2032, %v2403
        %v2405 = vpop.f32.mrb[0].mxu0
        %v2406 = vadd.f32 %v2036, %v2405
        %2407 = vmatprep.mubr.bf16.mxu0 %v2196
        %2408 = vmatmul.mubr.bf16.gmra.mrb[0].mxu0 %v1944
        %v2409 = vpop.f32.mrb[0].mxu0
        %v2410 = vadd.f32 %v2032, %v2409
        %v2411 = vpop.f32.mrb[0].mxu0
        %v2412 = vadd.f32 %v2036, %v2411
        %v2413 = vpop.f32.mrb[0].mxu0
        %v2414 = vadd.f32 %v2032, %v2413
        %v2415 = vpop.f32.mrb[0].mxu0
        %v2416 = vadd.f32 %v2036, %v2415
        %2417 = vmatprep.mubr.bf16.mxu0 %v2199
        %2418 = vmatmul.mubr.bf16.gmra.mrb[0].mxu0 %v1947
        %v2419 = vpop.f32.mrb[0].mxu0
        %v2420 = vadd.f32 %v2032, %v2419
        %v2421 = vpop.f32.mrb[0].mxu0
        %v2422 = vadd.f32 %v2036, %v2421
        %v2423 = vpop.f32.mrb[0].mxu0
        %v2424 = vadd.f32 %v2032, %v2423
        %v2425 = vpop.f32.mrb[0].mxu0
        %v2426 = vadd.f32 %v2036, %v2425
        %2427 = vmatprep.mubr.bf16.mxu0 %v2202
        %2428 = vmatmul.mubr.bf16.gmra.mrb[0].mxu0 %v1950
        %v2429 = vpop.f32.mrb[0].mxu0
        %v2430 = vadd.f32 %v2032, %v2429
        %v2431 = vpop.f32.mrb[0].mxu0
        %v2432 = vadd.f32 %v2036, %v2431
        %v2433 = vpop.f32.mrb[0].mxu0
        %v2434 = vadd.f32 %v2032, %v2433
        %v2435 = vpop.f32.mrb[0].mxu0
        %v2436 = vadd.f32 %v2036, %v2435
        %2437 = vmatprep.mubr.bf16.mxu0 %v2205
        %2438 = vmatmul.mubr.bf16.gmra.mrb[0].mxu0 %v1953
        %v2439 = vpop.f32.mrb[0].mxu0
        %v2440 = vadd.f32 %v2032, %v2439
        %v2441 = vpop.f32.mrb[0].mxu0
        %v2442 = vadd.f32 %v2036, %v2441
        %v2443 = vpop.f32.mrb[0].mxu0
        %v2444 = vadd.f32 %v2032, %v2443
        %v2445 = vpop.f32.mrb[0].mxu0
        %v2446 = vadd.f32 %v2036, %v2445
        %2447 = vmatprep.mubr.bf16.mxu0 %v2208
        %2448 = vmatmul.mubr.bf16.gmra.mrb[0].mxu0 %v1956
        %v2449 = vpop.f32.mrb[0].mxu0
        %v2450 = vadd.f32 %v2032, %v2449
        %v2451 = vpop.f32.mrb[0].mxu0
        %v2452 = vadd.f32 %v2036, %v2451
        %v2453 = vpop.f32.mrb[0].mxu0
        %v2454 = vadd.f32 %v2032, %v2453
        %v2455 = vpop.f32.mrb[0].mxu0
        %v2456 = vadd.f32 %v2036, %v2455
        %2457 = vmatprep.mubr.bf16.mxu0 %v2211
        %2458 = vmatmul.mubr.bf16.gmra.mrb[0].mxu0 %v1959
        %v2459 = vpop.f32.mrb[0].mxu0
        %v2460 = vadd.f32 %v2032, %v2459
        %v2461 = vpop.f32.mrb[0].mxu0
        %v2462 = vadd.f32 %v2036, %v2461
        %v2463 = vpop.f32.mrb[0].mxu0
        %v2464 = vadd.f32 %v2032, %v2463
        %v2465 = vpop.f32.mrb[0].mxu0
        %v2466 = vadd.f32 %v2036, %v2465
        %2467 = vmatprep.mubr.bf16.mxu0 %v2214
        %2468 = vmatmul.mubr.bf16.gmra.mrb[0].mxu0 %v1962
        %v2469 = vpop.f32.mrb[0].mxu0
        %v2470 = vadd.f32 %v2032, %v2469
        %v2471 = vpop.f32.mrb[0].mxu0
        %v2472 = vadd.f32 %v2036, %v2471
        %v2473 = vpop.f32.mrb[0].mxu0
        %v2474 = vadd.f32 %v2032, %v2473
        %v2475 = vpop.f32.mrb[0].mxu0
        %v2476 = vadd.f32 %v2036, %v2475
        %2477 = vmatprep.mubr.bf16.mxu0 %v2217
        %2478 = vmatmul.mubr.bf16.gmra.mrb[0].mxu0 %v1965
        %v2479 = vpop.f32.mrb[0].mxu0
        %v2480 = vadd.f32 %v2032, %v2479
        %v2481 = vpop.f32.mrb[0].mxu0
        %v2482 = vadd.f32 %v2036, %v2481
        %v2483 = vpop.f32.mrb[0].mxu0
        %v2484 = vadd.f32 %v2032, %v2483
        %v2485 = vpop.f32.mrb[0].mxu0
        %v2486 = vadd.f32 %v2036, %v2485
        %2487 = vmatprep.mubr.bf16.mxu0 %v2220
        %2488 = vmatmul.mubr.bf16.gmra.mrb[0].mxu0 %v1968
        %v2489 = vpop.f32.mrb[0].mxu0
        %v2490 = vadd.f32 %v2032, %v2489
        %v2491 = vpop.f32.mrb[0].mxu0
        %v2492 = vadd.f32 %v2036, %v2491
        %v2493 = vpop.f32.mrb[0].mxu0
        %v2494 = vadd.f32 %v2032, %v2493
        %v2495 = vpop.f32.mrb[0].mxu0
        %v2496 = vadd.f32 %v2036, %v2495
        %2497 = vmatprep.mubr.bf16.mxu0 %v2223
        %2498 = vmatmul.mubr.bf16.gmra.mrb[0].mxu0 %v1971
        %v2499 = vpop.f32.mrb[0].mxu0
        %v2500 = vadd.f32 %v2032, %v2499
        %v2501 = vpop.f32.mrb[0].mxu0
        %v2502 = vadd.f32 %v2036, %v2501
        %v2503 = vpop.f32.mrb[0].mxu0
        %v2504 = vadd.f32 %v2032, %v2503
        %v2505 = vpop.f32.mrb[0].mxu0
        %v2506 = vadd.f32 %v2036, %v2505
        %2507 = vmatprep.mubr.bf16.mxu0 %v2226
        %2508 = vmatmul.mubr.bf16.gmra.mrb[0].mxu0 %v1974
        %v2509 = vpop.f32.mrb[0].mxu0
        %v2510 = vadd.f32 %v2032, %v2509
        %v2511 = vpop.f32.mrb[0].mxu0
        %v2512 = vadd.f32 %v2036, %v2511
        %v2513 = vpop.f32.mrb[0].mxu0
        %v2514 = vadd.f32 %v2032, %v2513
        %v2515 = vpop.f32.mrb[0].mxu0
        %v2516 = vadd.f32 %v2036, %v2515
        %2517 = vmatprep.mubr.bf16.mxu0 %v2229
        %2518 = vmatmul.mubr.bf16.gmra.mrb[0].mxu0 %v1977
        %v2519 = vpop.f32.mrb[0].mxu0
        %v2520 = vadd.f32 %v2032, %v2519
        %v2521 = vpop.f32.mrb[0].mxu0
        %v2522 = vadd.f32 %v2036, %v2521
        %v2523 = vpop.f32.mrb[0].mxu0
        %v2524 = vadd.f32 %v2032, %v2523
        %v2525 = vpop.f32.mrb[0].mxu0
        %v2526 = vadd.f32 %v2036, %v2525
        %2527 = vmatprep.mubr.bf16.mxu0 %v2232
        %2528 = vmatmul.mubr.bf16.gmra.mrb[0].mxu0 %v1980
        %v2529 = vpop.f32.mrb[0].mxu0
        %v2530 = vadd.f32 %v2032, %v2529
        %v2531 = vpop.f32.mrb[0].mxu0
        %v2532 = vadd.f32 %v2036, %v2531
        %v2533 = vpop.f32.mrb[0].mxu0
        %v2534 = vadd.f32 %v2032, %v2533
        %v2535 = vpop.f32.mrb[0].mxu0
        %v2536 = vadd.f32 %v2036, %v2535
        %2537 = vmatprep.mubr.bf16.mxu0 %v2235
        %2538 = vmatmul.mubr.bf16.gmra.mrb[0].mxu0 %v1983
        %v2539 = vpop.f32.mrb[0].mxu0
        %v2540 = vadd.f32 %v2032, %v2539
        %v2541 = vpop.f32.mrb[0].mxu0
        %v2542 = vadd.f32 %v2036, %v2541
        %v2543 = vpop.f32.mrb[0].mxu0
        %v2544 = vadd.f32 %v2032, %v2543
        %v2545 = vpop.f32.mrb[0].mxu0
        %v2546 = vadd.f32 %v2036, %v2545
        %2547 = vmatprep.mubr.bf16.mxu0 %v2238
        %2548 = vmatmul.mubr.bf16.gmra.mrb[0].mxu0 %v1986
        %v2549 = vpop.f32.mrb[0].mxu0
        %v2550 = vadd.f32 %v2032, %v2549
        %v2551 = vpop.f32.mrb[0].mxu0
        %v2552 = vadd.f32 %v2036, %v2551
        %v2553 = vpop.f32.mrb[0].mxu0
        %v2554 = vadd.f32 %v2032, %v2553
        %v2555 = vpop.f32.mrb[0].mxu0
        %v2556 = vadd.f32 %v2036, %v2555
        %2557 = vmatprep.mubr.bf16.mxu0 %v2241
        %2558 = vmatmul.mubr.bf16.gmra.mrb[0].mxu0 %v1989
        %v2559 = vpop.f32.mrb[0].mxu0
        %v2560 = vadd.f32 %v2032, %v2559
        %v2561 = vpop.f32.mrb[0].mxu0
        %v2562 = vadd.f32 %v2036, %v2561
        %v2563 = vpop.f32.mrb[0].mxu0
        %v2564 = vadd.f32 %v2032, %v2563
        %v2565 = vpop.f32.mrb[0].mxu0
        %v2566 = vadd.f32 %v2036, %v2565
        %2567 = vmatprep.mubr.bf16.mxu0 %v2244
        %2568 = vmatmul.mubr.bf16.gmra.mrb[0].mxu0 %v1992
        %v2569 = vpop.f32.mrb[0].mxu0
        %v2570 = vadd.f32 %v2032, %v2569
        %v2571 = vpop.f32.mrb[0].mxu0
        %v2572 = vadd.f32 %v2036, %v2571
        %v2573 = vpop.f32.mrb[0].mxu0
        %v2574 = vadd.f32 %v2032, %v2573
        %v2575 = vpop.f32.mrb[0].mxu0
        %v2576 = vadd.f32 %v2036, %v2575
        %2577 = vmatprep.mubr.bf16.mxu0 %v2247
        %2578 = vmatmul.mubr.bf16.gmra.mrb[0].mxu0 %v1995
        %v2579 = vpop.f32.mrb[0].mxu0
        %v2580 = vadd.f32 %v2032, %v2579
        %v2581 = vpop.f32.mrb[0].mxu0
        %v2582 = vadd.f32 %v2036, %v2581
        %v2583 = vpop.f32.mrb[0].mxu0
        %v2584 = vadd.f32 %v2032, %v2583
        %v2585 = vpop.f32.mrb[0].mxu0
        %v2586 = vadd.f32 %v2036, %v2585
        %2587 = vmatprep.mubr.bf16.mxu0 %v2250
        %2588 = vmatmul.mubr.bf16.gmra.mrb[0].mxu0 %v1998
        %v2589 = vpop.f32.mrb[0].mxu0
        %v2590 = vadd.f32 %v2032, %v2589
        %v2591 = vpop.f32.mrb[0].mxu0
        %v2592 = vadd.f32 %v2036, %v2591
        %v2593 = vpop.f32.mrb[0].mxu0
        %v2594 = vadd.f32 %v2032, %v2593
        %v2595 = vpop.f32.mrb[0].mxu0
        %v2596 = vadd.f32 %v2036, %v2595
        %2597 = vmatprep.mubr.bf16.mxu0 %v2253
        %2598 = vmatmul.mubr.bf16.gmra.mrb[0].mxu0 %v2001
        %v2599 = vpop.f32.mrb[0].mxu0
        %v2600 = vadd.f32 %v2032, %v2599
        %v2601 = vpop.f32.mrb[0].mxu0
        %v2602 = vadd.f32 %v2036, %v2601
        %v2603 = vpop.f32.mrb[0].mxu0
        %v2604 = vadd.f32 %v2032, %v2603
        %v2605 = vpop.f32.mrb[0].mxu0
        %v2606 = vadd.f32 %v2036, %v2605
        %2607 = vdwg.mxu0
        %v2608 = vxor.u32 %v2292, 2147483648
        %v2609 = vxor.u32 %v2296, 2147483648
        %v2610 = vxor.u32 %v2302, 2147483648
        %v2611 = vxor.u32 %v2306, 2147483648
        %v2612 = vxor.u32 %v2312, 2147483648
        %v2613 = vxor.u32 %v2316, 2147483648
        %v2614 = vxor.u32 %v2322, 2147483648
        %v2615 = vxor.u32 %v2326, 2147483648
        %v2616 = vxor.u32 %v2332, 2147483648
        %v2617 = vxor.u32 %v2336, 2147483648
        %v2618 = vxor.u32 %v2342, 2147483648
        %v2619 = vxor.u32 %v2346, 2147483648
        %v2620 = vxor.u32 %v2352, 2147483648
        %v2621 = vxor.u32 %v2356, 2147483648
        %v2622 = vxor.u32 %v2362, 2147483648
        %v2623 = vxor.u32 %v2366, 2147483648
        %v2624 = vxor.u32 %v2372, 2147483648
        %v2625 = vxor.u32 %v2376, 2147483648
        %v2626 = vxor.u32 %v2382, 2147483648
        %v2627 = vxor.u32 %v2386, 2147483648
        %v2628 = vxor.u32 %v2392, 2147483648
        %v2629 = vxor.u32 %v2396, 2147483648
        %v2630 = vxor.u32 %v2402, 2147483648
        %v2631 = vxor.u32 %v2406, 2147483648
        %v2632 = vxor.u32 %v2412, 2147483648
        %v2633 = vxor.u32 %v2416, 2147483648
        %v2634 = vxor.u32 %v2422, 2147483648
        %v2635 = vxor.u32 %v2426, 2147483648
        %v2636 = vxor.u32 %v2432, 2147483648
        %v2637 = vxor.u32 %v2436, 2147483648
        %v2638 = vxor.u32 %v2442, 2147483648
        %v2639 = vxor.u32 %v2446, 2147483648
        %v2640 = vxor.u32 %v2452, 2147483648
        %v2641 = vxor.u32 %v2456, 2147483648
        %v2642 = vxor.u32 %v2462, 2147483648
        %v2643 = vxor.u32 %v2466, 2147483648
        %v2644 = vxor.u32 %v2472, 2147483648
        %v2645 = vxor.u32 %v2476, 2147483648
        %v2646 = vxor.u32 %v2482, 2147483648
        %v2647 = vxor.u32 %v2486, 2147483648
        %v2648 = vxor.u32 %v2492, 2147483648
        %v2649 = vxor.u32 %v2496, 2147483648
        %v2650 = vxor.u32 %v2502, 2147483648
        %v2651 = vxor.u32 %v2506, 2147483648
        %v2652 = vxor.u32 %v2512, 2147483648
        %v2653 = vxor.u32 %v2516, 2147483648
        %v2654 = vxor.u32 %v2522, 2147483648
        %v2655 = vxor.u32 %v2526, 2147483648
        %v2656 = vxor.u32 %v2532, 2147483648
        %v2657 = vxor.u32 %v2536, 2147483648
        %v2658 = vxor.u32 %v2542, 2147483648
        %v2659 = vxor.u32 %v2546, 2147483648
        %v2660 = vxor.u32 %v2552, 2147483648
        %v2661 = vxor.u32 %v2556, 2147483648
        %v2662 = vxor.u32 %v2562, 2147483648
        %v2663 = vxor.u32 %v2566, 2147483648
        %v2664 = vxor.u32 %v2572, 2147483648
        %v2665 = vxor.u32 %v2576, 2147483648
        %v2666 = vxor.u32 %v2582, 2147483648
        %v2667 = vxor.u32 %v2586, 2147483648
        %v2668 = vxor.u32 %v2592, 2147483648
        %v2669 = vxor.u32 %v2596, 2147483648
        %v2670 = vxor.u32 %v2602, 2147483648
        %v2671 = vxor.u32 %v2606, 2147483648
        %v2672 = vmul.f32 %v2608, 1.442695
        %v2673 = vpow.pop %v2672
        %v2674 = vmul.f32 %v2609, 1.442695
        %v2675 = vpow.pop %v2674
        %v2676 = vmul.f32 %v2610, 1.442695
        %v2677 = vpow.pop %v2676
        %v2678 = vmul.f32 %v2611, 1.442695
        %v2679 = vpow.pop %v2678
        %v2680 = vmul.f32 %v2612, 1.442695
        %v2681 = vpow.pop %v2680
        %v2682 = vmul.f32 %v2613, 1.442695
        %v2683 = vpow.pop %v2682
        %v2684 = vmul.f32 %v2614, 1.442695
        %v2685 = vpow.pop %v2684
        %v2686 = vmul.f32 %v2615, 1.442695
        %v2687 = vpow.pop %v2686
        %v2688 = vmul.f32 %v2616, 1.442695
        %v2689 = vpow.pop %v2688
        %v2690 = vmul.f32 %v2617, 1.442695
        %v2691 = vpow.pop %v2690
        %v2692 = vmul.f32 %v2618, 1.442695
        %v2693 = vpow.pop %v2692
        %v2694 = vmul.f32 %v2619, 1.442695
        %v2695 = vpow.pop %v2694
        %v2696 = vmul.f32 %v2620, 1.442695
        %v2697 = vpow.pop %v2696
        %v2698 = vmul.f32 %v2621, 1.442695
        %v2699 = vpow.pop %v2698
        %v2700 = vmul.f32 %v2622, 1.442695
        %v2701 = vpow.pop %v2700
        %v2702 = vmul.f32 %v2623, 1.442695
        %v2703 = vpow.pop %v2702
        %v2704 = vmul.f32 %v2624, 1.442695
        %v2705 = vpow.pop %v2704
        %v2706 = vmul.f32 %v2625, 1.442695
        %v2707 = vpow.pop %v2706
        %v2708 = vmul.f32 %v2626, 1.442695
        %v2709 = vpow.pop %v2708
        %v2710 = vmul.f32 %v2627, 1.442695
        %v2711 = vpow.pop %v2710
        %v2712 = vmul.f32 %v2628, 1.442695
        %v2713 = vpow.pop %v2712
        %v2714 = vmul.f32 %v2629, 1.442695
        %v2715 = vpow.pop %v2714
        %v2716 = vmul.f32 %v2630, 1.442695
        %v2717 = vpow.pop %v2716
        %v2718 = vmul.f32 %v2631, 1.442695
        %v2719 = vpow.pop %v2718
        %v2720 = vmul.f32 %v2632, 1.442695
        %v2721 = vpow.pop %v2720
        %v2722 = vmul.f32 %v2633, 1.442695
        %v2723 = vpow.pop %v2722
        %v2724 = vmul.f32 %v2634, 1.442695
        %v2725 = vpow.pop %v2724
        %v2726 = vmul.f32 %v2635, 1.442695
        %v2727 = vpow.pop %v2726
        %v2728 = vmul.f32 %v2636, 1.442695
        %v2729 = vpow.pop %v2728
        %v2730 = vmul.f32 %v2637, 1.442695
        %v2731 = vpow.pop %v2730
        %v2732 = vmul.f32 %v2638, 1.442695
        %v2733 = vpow.pop %v2732
        %v2734 = vmul.f32 %v2639, 1.442695
        %v2735 = vpow.pop %v2734
        %v2736 = vmul.f32 %v2640, 1.442695
        %v2737 = vpow.pop %v2736
        %v2738 = vmul.f32 %v2641, 1.442695
        %v2739 = vpow.pop %v2738
        %v2740 = vmul.f32 %v2642, 1.442695
        %v2741 = vpow.pop %v2740
        %v2742 = vmul.f32 %v2643, 1.442695
        %v2743 = vpow.pop %v2742
        %v2744 = vmul.f32 %v2644, 1.442695
        %v2745 = vpow.pop %v2744
        %v2746 = vmul.f32 %v2645, 1.442695
        %v2747 = vpow.pop %v2746
        %v2748 = vmul.f32 %v2646, 1.442695
        %v2749 = vpow.pop %v2748
        %v2750 = vmul.f32 %v2647, 1.442695
        %v2751 = vpow.pop %v2750
        %v2752 = vmul.f32 %v2648, 1.442695
        %v2753 = vpow.pop %v2752
        %v2754 = vmul.f32 %v2649, 1.442695
        %v2755 = vpow.pop %v2754
        %v2756 = vmul.f32 %v2650, 1.442695
        %v2757 = vpow.pop %v2756
        %v2758 = vmul.f32 %v2651, 1.442695
        %v2759 = vpow.pop %v2758
        %v2760 = vmul.f32 %v2652, 1.442695
        %v2761 = vpow.pop %v2760
        %v2762 = vmul.f32 %v2653, 1.442695
        %v2763 = vpow.pop %v2762
        %v2764 = vmul.f32 %v2654, 1.442695
        %v2765 = vpow.pop %v2764
        %v2766 = vmul.f32 %v2655, 1.442695
        %v2767 = vpow.pop %v2766
        %v2768 = vmul.f32 %v2656, 1.442695
        %v2769 = vpow.pop %v2768
        %v2770 = vmul.f32 %v2657, 1.442695
        %v2771 = vpow.pop %v2770
        %v2772 = vmul.f32 %v2658, 1.442695
        %v2773 = vpow.pop %v2772
        %v2774 = vmul.f32 %v2659, 1.442695
        %v2775 = vpow.pop %v2774
        %v2776 = vmul.f32 %v2660, 1.442695
        %v2777 = vpow.pop %v2776
        %v2778 = vmul.f32 %v2661, 1.442695
        %v2779 = vpow.pop %v2778
        %v2780 = vmul.f32 %v2662, 1.442695
        %v2781 = vpow.pop %v2780
        %v2782 = vmul.f32 %v2663, 1.442695
        %v2783 = vpow.pop %v2782
        %v2784 = vmul.f32 %v2664, 1.442695
        %v2785 = vpow.pop %v2784
        %v2786 = vmul.f32 %v2665, 1.442695
        %v2787 = vpow.pop %v2786
        %v2788 = vmul.f32 %v2666, 1.442695
        %v2789 = vpow.pop %v2788
        %v2790 = vmul.f32 %v2667, 1.442695
        %v2791 = vpow.pop %v2790
        %v2792 = vmul.f32 %v2668, 1.442695
        %v2793 = vpow.pop %v2792
        %v2794 = vmul.f32 %v2669, 1.442695
        %v2795 = vpow.pop %v2794
        %v2796 = vmul.f32 %v2670, 1.442695
        %v2797 = vpow.pop %v2796
        %v2798 = vmul.f32 %v2671, 1.442695
        %v2799 = vpow.pop %v2798
        %v2800 = vadd.f32 %v2673, 1.0
        %v2801 = vadd.f32 %v2675, 1.0
        %v2802 = vadd.f32 %v2677, 1.0
        %v2803 = vadd.f32 %v2679, 1.0
        %v2804 = vadd.f32 %v2681, 1.0
        %v2805 = vadd.f32 %v2683, 1.0
        %v2806 = vadd.f32 %v2685, 1.0
        %v2807 = vadd.f32 %v2687, 1.0
        %v2808 = vadd.f32 %v2689, 1.0
        %v2809 = vadd.f32 %v2691, 1.0
        %v2810 = vadd.f32 %v2693, 1.0
        %v2811 = vadd.f32 %v2695, 1.0
        %v2812 = vadd.f32 %v2697, 1.0
        %v2813 = vadd.f32 %v2699, 1.0
        %v2814 = vadd.f32 %v2701, 1.0
        %v2815 = vadd.f32 %v2703, 1.0
        %v2816 = vadd.f32 %v2705, 1.0
        %v2817 = vadd.f32 %v2707, 1.0
        %v2818 = vadd.f32 %v2709, 1.0
        %v2819 = vadd.f32 %v2711, 1.0
        %v2820 = vadd.f32 %v2713, 1.0
        %v2821 = vadd.f32 %v2715, 1.0
        %v2822 = vadd.f32 %v2717, 1.0
        %v2823 = vadd.f32 %v2719, 1.0
        %v2824 = vadd.f32 %v2721, 1.0
        %v2825 = vadd.f32 %v2723, 1.0
        %v2826 = vadd.f32 %v2725, 1.0
        %v2827 = vadd.f32 %v2727, 1.0
        %v2828 = vadd.f32 %v2729, 1.0
        %v2829 = vadd.f32 %v2731, 1.0
        %v2830 = vadd.f32 %v2733, 1.0
        %v2831 = vadd.f32 %v2735, 1.0
        %v2832 = vadd.f32 %v2737, 1.0
        %v2833 = vadd.f32 %v2739, 1.0
        %v2834 = vadd.f32 %v2741, 1.0
        %v2835 = vadd.f32 %v2743, 1.0
        %v2836 = vadd.f32 %v2745, 1.0
        %v2837 = vadd.f32 %v2747, 1.0
        %v2838 = vadd.f32 %v2749, 1.0
        %v2839 = vadd.f32 %v2751, 1.0
        %v2840 = vadd.f32 %v2753, 1.0
        %v2841 = vadd.f32 %v2755, 1.0
        %v2842 = vadd.f32 %v2757, 1.0
        %v2843 = vadd.f32 %v2759, 1.0
        %v2844 = vadd.f32 %v2761, 1.0
        %v2845 = vadd.f32 %v2763, 1.0
        %v2846 = vadd.f32 %v2765, 1.0
        %v2847 = vadd.f32 %v2767, 1.0
        %v2848 = vadd.f32 %v2769, 1.0
        %v2849 = vadd.f32 %v2771, 1.0
        %v2850 = vadd.f32 %v2773, 1.0
        %v2851 = vadd.f32 %v2775, 1.0
        %v2852 = vadd.f32 %v2777, 1.0
        %v2853 = vadd.f32 %v2779, 1.0
        %v2854 = vadd.f32 %v2781, 1.0
        %v2855 = vadd.f32 %v2783, 1.0
        %v2856 = vadd.f32 %v2785, 1.0
        %v2857 = vadd.f32 %v2787, 1.0
        %v2858 = vadd.f32 %v2789, 1.0
        %v2859 = vadd.f32 %v2791, 1.0
        %v2860 = vadd.f32 %v2793, 1.0
        %v2861 = vadd.f32 %v2795, 1.0
        %v2862 = vadd.f32 %v2797, 1.0
        %v2863 = vadd.f32 %v2799, 1.0
        %v2864 = vrcp.pop %v2800
        %v2865 = vmul.f32 1.0, %v2864
        %v2866 = vrcp.pop %v2801
        %v2867 = vmul.f32 1.0, %v2866
        %v2868 = vrcp.pop %v2802
        %v2869 = vmul.f32 1.0, %v2868
        %v2870 = vrcp.pop %v2803
        %v2871 = vmul.f32 1.0, %v2870
        %v2872 = vrcp.pop %v2804
        %v2873 = vmul.f32 1.0, %v2872
        %v2874 = vrcp.pop %v2805
        %v2875 = vmul.f32 1.0, %v2874
        %v2876 = vrcp.pop %v2806
        %v2877 = vmul.f32 1.0, %v2876
        %v2878 = vrcp.pop %v2807
        %v2879 = vmul.f32 1.0, %v2878
        %v2880 = vrcp.pop %v2808
        %v2881 = vmul.f32 1.0, %v2880
        %v2882 = vrcp.pop %v2809
        %v2883 = vmul.f32 1.0, %v2882
        %v2884 = vrcp.pop %v2810
        %v2885 = vmul.f32 1.0, %v2884
        %v2886 = vrcp.pop %v2811
        %v2887 = vmul.f32 1.0, %v2886
        %v2888 = vrcp.pop %v2812
        %v2889 = vmul.f32 1.0, %v2888
        %v2890 = vrcp.pop %v2813
        %v2891 = vmul.f32 1.0, %v2890
        %v2892 = vrcp.pop %v2814
        %v2893 = vmul.f32 1.0, %v2892
        %v2894 = vrcp.pop %v2815
        %v2895 = vmul.f32 1.0, %v2894
        %v2896 = vrcp.pop %v2816
        %v2897 = vmul.f32 1.0, %v2896
        %v2898 = vrcp.pop %v2817
        %v2899 = vmul.f32 1.0, %v2898
        %v2900 = vrcp.pop %v2818
        %v2901 = vmul.f32 1.0, %v2900
        %v2902 = vrcp.pop %v2819
        %v2903 = vmul.f32 1.0, %v2902
        %v2904 = vrcp.pop %v2820
        %v2905 = vmul.f32 1.0, %v2904
        %v2906 = vrcp.pop %v2821
        %v2907 = vmul.f32 1.0, %v2906
        %v2908 = vrcp.pop %v2822
        %v2909 = vmul.f32 1.0, %v2908
        %v2910 = vrcp.pop %v2823
        %v2911 = vmul.f32 1.0, %v2910
        %v2912 = vrcp.pop %v2824
        %v2913 = vmul.f32 1.0, %v2912
        %v2914 = vrcp.pop %v2825
        %v2915 = vmul.f32 1.0, %v2914
        %v2916 = vrcp.pop %v2826
        %v2917 = vmul.f32 1.0, %v2916
        %v2918 = vrcp.pop %v2827
        %v2919 = vmul.f32 1.0, %v2918
        %v2920 = vrcp.pop %v2828
        %v2921 = vmul.f32 1.0, %v2920
        %v2922 = vrcp.pop %v2829
        %v2923 = vmul.f32 1.0, %v2922
        %v2924 = vrcp.pop %v2830
        %v2925 = vmul.f32 1.0, %v2924
        %v2926 = vrcp.pop %v2831
        %v2927 = vmul.f32 1.0, %v2926
        %v2928 = vrcp.pop %v2832
        %v2929 = vmul.f32 1.0, %v2928
        %v2930 = vrcp.pop %v2833
        %v2931 = vmul.f32 1.0, %v2930
        %v2932 = vrcp.pop %v2834
        %v2933 = vmul.f32 1.0, %v2932
        %v2934 = vrcp.pop %v2835
        %v2935 = vmul.f32 1.0, %v2934
        %v2936 = vrcp.pop %v2836
        %v2937 = vmul.f32 1.0, %v2936
        %v2938 = vrcp.pop %v2837
        %v2939 = vmul.f32 1.0, %v2938
        %v2940 = vrcp.pop %v2838
        %v2941 = vmul.f32 1.0, %v2940
        %v2942 = vrcp.pop %v2839
        %v2943 = vmul.f32 1.0, %v2942
        %v2944 = vrcp.pop %v2840
        %v2945 = vmul.f32 1.0, %v2944
        %v2946 = vrcp.pop %v2841
        %v2947 = vmul.f32 1.0, %v2946
        %v2948 = vrcp.pop %v2842
        %v2949 = vmul.f32 1.0, %v2948
        %v2950 = vrcp.pop %v2843
        %v2951 = vmul.f32 1.0, %v2950
        %v2952 = vrcp.pop %v2844
        %v2953 = vmul.f32 1.0, %v2952
        %v2954 = vrcp.pop %v2845
        %v2955 = vmul.f32 1.0, %v2954
        %v2956 = vrcp.pop %v2846
        %v2957 = vmul.f32 1.0, %v2956
        %v2958 = vrcp.pop %v2847
        %v2959 = vmul.f32 1.0, %v2958
        %v2960 = vrcp.pop %v2848
        %v2961 = vmul.f32 1.0, %v2960
        %v2962 = vrcp.pop %v2849
        %v2963 = vmul.f32 1.0, %v2962
        %v2964 = vrcp.pop %v2850
        %v2965 = vmul.f32 1.0, %v2964
        %v2966 = vrcp.pop %v2851
        %v2967 = vmul.f32 1.0, %v2966
        %v2968 = vrcp.pop %v2852
        %v2969 = vmul.f32 1.0, %v2968
        %v2970 = vrcp.pop %v2853
        %v2971 = vmul.f32 1.0, %v2970
        %v2972 = vrcp.pop %v2854
        %v2973 = vmul.f32 1.0, %v2972
        %v2974 = vrcp.pop %v2855
        %v2975 = vmul.f32 1.0, %v2974
        %v2976 = vrcp.pop %v2856
        %v2977 = vmul.f32 1.0, %v2976
        %v2978 = vrcp.pop %v2857
        %v2979 = vmul.f32 1.0, %v2978
        %v2980 = vrcp.pop %v2858
        %v2981 = vmul.f32 1.0, %v2980
        %v2982 = vrcp.pop %v2859
        %v2983 = vmul.f32 1.0, %v2982
        %v2984 = vrcp.pop %v2860
        %v2985 = vmul.f32 1.0, %v2984
        %v2986 = vrcp.pop %v2861
        %v2987 = vmul.f32 1.0, %v2986
        %v2988 = vrcp.pop %v2862
        %v2989 = vmul.f32 1.0, %v2988
        %v2990 = vrcp.pop %v2863
        %v2991 = vmul.f32 1.0, %v2990
        %v2992 = vld [vmem:[%s3] sm:$0xf]
        %v2993 = vld [vmem:[%s3 + $0x4] sm:$0xf]
        %v2994 = vld [vmem:[%s3 + $0x8] sm:$0xf]
        %v2995 = vld [vmem:[%s3 + $0xc] sm:$0xf]
        %v2996 = vld [vmem:[%s3 + $0x10] sm:$0xf]
        %v2997 = vld [vmem:[%s3 + $0x14] sm:$0xf]
        %v2998 = vld [vmem:[%s3 + $0x18] sm:$0xf]
        %v2999 = vld [vmem:[%s3 + $0x1c] sm:$0xf]
        %v3000 = vld [vmem:[%s3 + $0x20] sm:$0xf]
        %v3001 = vld [vmem:[%s3 + $0x24] sm:$0xf]
        %v3002 = vld [vmem:[%s3 + $0x28] sm:$0xf]
        %v3003 = vld [vmem:[%s3 + $0x2c] sm:$0xf]
        %v3004 = vld [vmem:[%s3 + $0x30] sm:$0xf]
        %v3005 = vld [vmem:[%s3 + $0x34] sm:$0xf]
        %v3006 = vld [vmem:[%s3 + $0x38] sm:$0xf]
        %v3007 = vld [vmem:[%s3 + $0x3c] sm:$0xf]
        %v3008 = vld [vmem:[%s4] sm:$0xff]
        %v3009 = vld [vmem:[%s4 + $0x8] sm:$0xff]
        %v3010 = vld [vmem:[%s4 + $0x10] sm:$0xff]
        %v3011 = vld [vmem:[%s4 + $0x18] sm:$0xff]
        %v3012 = vld [vmem:[%s4 + $0x20] sm:$0xff]
        %v3013 = vld [vmem:[%s4 + $0x28] sm:$0xff]
        %v3014 = vld [vmem:[%s4 + $0x30] sm:$0xff]
        %v3015 = vld [vmem:[%s4 + $0x38] sm:$0xff]
        %v3016 = vld [vmem:[%s4 + $0x40] sm:$0xff]
        %v3017 = vld [vmem:[%s4 + $0x48] sm:$0xff]
        %v3018 = vld [vmem:[%s4 + $0x50] sm:$0xff]
        %v3019 = vld [vmem:[%s4 + $0x58] sm:$0xff]
        %v3020 = vld [vmem:[%s4 + $0x60] sm:$0xff]
        %v3021 = vld [vmem:[%s4 + $0x68] sm:$0xff]
        %v3022 = vld [vmem:[%s4 + $0x70] sm:$0xff]
        %v3023 = vld [vmem:[%s4 + $0x78] sm:$0xff]
        %3025 = vset.pattern.permute.xlu0 0
        %3026 = vperm.xlu0 %3025, %v3008
        %v3027 = vpop.permute.xlu0 %3026
        %3030 = vset.pattern.permute.xlu0 0
        %3031 = vperm.xlu0 %3030, %v3009
        %v3032 = vpop.permute.xlu0 %3031
        %3035 = vset.pattern.permute.xlu0 0
        %3036 = vperm.xlu0 %3035, %v3010
        %v3037 = vpop.permute.xlu0 %3036
        %3040 = vset.pattern.permute.xlu0 0
        %3041 = vperm.xlu0 %3040, %v3011
        %v3042 = vpop.permute.xlu0 %3041
        %3045 = vset.pattern.permute.xlu0 0
        %3046 = vperm.xlu0 %3045, %v3012
        %v3047 = vpop.permute.xlu0 %3046
        %3050 = vset.pattern.permute.xlu0 0
        %3051 = vperm.xlu0 %3050, %v3013
        %v3052 = vpop.permute.xlu0 %3051
        %3055 = vset.pattern.permute.xlu0 0
        %3056 = vperm.xlu0 %3055, %v3014
        %v3057 = vpop.permute.xlu0 %3056
        %3060 = vset.pattern.permute.xlu0 0
        %3061 = vperm.xlu0 %3060, %v3015
        %v3062 = vpop.permute.xlu0 %3061
        %3065 = vset.pattern.permute.xlu0 0
        %3066 = vperm.xlu0 %3065, %v3016
        %v3067 = vpop.permute.xlu0 %3066
        %3070 = vset.pattern.permute.xlu0 0
        %3071 = vperm.xlu0 %3070, %v3017
        %v3072 = vpop.permute.xlu0 %3071
        %3075 = vset.pattern.permute.xlu0 0
        %3076 = vperm.xlu0 %3075, %v3018
        %v3077 = vpop.permute.xlu0 %3076
        %3080 = vset.pattern.permute.xlu0 0
        %3081 = vperm.xlu0 %3080, %v3019
        %v3082 = vpop.permute.xlu0 %3081
        %3085 = vset.pattern.permute.xlu0 0
        %3086 = vperm.xlu0 %3085, %v3020
        %v3087 = vpop.permute.xlu0 %3086
        %3090 = vset.pattern.permute.xlu0 0
        %3091 = vperm.xlu0 %3090, %v3021
        %v3092 = vpop.permute.xlu0 %3091
        %3095 = vset.pattern.permute.xlu0 0
        %3096 = vperm.xlu0 %3095, %v3022
        %v3097 = vpop.permute.xlu0 %3096
        %3100 = vset.pattern.permute.xlu0 0
        %3101 = vperm.xlu0 %3100, %v3023
        %v3102 = vpop.permute.xlu0 %3101
        %v3120 = vunpack.c.l.b16 %v2992
        %v3121 = vunpack.c.l.b16 %v2993
        %v3122 = vunpack.c.l.b16 %v2994
        %v3123 = vunpack.c.l.b16 %v2995
        %v3124 = vunpack.c.l.b16 %v2996
        %v3125 = vunpack.c.l.b16 %v2997
        %v3126 = vunpack.c.l.b16 %v2998
        %v3127 = vunpack.c.l.b16 %v2999
        %v3128 = vunpack.c.l.b16 %v3000
        %v3129 = vunpack.c.l.b16 %v3001
        %v3130 = vunpack.c.l.b16 %v3002
        %v3131 = vunpack.c.l.b16 %v3003
        %v3132 = vunpack.c.l.b16 %v3004
        %v3133 = vunpack.c.l.b16 %v3005
        %v3134 = vunpack.c.l.b16 %v3006
        %v3135 = vunpack.c.l.b16 %v3007
        %v3136 = vpack.c.b16 %v3121, %v3120
        %v3137 = vpack.c.b16 %v3123, %v3122
        %v3138 = vpack.c.b16 %v3125, %v3124
        %v3139 = vpack.c.b16 %v3127, %v3126
        %v3140 = vpack.c.b16 %v3129, %v3128
        %v3141 = vpack.c.b16 %v3131, %v3130
        %v3142 = vpack.c.b16 %v3133, %v3132
        %v3143 = vpack.c.b16 %v3135, %v3134
        %v3145 = vsel %vm1906, %v3136, 0
        %v3148 = vsel %vm1906, %v3137, 0
        %v3151 = vsel %vm1906, %v3138, 0
        %v3154 = vsel %vm1906, %v3139, 0
        %v3157 = vsel %vm1906, %v3140, 0
        %v3160 = vsel %vm1906, %v3141, 0
        %v3163 = vsel %vm1906, %v3142, 0
        %v3166 = vsel %vm1906, %v3143, 0
        %v3169 = vsel %vm1906, %v294, 0
        %v3172 = vsel %vm1906, %v295, 0
        %v3175 = vsel %vm1906, %v296, 0
        %v3178 = vsel %vm1906, %v297, 0
        %v3181 = vsel %vm1906, %v298, 0
        %v3184 = vsel %vm1906, %v299, 0
        %v3187 = vsel %vm1906, %v300, 0
        %v3190 = vsel %vm1906, %v301, 0
        %3192 = vmatprep.subr.bf16.mxu0 0
        %3193 = vmatpush1.bf16.xpose.msra.mxu0 %v3169
        %3194 = vmatprep.subr.bf16.mxu0 0
        %3195 = vmatpush1.bf16.xpose.msra.mxu0 %v3172
        %3196 = vmatprep.subr.bf16.mxu0 0
        %3197 = vmatpush1.bf16.xpose.msra.mxu0 %v3175
        %3198 = vmatprep.subr.bf16.mxu0 0
        %3199 = vmatpush1.bf16.xpose.msra.mxu0 %v3178
        %3200 = vmatprep.subr.bf16.mxu0 0
        %3201 = vmatpush1.bf16.xpose.msra.mxu0 %v3181
        %3202 = vmatprep.subr.bf16.mxu0 0
        %3203 = vmatpush1.bf16.xpose.msra.mxu0 %v3184
        %3204 = vmatprep.subr.bf16.mxu0 0
        %3205 = vmatpush1.bf16.xpose.msra.mxu0 %v3187
        %3206 = vmatprep.subr.bf16.mxu0 0
        %3207 = vmatpush1.bf16.xpose.msra.mxu0 %v3190
        %3208 = vmatprep.subr.bf16.mxu0 0
        %3209 = vmatpush1.bf16.xpose.msra.mxu0 0
        %3210 = vmatprep.subr.bf16.mxu0 0
        %3211 = vmatpush1.bf16.xpose.msra.mxu0 0
        %3212 = vmatprep.subr.bf16.mxu0 0
        %3213 = vmatpush1.bf16.xpose.msra.mxu0 0
        %3214 = vmatprep.subr.bf16.mxu0 0
        %3215 = vmatpush1.bf16.xpose.msra.mxu0 0
        %3216 = vmatprep.subr.bf16.mxu0 0
        %3217 = vmatpush1.bf16.xpose.msra.mxu0 0
        %3218 = vmatprep.subr.bf16.mxu0 0
        %3219 = vmatpush1.bf16.xpose.msra.mxu0 0
        %3220 = vmatprep.subr.bf16.mxu0 0
        %3221 = vmatpush1.bf16.xpose.msra.mxu0 0
        %3222 = vmatprep.subr.bf16.mxu0 0
        %3223 = vmatpush1.bf16.xpose.msra.mxu0 0
        %3224 = vmatprep.mubr.bf16.mxu0 0
        %3225 = vmatmul.mubr.bf16.gmra.mrb[0].mxu0 %v3145
        %v3226 = vpop.f32.mrb[0].mxu0
        %v3227 = vadd.f32 %v3027, %v3226
        %v3228 = vpop.f32.mrb[0].mxu0
        %v3229 = vpop.f32.mrb[0].mxu0
        %v3230 = vadd.f32 %v3032, %v3229
        %v3231 = vpop.f32.mrb[0].mxu0
        %3232 = vmatprep.mubr.bf16.mxu0 0
        %3233 = vmatmul.mubr.bf16.gmra.mrb[0].mxu0 %v3148
        %v3234 = vpop.f32.mrb[0].mxu0
        %v3235 = vadd.f32 %v3037, %v3234
        %v3236 = vpop.f32.mrb[0].mxu0
        %v3237 = vpop.f32.mrb[0].mxu0
        %v3238 = vadd.f32 %v3042, %v3237
        %v3239 = vpop.f32.mrb[0].mxu0
        %3240 = vmatprep.mubr.bf16.mxu0 0
        %3241 = vmatmul.mubr.bf16.gmra.mrb[0].mxu0 %v3151
        %v3242 = vpop.f32.mrb[0].mxu0
        %v3243 = vadd.f32 %v3047, %v3242
        %v3244 = vpop.f32.mrb[0].mxu0
        %v3245 = vpop.f32.mrb[0].mxu0
        %v3246 = vadd.f32 %v3052, %v3245
        %v3247 = vpop.f32.mrb[0].mxu0
        %3248 = vmatprep.mubr.bf16.mxu0 0
        %3249 = vmatmul.mubr.bf16.gmra.mrb[0].mxu0 %v3154
        %v3250 = vpop.f32.mrb[0].mxu0
        %v3251 = vadd.f32 %v3057, %v3250
        %v3252 = vpop.f32.mrb[0].mxu0
        %v3253 = vpop.f32.mrb[0].mxu0
        %v3254 = vadd.f32 %v3062, %v3253
        %v3255 = vpop.f32.mrb[0].mxu0
        %3256 = vmatprep.mubr.bf16.mxu0 0
        %3257 = vmatmul.mubr.bf16.gmra.mrb[0].mxu0 %v3157
        %v3258 = vpop.f32.mrb[0].mxu0
        %v3259 = vadd.f32 %v3067, %v3258
        %v3260 = vpop.f32.mrb[0].mxu0
        %v3261 = vpop.f32.mrb[0].mxu0
        %v3262 = vadd.f32 %v3072, %v3261
        %v3263 = vpop.f32.mrb[0].mxu0
        %3264 = vmatprep.mubr.bf16.mxu0 0
        %3265 = vmatmul.mubr.bf16.gmra.mrb[0].mxu0 %v3160
        %v3266 = vpop.f32.mrb[0].mxu0
        %v3267 = vadd.f32 %v3077, %v3266
        %v3268 = vpop.f32.mrb[0].mxu0
        %v3269 = vpop.f32.mrb[0].mxu0
        %v3270 = vadd.f32 %v3082, %v3269
        %v3271 = vpop.f32.mrb[0].mxu0
        %3272 = vmatprep.mubr.bf16.mxu0 0
        %3273 = vmatmul.mubr.bf16.gmra.mrb[0].mxu0 %v3163
        %v3274 = vpop.f32.mrb[0].mxu0
        %v3275 = vadd.f32 %v3087, %v3274
        %v3276 = vpop.f32.mrb[0].mxu0
        %v3277 = vpop.f32.mrb[0].mxu0
        %v3278 = vadd.f32 %v3092, %v3277
        %v3279 = vpop.f32.mrb[0].mxu0
        %3280 = vmatprep.mubr.bf16.mxu0 0
        %3281 = vmatmul.mubr.bf16.gmra.mrb[0].mxu0 %v3166
        %v3282 = vpop.f32.mrb[0].mxu0
        %v3283 = vadd.f32 %v3097, %v3282
        %v3284 = vpop.f32.mrb[0].mxu0
        %v3285 = vpop.f32.mrb[0].mxu0
        %v3286 = vadd.f32 %v3102, %v3285
        %v3287 = vpop.f32.mrb[0].mxu0
        %3288 = vdwg.mxu0
        %v3289 = vsub.f32 1.0, %v2865
        %v3290 = vsub.f32 1.0, %v2867
        %v3291 = vsub.f32 1.0, %v2869
        %v3292 = vsub.f32 1.0, %v2871
        %v3293 = vsub.f32 1.0, %v2873
        %v3294 = vsub.f32 1.0, %v2875
        %v3295 = vsub.f32 1.0, %v2877
        %v3296 = vsub.f32 1.0, %v2879
        %v3297 = vsub.f32 1.0, %v2881
        %v3298 = vsub.f32 1.0, %v2883
        %v3299 = vsub.f32 1.0, %v2885
        %v3300 = vsub.f32 1.0, %v2887
        %v3301 = vsub.f32 1.0, %v2889
        %v3302 = vsub.f32 1.0, %v2891
        %v3303 = vsub.f32 1.0, %v2893
        %v3304 = vsub.f32 1.0, %v2895
        %v3305 = vmul.f32 %v3227, %v3289
        %v3306 = vmul.f32 %v3230, %v3290
        %v3307 = vmul.f32 %v3235, %v3291
        %v3308 = vmul.f32 %v3238, %v3292
        %v3309 = vmul.f32 %v3243, %v3293
        %v3310 = vmul.f32 %v3246, %v3294
        %v3311 = vmul.f32 %v3251, %v3295
        %v3312 = vmul.f32 %v3254, %v3296
        %v3313 = vmul.f32 %v3259, %v3297
        %v3314 = vmul.f32 %v3262, %v3298
        %v3315 = vmul.f32 %v3267, %v3299
        %v3316 = vmul.f32 %v3270, %v3300
        %v3317 = vmul.f32 %v3275, %v3301
        %v3318 = vmul.f32 %v3278, %v3302
        %v3319 = vmul.f32 %v3283, %v3303
        %v3320 = vmul.f32 %v3286, %v3304
        %v3321 = vmul.f32 %v2290, %v2865
        %v3322 = vmul.f32 %v2294, %v2867
        %v3323 = vmul.f32 %v2300, %v2869
        %v3324 = vmul.f32 %v2304, %v2871
        %v3325 = vmul.f32 %v2310, %v2873
        %v3326 = vmul.f32 %v2314, %v2875
        %v3327 = vmul.f32 %v2320, %v2877
        %v3328 = vmul.f32 %v2324, %v2879
        %v3329 = vmul.f32 %v2330, %v2881
        %v3330 = vmul.f32 %v2334, %v2883
        %v3331 = vmul.f32 %v2340, %v2885
        %v3332 = vmul.f32 %v2344, %v2887
        %v3333 = vmul.f32 %v2350, %v2889
        %v3334 = vmul.f32 %v2354, %v2891
        %v3335 = vmul.f32 %v2360, %v2893
        %v3336 = vmul.f32 %v2364, %v2895
        %v3337 = vadd.f32 %v3305, %v3321
        %v3338 = vadd.f32 %v3306, %v3322
        %v3339 = vadd.f32 %v3307, %v3323
        %v3340 = vadd.f32 %v3308, %v3324
        %v3341 = vadd.f32 %v3309, %v3325
        %v3342 = vadd.f32 %v3310, %v3326
        %v3343 = vadd.f32 %v3311, %v3327
        %v3344 = vadd.f32 %v3312, %v3328
        %v3345 = vadd.f32 %v3313, %v3329
        %v3346 = vadd.f32 %v3314, %v3330
        %v3347 = vadd.f32 %v3315, %v3331
        %v3348 = vadd.f32 %v3316, %v3332
        %v3349 = vadd.f32 %v3317, %v3333
        %v3350 = vadd.f32 %v3318, %v3334
        %v3351 = vadd.f32 %v3319, %v3335
        %v3352 = vadd.f32 %v3320, %v3336
        %v3353 = vpack.c.bf16 %v3338, %v3337
        %v3354 = vpack.c.bf16 %v3340, %v3339
        %v3355 = vpack.c.bf16 %v3342, %v3341
        %v3356 = vpack.c.bf16 %v3344, %v3343
        %v3357 = vpack.c.bf16 %v3346, %v3345
        %v3358 = vpack.c.bf16 %v3348, %v3347
        %v3359 = vpack.c.bf16 %v3350, %v3349
        %v3360 = vpack.c.bf16 %v3352, %v3351
        %v3369 = vunpack.c.l.b16 %v3353
        %v3370 = vunpack.c.h.b16 %v3353
        %v3371 = vunpack.c.l.b16 %v3354
        %v3372 = vunpack.c.h.b16 %v3354
        %v3373 = vunpack.c.l.b16 %v3355
        %v3374 = vunpack.c.h.b16 %v3355
        %v3375 = vunpack.c.l.b16 %v3356
        %v3376 = vunpack.c.h.b16 %v3356
        %v3377 = vunpack.c.l.b16 %v3357
        %v3378 = vunpack.c.h.b16 %v3357
        %v3379 = vunpack.c.l.b16 %v3358
        %v3380 = vunpack.c.h.b16 %v3358
        %v3381 = vunpack.c.l.b16 %v3359
        %v3382 = vunpack.c.h.b16 %v3359
        %v3383 = vunpack.c.l.b16 %v3360
        %v3384 = vunpack.c.h.b16 %v3360
        %v3385 = vpack.c.b16 %v3369, %v3369
        %v3386 = vpack.c.b16 %v3370, %v3370
        %v3387 = vpack.c.b16 %v3371, %v3371
        %v3388 = vpack.c.b16 %v3372, %v3372
        %v3389 = vpack.c.b16 %v3373, %v3373
        %v3390 = vpack.c.b16 %v3374, %v3374
        %v3391 = vpack.c.b16 %v3375, %v3375
        %v3392 = vpack.c.b16 %v3376, %v3376
        %v3393 = vpack.c.b16 %v3377, %v3377
        %v3394 = vpack.c.b16 %v3378, %v3378
        %v3395 = vpack.c.b16 %v3379, %v3379
        %v3396 = vpack.c.b16 %v3380, %v3380
        %v3397 = vpack.c.b16 %v3381, %v3381
        %v3398 = vpack.c.b16 %v3382, %v3382
        %v3399 = vpack.c.b16 %v3383, %v3383
        %v3400 = vpack.c.b16 %v3384, %v3384
        %3417 = vst [vmem:[%s220] sm:$0xf] %v3385
        %3418 = vst [vmem:[%s220 + $0x4] sm:$0xf] %v3386
        %3419 = vst [vmem:[%s220 + $0x8] sm:$0xf] %v3387
        %3420 = vst [vmem:[%s220 + $0xc] sm:$0xf] %v3388
        %3421 = vst [vmem:[%s220 + $0x10] sm:$0xf] %v3389
        %3422 = vst [vmem:[%s220 + $0x14] sm:$0xf] %v3390
        %3423 = vst [vmem:[%s220 + $0x18] sm:$0xf] %v3391
        %3424 = vst [vmem:[%s220 + $0x1c] sm:$0xf] %v3392
        %3425 = vst [vmem:[%s220 + $0x20] sm:$0xf] %v3393
        %3426 = vst [vmem:[%s220 + $0x24] sm:$0xf] %v3394
        %3427 = vst [vmem:[%s220 + $0x28] sm:$0xf] %v3395
        %3428 = vst [vmem:[%s220 + $0x2c] sm:$0xf] %v3396
        %3429 = vst [vmem:[%s220 + $0x30] sm:$0xf] %v3397
        %3430 = vst [vmem:[%s220 + $0x34] sm:$0xf] %v3398
        %3431 = vst [vmem:[%s220 + $0x38] sm:$0xf] %v3399
        %3432 = vst [vmem:[%s220 + $0x3c] sm:$0xf] %v3400
        %v3433 = vld [vmem:[%s3] sm:$0xf]
        %v3434 = vld [vmem:[%s3 + $0x4] sm:$0xf]
        %v3435 = vld [vmem:[%s3 + $0x8] sm:$0xf]
        %v3436 = vld [vmem:[%s3 + $0xc] sm:$0xf]
        %v3437 = vld [vmem:[%s3 + $0x10] sm:$0xf]
        %v3438 = vld [vmem:[%s3 + $0x14] sm:$0xf]
        %v3439 = vld [vmem:[%s3 + $0x18] sm:$0xf]
        %v3440 = vld [vmem:[%s3 + $0x1c] sm:$0xf]
        %v3441 = vld [vmem:[%s3 + $0x20] sm:$0xf]
        %v3442 = vld [vmem:[%s3 + $0x24] sm:$0xf]
        %v3443 = vld [vmem:[%s3 + $0x28] sm:$0xf]
        %v3444 = vld [vmem:[%s3 + $0x2c] sm:$0xf]
        %v3445 = vld [vmem:[%s3 + $0x30] sm:$0xf]
        %v3446 = vld [vmem:[%s3 + $0x34] sm:$0xf]
        %v3447 = vld [vmem:[%s3 + $0x38] sm:$0xf]
        %v3448 = vld [vmem:[%s3 + $0x3c] sm:$0xf]
        %v3449 = vld [vmem:[%s4] sm:$0xff]
        %v3450 = vld [vmem:[%s4 + $0x8] sm:$0xff]
        %v3451 = vld [vmem:[%s4 + $0x10] sm:$0xff]
        %v3452 = vld [vmem:[%s4 + $0x18] sm:$0xff]
        %v3453 = vld [vmem:[%s4 + $0x20] sm:$0xff]
        %v3454 = vld [vmem:[%s4 + $0x28] sm:$0xff]
        %v3455 = vld [vmem:[%s4 + $0x30] sm:$0xff]
        %v3456 = vld [vmem:[%s4 + $0x38] sm:$0xff]
        %v3457 = vld [vmem:[%s4 + $0x40] sm:$0xff]
        %v3458 = vld [vmem:[%s4 + $0x48] sm:$0xff]
        %v3459 = vld [vmem:[%s4 + $0x50] sm:$0xff]
        %v3460 = vld [vmem:[%s4 + $0x58] sm:$0xff]
        %v3461 = vld [vmem:[%s4 + $0x60] sm:$0xff]
        %v3462 = vld [vmem:[%s4 + $0x68] sm:$0xff]
        %v3463 = vld [vmem:[%s4 + $0x70] sm:$0xff]
        %v3464 = vld [vmem:[%s4 + $0x78] sm:$0xff]
        %3466 = vset.pattern.permute.xlu0 0
        %3467 = vperm.xlu0 %3466, %v3449
        %v3468 = vpop.permute.xlu0 %3467
        %3471 = vset.pattern.permute.xlu0 0
        %3472 = vperm.xlu0 %3471, %v3450
        %v3473 = vpop.permute.xlu0 %3472
        %3476 = vset.pattern.permute.xlu0 0
        %3477 = vperm.xlu0 %3476, %v3451
        %v3478 = vpop.permute.xlu0 %3477
        %3481 = vset.pattern.permute.xlu0 0
        %3482 = vperm.xlu0 %3481, %v3452
        %v3483 = vpop.permute.xlu0 %3482
        %3486 = vset.pattern.permute.xlu0 0
        %3487 = vperm.xlu0 %3486, %v3453
        %v3488 = vpop.permute.xlu0 %3487
        %3491 = vset.pattern.permute.xlu0 0
        %3492 = vperm.xlu0 %3491, %v3454
        %v3493 = vpop.permute.xlu0 %3492
        %3496 = vset.pattern.permute.xlu0 0
        %3497 = vperm.xlu0 %3496, %v3455
        %v3498 = vpop.permute.xlu0 %3497
        %3501 = vset.pattern.permute.xlu0 0
        %3502 = vperm.xlu0 %3501, %v3456
        %v3503 = vpop.permute.xlu0 %3502
        %3506 = vset.pattern.permute.xlu0 0
        %3507 = vperm.xlu0 %3506, %v3457
        %v3508 = vpop.permute.xlu0 %3507
        %3511 = vset.pattern.permute.xlu0 0
        %3512 = vperm.xlu0 %3511, %v3458
        %v3513 = vpop.permute.xlu0 %3512
        %3516 = vset.pattern.permute.xlu0 0
        %3517 = vperm.xlu0 %3516, %v3459
        %v3518 = vpop.permute.xlu0 %3517
        %3521 = vset.pattern.permute.xlu0 0
        %3522 = vperm.xlu0 %3521, %v3460
        %v3523 = vpop.permute.xlu0 %3522
        %3526 = vset.pattern.permute.xlu0 0
        %3527 = vperm.xlu0 %3526, %v3461
        %v3528 = vpop.permute.xlu0 %3527
        %3531 = vset.pattern.permute.xlu0 0
        %3532 = vperm.xlu0 %3531, %v3462
        %v3533 = vpop.permute.xlu0 %3532
        %3536 = vset.pattern.permute.xlu0 0
        %3537 = vperm.xlu0 %3536, %v3463
        %v3538 = vpop.permute.xlu0 %3537
        %3541 = vset.pattern.permute.xlu0 0
        %3542 = vperm.xlu0 %3541, %v3464
        %v3543 = vpop.permute.xlu0 %3542
        %v3561 = vunpack.c.l.b16 %v3433
        %v3562 = vunpack.c.l.b16 %v3434
        %v3563 = vunpack.c.l.b16 %v3435
        %v3564 = vunpack.c.l.b16 %v3436
        %v3565 = vunpack.c.l.b16 %v3437
        %v3566 = vunpack.c.l.b16 %v3438
        %v3567 = vunpack.c.l.b16 %v3439
        %v3568 = vunpack.c.l.b16 %v3440
        %v3569 = vunpack.c.l.b16 %v3441
        %v3570 = vunpack.c.l.b16 %v3442
        %v3571 = vunpack.c.l.b16 %v3443
        %v3572 = vunpack.c.l.b16 %v3444
        %v3573 = vunpack.c.l.b16 %v3445
        %v3574 = vunpack.c.l.b16 %v3446
        %v3575 = vunpack.c.l.b16 %v3447
        %v3576 = vunpack.c.l.b16 %v3448
        %v3577 = vpack.c.b16 %v3562, %v3561
        %v3578 = vpack.c.b16 %v3564, %v3563
        %v3579 = vpack.c.b16 %v3566, %v3565
        %v3580 = vpack.c.b16 %v3568, %v3567
        %v3581 = vpack.c.b16 %v3570, %v3569
        %v3582 = vpack.c.b16 %v3572, %v3571
        %v3583 = vpack.c.b16 %v3574, %v3573
        %v3584 = vpack.c.b16 %v3576, %v3575
        %v3586 = vsel %vm1906, %v3577, 0
        %v3589 = vsel %vm1906, %v3578, 0
        %v3592 = vsel %vm1906, %v3579, 0
        %v3595 = vsel %vm1906, %v3580, 0
        %v3598 = vsel %vm1906, %v3581, 0
        %v3601 = vsel %vm1906, %v3582, 0
        %v3604 = vsel %vm1906, %v3583, 0
        %v3607 = vsel %vm1906, %v3584, 0
        %v3610 = vsel %vm1906, %v302, 0
        %v3613 = vsel %vm1906, %v303, 0
        %v3616 = vsel %vm1906, %v304, 0
        %v3619 = vsel %vm1906, %v305, 0
        %v3622 = vsel %vm1906, %v306, 0
        %v3625 = vsel %vm1906, %v307, 0
        %v3628 = vsel %vm1906, %v308, 0
        %v3631 = vsel %vm1906, %v309, 0
        %3633 = vmatprep.subr.bf16.mxu0 0
        %3634 = vmatpush1.bf16.xpose.msra.mxu0 %v3610
        %3635 = vmatprep.subr.bf16.mxu0 0
        %3636 = vmatpush1.bf16.xpose.msra.mxu0 %v3613
        %3637 = vmatprep.subr.bf16.mxu0 0
        %3638 = vmatpush1.bf16.xpose.msra.mxu0 %v3616
        %3639 = vmatprep.subr.bf16.mxu0 0
        %3640 = vmatpush1.bf16.xpose.msra.mxu0 %v3619
        %3641 = vmatprep.subr.bf16.mxu0 0
        %3642 = vmatpush1.bf16.xpose.msra.mxu0 %v3622
        %3643 = vmatprep.subr.bf16.mxu0 0
        %3644 = vmatpush1.bf16.xpose.msra.mxu0 %v3625
        %3645 = vmatprep.subr.bf16.mxu0 0
        %3646 = vmatpush1.bf16.xpose.msra.mxu0 %v3628
        %3647 = vmatprep.subr.bf16.mxu0 0
        %3648 = vmatpush1.bf16.xpose.msra.mxu0 %v3631
        %3649 = vmatprep.subr.bf16.mxu0 0
        %3650 = vmatpush1.bf16.xpose.msra.mxu0 0
        %3651 = vmatprep.subr.bf16.mxu0 0
        %3652 = vmatpush1.bf16.xpose.msra.mxu0 0
        %3653 = vmatprep.subr.bf16.mxu0 0
        %3654 = vmatpush1.bf16.xpose.msra.mxu0 0
        %3655 = vmatprep.subr.bf16.mxu0 0
        %3656 = vmatpush1.bf16.xpose.msra.mxu0 0
        %3657 = vmatprep.subr.bf16.mxu0 0
        %3658 = vmatpush1.bf16.xpose.msra.mxu0 0
        %3659 = vmatprep.subr.bf16.mxu0 0
        %3660 = vmatpush1.bf16.xpose.msra.mxu0 0
        %3661 = vmatprep.subr.bf16.mxu0 0
        %3662 = vmatpush1.bf16.xpose.msra.mxu0 0
        %3663 = vmatprep.subr.bf16.mxu0 0
        %3664 = vmatpush1.bf16.xpose.msra.mxu0 0
        %3665 = vmatprep.mubr.bf16.mxu0 0
        %3666 = vmatmul.mubr.bf16.gmra.mrb[0].mxu0 %v3586
        %v3667 = vpop.f32.mrb[0].mxu0
        %v3668 = vadd.f32 %v3468, %v3667
        %v3669 = vpop.f32.mrb[0].mxu0
        %v3670 = vpop.f32.mrb[0].mxu0
        %v3671 = vadd.f32 %v3473, %v3670
        %v3672 = vpop.f32.mrb[0].mxu0
        %3673 = vmatprep.mubr.bf16.mxu0 0
        %3674 = vmatmul.mubr.bf16.gmra.mrb[0].mxu0 %v3589
        %v3675 = vpop.f32.mrb[0].mxu0
        %v3676 = vadd.f32 %v3478, %v3675
        %v3677 = vpop.f32.mrb[0].mxu0
        %v3678 = vpop.f32.mrb[0].mxu0
        %v3679 = vadd.f32 %v3483, %v3678
        %v3680 = vpop.f32.mrb[0].mxu0
        %3681 = vmatprep.mubr.bf16.mxu0 0
        %3682 = vmatmul.mubr.bf16.gmra.mrb[0].mxu0 %v3592
        %v3683 = vpop.f32.mrb[0].mxu0
        %v3684 = vadd.f32 %v3488, %v3683
        %v3685 = vpop.f32.mrb[0].mxu0
        %v3686 = vpop.f32.mrb[0].mxu0
        %v3687 = vadd.f32 %v3493, %v3686
        %v3688 = vpop.f32.mrb[0].mxu0
        %3689 = vmatprep.mubr.bf16.mxu0 0
        %3690 = vmatmul.mubr.bf16.gmra.mrb[0].mxu0 %v3595
        %v3691 = vpop.f32.mrb[0].mxu0
        %v3692 = vadd.f32 %v3498, %v3691
        %v3693 = vpop.f32.mrb[0].mxu0
        %v3694 = vpop.f32.mrb[0].mxu0
        %v3695 = vadd.f32 %v3503, %v3694
        %v3696 = vpop.f32.mrb[0].mxu0
        %3697 = vmatprep.mubr.bf16.mxu0 0
        %3698 = vmatmul.mubr.bf16.gmra.mrb[0].mxu0 %v3598
        %v3699 = vpop.f32.mrb[0].mxu0
        %v3700 = vadd.f32 %v3508, %v3699
        %v3701 = vpop.f32.mrb[0].mxu0
        %v3702 = vpop.f32.mrb[0].mxu0
        %v3703 = vadd.f32 %v3513, %v3702
        %v3704 = vpop.f32.mrb[0].mxu0
        %3705 = vmatprep.mubr.bf16.mxu0 0
        %3706 = vmatmul.mubr.bf16.gmra.mrb[0].mxu0 %v3601
        %v3707 = vpop.f32.mrb[0].mxu0
        %v3708 = vadd.f32 %v3518, %v3707
        %v3709 = vpop.f32.mrb[0].mxu0
        %v3710 = vpop.f32.mrb[0].mxu0
        %v3711 = vadd.f32 %v3523, %v3710
        %v3712 = vpop.f32.mrb[0].mxu0
        %3713 = vmatprep.mubr.bf16.mxu0 0
        %3714 = vmatmul.mubr.bf16.gmra.mrb[0].mxu0 %v3604
        %v3715 = vpop.f32.mrb[0].mxu0
        %v3716 = vadd.f32 %v3528, %v3715
        %v3717 = vpop.f32.mrb[0].mxu0
        %v3718 = vpop.f32.mrb[0].mxu0
        %v3719 = vadd.f32 %v3533, %v3718
        %v3720 = vpop.f32.mrb[0].mxu0
        %3721 = vmatprep.mubr.bf16.mxu0 0
        %3722 = vmatmul.mubr.bf16.gmra.mrb[0].mxu0 %v3607
        %v3723 = vpop.f32.mrb[0].mxu0
        %v3724 = vadd.f32 %v3538, %v3723
        %v3725 = vpop.f32.mrb[0].mxu0
        %v3726 = vpop.f32.mrb[0].mxu0
        %v3727 = vadd.f32 %v3543, %v3726
        %v3728 = vpop.f32.mrb[0].mxu0
        %3729 = vdwg.mxu0
        %v3730 = vsub.f32 1.0, %v2897
        %v3731 = vsub.f32 1.0, %v2899
        %v3732 = vsub.f32 1.0, %v2901
        %v3733 = vsub.f32 1.0, %v2903
        %v3734 = vsub.f32 1.0, %v2905
        %v3735 = vsub.f32 1.0, %v2907
        %v3736 = vsub.f32 1.0, %v2909
        %v3737 = vsub.f32 1.0, %v2911
        %v3738 = vsub.f32 1.0, %v2913
        %v3739 = vsub.f32 1.0, %v2915
        %v3740 = vsub.f32 1.0, %v2917
        %v3741 = vsub.f32 1.0, %v2919
        %v3742 = vsub.f32 1.0, %v2921
        %v3743 = vsub.f32 1.0, %v2923
        %v3744 = vsub.f32 1.0, %v2925
        %v3745 = vsub.f32 1.0, %v2927
        %v3746 = vmul.f32 %v3668, %v3730
        %v3747 = vmul.f32 %v3671, %v3731
        %v3748 = vmul.f32 %v3676, %v3732
        %v3749 = vmul.f32 %v3679, %v3733
        %v3750 = vmul.f32 %v3684, %v3734
        %v3751 = vmul.f32 %v3687, %v3735
        %v3752 = vmul.f32 %v3692, %v3736
        %v3753 = vmul.f32 %v3695, %v3737
        %v3754 = vmul.f32 %v3700, %v3738
        %v3755 = vmul.f32 %v3703, %v3739
        %v3756 = vmul.f32 %v3708, %v3740
        %v3757 = vmul.f32 %v3711, %v3741
        %v3758 = vmul.f32 %v3716, %v3742
        %v3759 = vmul.f32 %v3719, %v3743
        %v3760 = vmul.f32 %v3724, %v3744
        %v3761 = vmul.f32 %v3727, %v3745
        %v3762 = vmul.f32 %v2370, %v2897
        %v3763 = vmul.f32 %v2374, %v2899
        %v3764 = vmul.f32 %v2380, %v2901
        %v3765 = vmul.f32 %v2384, %v2903
        %v3766 = vmul.f32 %v2390, %v2905
        %v3767 = vmul.f32 %v2394, %v2907
        %v3768 = vmul.f32 %v2400, %v2909
        %v3769 = vmul.f32 %v2404, %v2911
        %v3770 = vmul.f32 %v2410, %v2913
        %v3771 = vmul.f32 %v2414, %v2915
        %v3772 = vmul.f32 %v2420, %v2917
        %v3773 = vmul.f32 %v2424, %v2919
        %v3774 = vmul.f32 %v2430, %v2921
        %v3775 = vmul.f32 %v2434, %v2923
        %v3776 = vmul.f32 %v2440, %v2925
        %v3777 = vmul.f32 %v2444, %v2927
        %v3778 = vadd.f32 %v3746, %v3762
        %v3779 = vadd.f32 %v3747, %v3763
        %v3780 = vadd.f32 %v3748, %v3764
        %v3781 = vadd.f32 %v3749, %v3765
        %v3782 = vadd.f32 %v3750, %v3766
        %v3783 = vadd.f32 %v3751, %v3767
        %v3784 = vadd.f32 %v3752, %v3768
        %v3785 = vadd.f32 %v3753, %v3769
        %v3786 = vadd.f32 %v3754, %v3770
        %v3787 = vadd.f32 %v3755, %v3771
        %v3788 = vadd.f32 %v3756, %v3772
        %v3789 = vadd.f32 %v3757, %v3773
        %v3790 = vadd.f32 %v3758, %v3774
        %v3791 = vadd.f32 %v3759, %v3775
        %v3792 = vadd.f32 %v3760, %v3776
        %v3793 = vadd.f32 %v3761, %v3777
        %v3794 = vpack.c.bf16 %v3779, %v3778
        %v3795 = vpack.c.bf16 %v3781, %v3780
        %v3796 = vpack.c.bf16 %v3783, %v3782
        %v3797 = vpack.c.bf16 %v3785, %v3784
        %v3798 = vpack.c.bf16 %v3787, %v3786
        %v3799 = vpack.c.bf16 %v3789, %v3788
        %v3800 = vpack.c.bf16 %v3791, %v3790
        %v3801 = vpack.c.bf16 %v3793, %v3792
        %v3810 = vunpack.c.l.b16 %v3794
        %v3811 = vunpack.c.h.b16 %v3794
        %v3812 = vunpack.c.l.b16 %v3795
        %v3813 = vunpack.c.h.b16 %v3795
        %v3814 = vunpack.c.l.b16 %v3796
        %v3815 = vunpack.c.h.b16 %v3796
        %v3816 = vunpack.c.l.b16 %v3797
        %v3817 = vunpack.c.h.b16 %v3797
        %v3818 = vunpack.c.l.b16 %v3798
        %v3819 = vunpack.c.h.b16 %v3798
        %v3820 = vunpack.c.l.b16 %v3799
        %v3821 = vunpack.c.h.b16 %v3799
        %v3822 = vunpack.c.l.b16 %v3800
        %v3823 = vunpack.c.h.b16 %v3800
        %v3824 = vunpack.c.l.b16 %v3801
        %v3825 = vunpack.c.h.b16 %v3801
        %v3826 = vpack.c.b16 %v3810, %v3810
        %v3827 = vpack.c.b16 %v3811, %v3811
        %v3828 = vpack.c.b16 %v3812, %v3812
        %v3829 = vpack.c.b16 %v3813, %v3813
        %v3830 = vpack.c.b16 %v3814, %v3814
        %v3831 = vpack.c.b16 %v3815, %v3815
        %v3832 = vpack.c.b16 %v3816, %v3816
        %v3833 = vpack.c.b16 %v3817, %v3817
        %v3834 = vpack.c.b16 %v3818, %v3818
        %v3835 = vpack.c.b16 %v3819, %v3819
        %v3836 = vpack.c.b16 %v3820, %v3820
        %v3837 = vpack.c.b16 %v3821, %v3821
        %v3838 = vpack.c.b16 %v3822, %v3822
        %v3839 = vpack.c.b16 %v3823, %v3823
        %v3840 = vpack.c.b16 %v3824, %v3824
        %v3841 = vpack.c.b16 %v3825, %v3825
        %s3858 = scalar_lea.vmem %s220, 64 [#allocation3]
        %3859 = vst [vmem:[%s3858] sm:$0xf] %v3826
        %3860 = vst [vmem:[%s3858 + $0x4] sm:$0xf] %v3827
        %3861 = vst [vmem:[%s3858 + $0x8] sm:$0xf] %v3828
        %3862 = vst [vmem:[%s3858 + $0xc] sm:$0xf] %v3829
        %3863 = vst [vmem:[%s3858 + $0x10] sm:$0xf] %v3830
        %3864 = vst [vmem:[%s3858 + $0x14] sm:$0xf] %v3831
        %3865 = vst [vmem:[%s3858 + $0x18] sm:$0xf] %v3832
        %3866 = vst [vmem:[%s3858 + $0x1c] sm:$0xf] %v3833
        %3867 = vst [vmem:[%s3858 + $0x20] sm:$0xf] %v3834
        %3868 = vst [vmem:[%s3858 + $0x24] sm:$0xf] %v3835
        %3869 = vst [vmem:[%s3858 + $0x28] sm:$0xf] %v3836
        %3870 = vst [vmem:[%s3858 + $0x2c] sm:$0xf] %v3837
        %3871 = vst [vmem:[%s3858 + $0x30] sm:$0xf] %v3838
        %3872 = vst [vmem:[%s3858 + $0x34] sm:$0xf] %v3839
        %3873 = vst [vmem:[%s3858 + $0x38] sm:$0xf] %v3840
        %3874 = vst [vmem:[%s3858 + $0x3c] sm:$0xf] %v3841
        %v3875 = vld [vmem:[%s3] sm:$0xf]
        %v3876 = vld [vmem:[%s3 + $0x4] sm:$0xf]
        %v3877 = vld [vmem:[%s3 + $0x8] sm:$0xf]
        %v3878 = vld [vmem:[%s3 + $0xc] sm:$0xf]
        %v3879 = vld [vmem:[%s3 + $0x10] sm:$0xf]
        %v3880 = vld [vmem:[%s3 + $0x14] sm:$0xf]
        %v3881 = vld [vmem:[%s3 + $0x18] sm:$0xf]
        %v3882 = vld [vmem:[%s3 + $0x1c] sm:$0xf]
        %v3883 = vld [vmem:[%s3 + $0x20] sm:$0xf]
        %v3884 = vld [vmem:[%s3 + $0x24] sm:$0xf]
        %v3885 = vld [vmem:[%s3 + $0x28] sm:$0xf]
        %v3886 = vld [vmem:[%s3 + $0x2c] sm:$0xf]
        %v3887 = vld [vmem:[%s3 + $0x30] sm:$0xf]
        %v3888 = vld [vmem:[%s3 + $0x34] sm:$0xf]
        %v3889 = vld [vmem:[%s3 + $0x38] sm:$0xf]
        %v3890 = vld [vmem:[%s3 + $0x3c] sm:$0xf]
        %v3891 = vld [vmem:[%s4] sm:$0xff]
        %v3892 = vld [vmem:[%s4 + $0x8] sm:$0xff]
        %v3893 = vld [vmem:[%s4 + $0x10] sm:$0xff]
        %v3894 = vld [vmem:[%s4 + $0x18] sm:$0xff]
        %v3895 = vld [vmem:[%s4 + $0x20] sm:$0xff]
        %v3896 = vld [vmem:[%s4 + $0x28] sm:$0xff]
        %v3897 = vld [vmem:[%s4 + $0x30] sm:$0xff]
        %v3898 = vld [vmem:[%s4 + $0x38] sm:$0xff]
        %v3899 = vld [vmem:[%s4 + $0x40] sm:$0xff]
        %v3900 = vld [vmem:[%s4 + $0x48] sm:$0xff]
        %v3901 = vld [vmem:[%s4 + $0x50] sm:$0xff]
        %v3902 = vld [vmem:[%s4 + $0x58] sm:$0xff]
        %v3903 = vld [vmem:[%s4 + $0x60] sm:$0xff]
        %v3904 = vld [vmem:[%s4 + $0x68] sm:$0xff]
        %v3905 = vld [vmem:[%s4 + $0x70] sm:$0xff]
        %v3906 = vld [vmem:[%s4 + $0x78] sm:$0xff]
        %3908 = vset.pattern.permute.xlu0 0
        %3909 = vperm.xlu0 %3908, %v3891
        %v3910 = vpop.permute.xlu0 %3909
        %3913 = vset.pattern.permute.xlu0 0
        %3914 = vperm.xlu0 %3913, %v3892
        %v3915 = vpop.permute.xlu0 %3914
        %3918 = vset.pattern.permute.xlu0 0
        %3919 = vperm.xlu0 %3918, %v3893
        %v3920 = vpop.permute.xlu0 %3919
        %3923 = vset.pattern.permute.xlu0 0
        %3924 = vperm.xlu0 %3923, %v3894
        %v3925 = vpop.permute.xlu0 %3924
        %3928 = vset.pattern.permute.xlu0 0
        %3929 = vperm.xlu0 %3928, %v3895
        %v3930 = vpop.permute.xlu0 %3929
        %3933 = vset.pattern.permute.xlu0 0
        %3934 = vperm.xlu0 %3933, %v3896
        %v3935 = vpop.permute.xlu0 %3934
        %3938 = vset.pattern.permute.xlu0 0
        %3939 = vperm.xlu0 %3938, %v3897
        %v3940 = vpop.permute.xlu0 %3939
        %3943 = vset.pattern.permute.xlu0 0
        %3944 = vperm.xlu0 %3943, %v3898
        %v3945 = vpop.permute.xlu0 %3944
        %3948 = vset.pattern.permute.xlu0 0
        %3949 = vperm.xlu0 %3948, %v3899
        %v3950 = vpop.permute.xlu0 %3949
        %3953 = vset.pattern.permute.xlu0 0
        %3954 = vperm.xlu0 %3953, %v3900
        %v3955 = vpop.permute.xlu0 %3954
        %3958 = vset.pattern.permute.xlu0 0
        %3959 = vperm.xlu0 %3958, %v3901
        %v3960 = vpop.permute.xlu0 %3959
        %3963 = vset.pattern.permute.xlu0 0
        %3964 = vperm.xlu0 %3963, %v3902
        %v3965 = vpop.permute.xlu0 %3964
        %3968 = vset.pattern.permute.xlu0 0
        %3969 = vperm.xlu0 %3968, %v3903
        %v3970 = vpop.permute.xlu0 %3969
        %3973 = vset.pattern.permute.xlu0 0
        %3974 = vperm.xlu0 %3973, %v3904
        %v3975 = vpop.permute.xlu0 %3974
        %3978 = vset.pattern.permute.xlu0 0
        %3979 = vperm.xlu0 %3978, %v3905
        %v3980 = vpop.permute.xlu0 %3979
        %3983 = vset.pattern.permute.xlu0 0
        %3984 = vperm.xlu0 %3983, %v3906
        %v3985 = vpop.permute.xlu0 %3984
        %v4003 = vunpack.c.l.b16 %v3875
        %v4004 = vunpack.c.l.b16 %v3876
        %v4005 = vunpack.c.l.b16 %v3877
        %v4006 = vunpack.c.l.b16 %v3878
        %v4007 = vunpack.c.l.b16 %v3879
        %v4008 = vunpack.c.l.b16 %v3880
        %v4009 = vunpack.c.l.b16 %v3881
        %v4010 = vunpack.c.l.b16 %v3882
        %v4011 = vunpack.c.l.b16 %v3883
        %v4012 = vunpack.c.l.b16 %v3884
        %v4013 = vunpack.c.l.b16 %v3885
        %v4014 = vunpack.c.l.b16 %v3886
        %v4015 = vunpack.c.l.b16 %v3887
        %v4016 = vunpack.c.l.b16 %v3888
        %v4017 = vunpack.c.l.b16 %v3889
        %v4018 = vunpack.c.l.b16 %v3890
        %v4019 = vpack.c.b16 %v4004, %v4003
        %v4020 = vpack.c.b16 %v4006, %v4005
        %v4021 = vpack.c.b16 %v4008, %v4007
        %v4022 = vpack.c.b16 %v4010, %v4009
        %v4023 = vpack.c.b16 %v4012, %v4011
        %v4024 = vpack.c.b16 %v4014, %v4013
        %v4025 = vpack.c.b16 %v4016, %v4015
        %v4026 = vpack.c.b16 %v4018, %v4017
        %v4028 = vsel %vm1906, %v4019, 0
        %v4031 = vsel %vm1906, %v4020, 0
        %v4034 = vsel %vm1906, %v4021, 0
        %v4037 = vsel %vm1906, %v4022, 0
        %v4040 = vsel %vm1906, %v4023, 0
        %v4043 = vsel %vm1906, %v4024, 0
        %v4046 = vsel %vm1906, %v4025, 0
        %v4049 = vsel %vm1906, %v4026, 0
        %v4052 = vsel %vm1906, %v310, 0
        %v4055 = vsel %vm1906, %v311, 0
        %v4058 = vsel %vm1906, %v312, 0
        %v4061 = vsel %vm1906, %v313, 0
        %v4064 = vsel %vm1906, %v314, 0
        %v4067 = vsel %vm1906, %v315, 0
        %v4070 = vsel %vm1906, %v316, 0
        %v4073 = vsel %vm1906, %v317, 0
        %4075 = vmatprep.subr.bf16.mxu0 0
        %4076 = vmatpush1.bf16.xpose.msra.mxu0 %v4052
        %4077 = vmatprep.subr.bf16.mxu0 0
        %4078 = vmatpush1.bf16.xpose.msra.mxu0 %v4055
        %4079 = vmatprep.subr.bf16.mxu0 0
        %4080 = vmatpush1.bf16.xpose.msra.mxu0 %v4058
        %4081 = vmatprep.subr.bf16.mxu0 0
        %4082 = vmatpush1.bf16.xpose.msra.mxu0 %v4061
        %4083 = vmatprep.subr.bf16.mxu0 0
        %4084 = vmatpush1.bf16.xpose.msra.mxu0 %v4064
        %4085 = vmatprep.subr.bf16.mxu0 0
        %4086 = vmatpush1.bf16.xpose.msra.mxu0 %v4067
        %4087 = vmatprep.subr.bf16.mxu0 0
        %4088 = vmatpush1.bf16.xpose.msra.mxu0 %v4070
        %4089 = vmatprep.subr.bf16.mxu0 0
        %4090 = vmatpush1.bf16.xpose.msra.mxu0 %v4073
        %4091 = vmatprep.subr.bf16.mxu0 0
        %4092 = vmatpush1.bf16.xpose.msra.mxu0 0
        %4093 = vmatprep.subr.bf16.mxu0 0
        %4094 = vmatpush1.bf16.xpose.msra.mxu0 0
        %4095 = vmatprep.subr.bf16.mxu0 0
        %4096 = vmatpush1.bf16.xpose.msra.mxu0 0
        %4097 = vmatprep.subr.bf16.mxu0 0
        %4098 = vmatpush1.bf16.xpose.msra.mxu0 0
        %4099 = vmatprep.subr.bf16.mxu0 0
        %4100 = vmatpush1.bf16.xpose.msra.mxu0 0
        %4101 = vmatprep.subr.bf16.mxu0 0
        %4102 = vmatpush1.bf16.xpose.msra.mxu0 0
        %4103 = vmatprep.subr.bf16.mxu0 0
        %4104 = vmatpush1.bf16.xpose.msra.mxu0 0
        %4105 = vmatprep.subr.bf16.mxu0 0
        %4106 = vmatpush1.bf16.xpose.msra.mxu0 0
        %4107 = vmatprep.mubr.bf16.mxu0 0
        %4108 = vmatmul.mubr.bf16.gmra.mrb[0].mxu0 %v4028
        %v4109 = vpop.f32.mrb[0].mxu0
        %v4110 = vadd.f32 %v3910, %v4109
        %v4111 = vpop.f32.mrb[0].mxu0
        %v4112 = vpop.f32.mrb[0].mxu0
        %v4113 = vadd.f32 %v3915, %v4112
        %v4114 = vpop.f32.mrb[0].mxu0
        %4115 = vmatprep.mubr.bf16.mxu0 0
        %4116 = vmatmul.mubr.bf16.gmra.mrb[0].mxu0 %v4031
        %v4117 = vpop.f32.mrb[0].mxu0
        %v4118 = vadd.f32 %v3920, %v4117
        %v4119 = vpop.f32.mrb[0].mxu0
        %v4120 = vpop.f32.mrb[0].mxu0
        %v4121 = vadd.f32 %v3925, %v4120
        %v4122 = vpop.f32.mrb[0].mxu0
        %4123 = vmatprep.mubr.bf16.mxu0 0
        %4124 = vmatmul.mubr.bf16.gmra.mrb[0].mxu0 %v4034
        %v4125 = vpop.f32.mrb[0].mxu0
        %v4126 = vadd.f32 %v3930, %v4125
        %v4127 = vpop.f32.mrb[0].mxu0
        %v4128 = vpop.f32.mrb[0].mxu0
        %v4129 = vadd.f32 %v3935, %v4128
        %v4130 = vpop.f32.mrb[0].mxu0
        %4131 = vmatprep.mubr.bf16.mxu0 0
        %4132 = vmatmul.mubr.bf16.gmra.mrb[0].mxu0 %v4037
        %v4133 = vpop.f32.mrb[0].mxu0
        %v4134 = vadd.f32 %v3940, %v4133
        %v4135 = vpop.f32.mrb[0].mxu0
        %v4136 = vpop.f32.mrb[0].mxu0
        %v4137 = vadd.f32 %v3945, %v4136
        %v4138 = vpop.f32.mrb[0].mxu0
        %4139 = vmatprep.mubr.bf16.mxu0 0
        %4140 = vmatmul.mubr.bf16.gmra.mrb[0].mxu0 %v4040
        %v4141 = vpop.f32.mrb[0].mxu0
        %v4142 = vadd.f32 %v3950, %v4141
        %v4143 = vpop.f32.mrb[0].mxu0
        %v4144 = vpop.f32.mrb[0].mxu0
        %v4145 = vadd.f32 %v3955, %v4144
        %v4146 = vpop.f32.mrb[0].mxu0
        %4147 = vmatprep.mubr.bf16.mxu0 0
        %4148 = vmatmul.mubr.bf16.gmra.mrb[0].mxu0 %v4043
        %v4149 = vpop.f32.mrb[0].mxu0
        %v4150 = vadd.f32 %v3960, %v4149
        %v4151 = vpop.f32.mrb[0].mxu0
        %v4152 = vpop.f32.mrb[0].mxu0
        %v4153 = vadd.f32 %v3965, %v4152
        %v4154 = vpop.f32.mrb[0].mxu0
        %4155 = vmatprep.mubr.bf16.mxu0 0
        %4156 = vmatmul.mubr.bf16.gmra.mrb[0].mxu0 %v4046
        %v4157 = vpop.f32.mrb[0].mxu0
        %v4158 = vadd.f32 %v3970, %v4157
        %v4159 = vpop.f32.mrb[0].mxu0
        %v4160 = vpop.f32.mrb[0].mxu0
        %v4161 = vadd.f32 %v3975, %v4160
        %v4162 = vpop.f32.mrb[0].mxu0
        %4163 = vmatprep.mubr.bf16.mxu0 0
        %4164 = vmatmul.mubr.bf16.gmra.mrb[0].mxu0 %v4049
        %v4165 = vpop.f32.mrb[0].mxu0
        %v4166 = vadd.f32 %v3980, %v4165
        %v4167 = vpop.f32.mrb[0].mxu0
        %v4168 = vpop.f32.mrb[0].mxu0
        %v4169 = vadd.f32 %v3985, %v4168
        %v4170 = vpop.f32.mrb[0].mxu0
        %4171 = vdwg.mxu0
        %v4172 = vsub.f32 1.0, %v2929
        %v4173 = vsub.f32 1.0, %v2931
        %v4174 = vsub.f32 1.0, %v2933
        %v4175 = vsub.f32 1.0, %v2935
        %v4176 = vsub.f32 1.0, %v2937
        %v4177 = vsub.f32 1.0, %v2939
        %v4178 = vsub.f32 1.0, %v2941
        %v4179 = vsub.f32 1.0, %v2943
        %v4180 = vsub.f32 1.0, %v2945
        %v4181 = vsub.f32 1.0, %v2947
        %v4182 = vsub.f32 1.0, %v2949
        %v4183 = vsub.f32 1.0, %v2951
        %v4184 = vsub.f32 1.0, %v2953
        %v4185 = vsub.f32 1.0, %v2955
        %v4186 = vsub.f32 1.0, %v2957
        %v4187 = vsub.f32 1.0, %v2959
        %v4188 = vmul.f32 %v4110, %v4172
        %v4189 = vmul.f32 %v4113, %v4173
        %v4190 = vmul.f32 %v4118, %v4174
        %v4191 = vmul.f32 %v4121, %v4175
        %v4192 = vmul.f32 %v4126, %v4176
        %v4193 = vmul.f32 %v4129, %v4177
        %v4194 = vmul.f32 %v4134, %v4178
        %v4195 = vmul.f32 %v4137, %v4179
        %v4196 = vmul.f32 %v4142, %v4180
        %v4197 = vmul.f32 %v4145, %v4181
        %v4198 = vmul.f32 %v4150, %v4182
        %v4199 = vmul.f32 %v4153, %v4183
        %v4200 = vmul.f32 %v4158, %v4184
        %v4201 = vmul.f32 %v4161, %v4185
        %v4202 = vmul.f32 %v4166, %v4186
        %v4203 = vmul.f32 %v4169, %v4187
        %v4204 = vmul.f32 %v2450, %v2929
        %v4205 = vmul.f32 %v2454, %v2931
        %v4206 = vmul.f32 %v2460, %v2933
        %v4207 = vmul.f32 %v2464, %v2935
        %v4208 = vmul.f32 %v2470, %v2937
        %v4209 = vmul.f32 %v2474, %v2939
        %v4210 = vmul.f32 %v2480, %v2941
        %v4211 = vmul.f32 %v2484, %v2943
        %v4212 = vmul.f32 %v2490, %v2945
        %v4213 = vmul.f32 %v2494, %v2947
        %v4214 = vmul.f32 %v2500, %v2949
        %v4215 = vmul.f32 %v2504, %v2951
        %v4216 = vmul.f32 %v2510, %v2953
        %v4217 = vmul.f32 %v2514, %v2955
        %v4218 = vmul.f32 %v2520, %v2957
        %v4219 = vmul.f32 %v2524, %v2959
        %v4220 = vadd.f32 %v4188, %v4204
        %v4221 = vadd.f32 %v4189, %v4205
        %v4222 = vadd.f32 %v4190, %v4206
        %v4223 = vadd.f32 %v4191, %v4207
        %v4224 = vadd.f32 %v4192, %v4208
        %v4225 = vadd.f32 %v4193, %v4209
        %v4226 = vadd.f32 %v4194, %v4210
        %v4227 = vadd.f32 %v4195, %v4211
        %v4228 = vadd.f32 %v4196, %v4212
        %v4229 = vadd.f32 %v4197, %v4213
        %v4230 = vadd.f32 %v4198, %v4214
        %v4231 = vadd.f32 %v4199, %v4215
        %v4232 = vadd.f32 %v4200, %v4216
        %v4233 = vadd.f32 %v4201, %v4217
        %v4234 = vadd.f32 %v4202, %v4218
        %v4235 = vadd.f32 %v4203, %v4219
        %v4236 = vpack.c.bf16 %v4221, %v4220
        %v4237 = vpack.c.bf16 %v4223, %v4222
        %v4238 = vpack.c.bf16 %v4225, %v4224
        %v4239 = vpack.c.bf16 %v4227, %v4226
        %v4240 = vpack.c.bf16 %v4229, %v4228
        %v4241 = vpack.c.bf16 %v4231, %v4230
        %v4242 = vpack.c.bf16 %v4233, %v4232
        %v4243 = vpack.c.bf16 %v4235, %v4234
        %v4252 = vunpack.c.l.b16 %v4236
        %v4253 = vunpack.c.h.b16 %v4236
        %v4254 = vunpack.c.l.b16 %v4237
        %v4255 = vunpack.c.h.b16 %v4237
        %v4256 = vunpack.c.l.b16 %v4238
        %v4257 = vunpack.c.h.b16 %v4238
        %v4258 = vunpack.c.l.b16 %v4239
        %v4259 = vunpack.c.h.b16 %v4239
        %v4260 = vunpack.c.l.b16 %v4240
        %v4261 = vunpack.c.h.b16 %v4240
        %v4262 = vunpack.c.l.b16 %v4241
        %v4263 = vunpack.c.h.b16 %v4241
        %v4264 = vunpack.c.l.b16 %v4242
        %v4265 = vunpack.c.h.b16 %v4242
        %v4266 = vunpack.c.l.b16 %v4243
        %v4267 = vunpack.c.h.b16 %v4243
        %v4268 = vpack.c.b16 %v4252, %v4252
        %v4269 = vpack.c.b16 %v4253, %v4253
        %v4270 = vpack.c.b16 %v4254, %v4254
        %v4271 = vpack.c.b16 %v4255, %v4255
        %v4272 = vpack.c.b16 %v4256, %v4256
        %v4273 = vpack.c.b16 %v4257, %v4257
        %v4274 = vpack.c.b16 %v4258, %v4258
        %v4275 = vpack.c.b16 %v4259, %v4259
        %v4276 = vpack.c.b16 %v4260, %v4260
        %v4277 = vpack.c.b16 %v4261, %v4261
        %v4278 = vpack.c.b16 %v4262, %v4262
        %v4279 = vpack.c.b16 %v4263, %v4263
        %v4280 = vpack.c.b16 %v4264, %v4264
        %v4281 = vpack.c.b16 %v4265, %v4265
        %v4282 = vpack.c.b16 %v4266, %v4266
        %v4283 = vpack.c.b16 %v4267, %v4267
        %s4300 = scalar_lea.vmem %s220, 128 [#allocation3]
        %4301 = vst [vmem:[%s4300] sm:$0xf] %v4268
        %4302 = vst [vmem:[%s4300 + $0x4] sm:$0xf] %v4269
        %4303 = vst [vmem:[%s4300 + $0x8] sm:$0xf] %v4270
        %4304 = vst [vmem:[%s4300 + $0xc] sm:$0xf] %v4271
        %4305 = vst [vmem:[%s4300 + $0x10] sm:$0xf] %v4272
        %4306 = vst [vmem:[%s4300 + $0x14] sm:$0xf] %v4273
        %4307 = vst [vmem:[%s4300 + $0x18] sm:$0xf] %v4274
        %4308 = vst [vmem:[%s4300 + $0x1c] sm:$0xf] %v4275
        %4309 = vst [vmem:[%s4300 + $0x20] sm:$0xf] %v4276
        %4310 = vst [vmem:[%s4300 + $0x24] sm:$0xf] %v4277
        %4311 = vst [vmem:[%s4300 + $0x28] sm:$0xf] %v4278
        %4312 = vst [vmem:[%s4300 + $0x2c] sm:$0xf] %v4279
        %4313 = vst [vmem:[%s4300 + $0x30] sm:$0xf] %v4280
        %4314 = vst [vmem:[%s4300 + $0x34] sm:$0xf] %v4281
        %4315 = vst [vmem:[%s4300 + $0x38] sm:$0xf] %v4282
        %4316 = vst [vmem:[%s4300 + $0x3c] sm:$0xf] %v4283
        %v4317 = vld [vmem:[%s3] sm:$0xf]
        %v4318 = vld [vmem:[%s3 + $0x4] sm:$0xf]
        %v4319 = vld [vmem:[%s3 + $0x8] sm:$0xf]
        %v4320 = vld [vmem:[%s3 + $0xc] sm:$0xf]
        %v4321 = vld [vmem:[%s3 + $0x10] sm:$0xf]
        %v4322 = vld [vmem:[%s3 + $0x14] sm:$0xf]
        %v4323 = vld [vmem:[%s3 + $0x18] sm:$0xf]
        %v4324 = vld [vmem:[%s3 + $0x1c] sm:$0xf]
        %v4325 = vld [vmem:[%s3 + $0x20] sm:$0xf]
        %v4326 = vld [vmem:[%s3 + $0x24] sm:$0xf]
        %v4327 = vld [vmem:[%s3 + $0x28] sm:$0xf]
        %v4328 = vld [vmem:[%s3 + $0x2c] sm:$0xf]
        %v4329 = vld [vmem:[%s3 + $0x30] sm:$0xf]
        %v4330 = vld [vmem:[%s3 + $0x34] sm:$0xf]
        %v4331 = vld [vmem:[%s3 + $0x38] sm:$0xf]
        %v4332 = vld [vmem:[%s3 + $0x3c] sm:$0xf]
        %v4333 = vld [vmem:[%s4] sm:$0xff]
        %v4334 = vld [vmem:[%s4 + $0x8] sm:$0xff]
        %v4335 = vld [vmem:[%s4 + $0x10] sm:$0xff]
        %v4336 = vld [vmem:[%s4 + $0x18] sm:$0xff]
        %v4337 = vld [vmem:[%s4 + $0x20] sm:$0xff]
        %v4338 = vld [vmem:[%s4 + $0x28] sm:$0xff]
        %v4339 = vld [vmem:[%s4 + $0x30] sm:$0xff]
        %v4340 = vld [vmem:[%s4 + $0x38] sm:$0xff]
        %v4341 = vld [vmem:[%s4 + $0x40] sm:$0xff]
        %v4342 = vld [vmem:[%s4 + $0x48] sm:$0xff]
        %v4343 = vld [vmem:[%s4 + $0x50] sm:$0xff]
        %v4344 = vld [vmem:[%s4 + $0x58] sm:$0xff]
        %v4345 = vld [vmem:[%s4 + $0x60] sm:$0xff]
        %v4346 = vld [vmem:[%s4 + $0x68] sm:$0xff]
        %v4347 = vld [vmem:[%s4 + $0x70] sm:$0xff]
        %v4348 = vld [vmem:[%s4 + $0x78] sm:$0xff]
        %4350 = vset.pattern.permute.xlu0 0
        %4351 = vperm.xlu0 %4350, %v4333
        %v4352 = vpop.permute.xlu0 %4351
        %4355 = vset.pattern.permute.xlu0 0
        %4356 = vperm.xlu0 %4355, %v4334
        %v4357 = vpop.permute.xlu0 %4356
        %4360 = vset.pattern.permute.xlu0 0
        %4361 = vperm.xlu0 %4360, %v4335
        %v4362 = vpop.permute.xlu0 %4361
        %4365 = vset.pattern.permute.xlu0 0
        %4366 = vperm.xlu0 %4365, %v4336
        %v4367 = vpop.permute.xlu0 %4366
        %4370 = vset.pattern.permute.xlu0 0
        %4371 = vperm.xlu0 %4370, %v4337
        %v4372 = vpop.permute.xlu0 %4371
        %4375 = vset.pattern.permute.xlu0 0
        %4376 = vperm.xlu0 %4375, %v4338
        %v4377 = vpop.permute.xlu0 %4376
        %4380 = vset.pattern.permute.xlu0 0
        %4381 = vperm.xlu0 %4380, %v4339
        %v4382 = vpop.permute.xlu0 %4381
        %4385 = vset.pattern.permute.xlu0 0
        %4386 = vperm.xlu0 %4385, %v4340
        %v4387 = vpop.permute.xlu0 %4386
        %4390 = vset.pattern.permute.xlu0 0
        %4391 = vperm.xlu0 %4390, %v4341
        %v4392 = vpop.permute.xlu0 %4391
        %4395 = vset.pattern.permute.xlu0 0
        %4396 = vperm.xlu0 %4395, %v4342
        %v4397 = vpop.permute.xlu0 %4396
        %4400 = vset.pattern.permute.xlu0 0
        %4401 = vperm.xlu0 %4400, %v4343
        %v4402 = vpop.permute.xlu0 %4401
        %4405 = vset.pattern.permute.xlu0 0
        %4406 = vperm.xlu0 %4405, %v4344
        %v4407 = vpop.permute.xlu0 %4406
        %4410 = vset.pattern.permute.xlu0 0
        %4411 = vperm.xlu0 %4410, %v4345
        %v4412 = vpop.permute.xlu0 %4411
        %4415 = vset.pattern.permute.xlu0 0
        %4416 = vperm.xlu0 %4415, %v4346
        %v4417 = vpop.permute.xlu0 %4416
        %4420 = vset.pattern.permute.xlu0 0
        %4421 = vperm.xlu0 %4420, %v4347
        %v4422 = vpop.permute.xlu0 %4421
        %4425 = vset.pattern.permute.xlu0 0
        %4426 = vperm.xlu0 %4425, %v4348
        %v4427 = vpop.permute.xlu0 %4426
        %v4445 = vunpack.c.l.b16 %v4317
        %v4446 = vunpack.c.l.b16 %v4318
        %v4447 = vunpack.c.l.b16 %v4319
        %v4448 = vunpack.c.l.b16 %v4320
        %v4449 = vunpack.c.l.b16 %v4321
        %v4450 = vunpack.c.l.b16 %v4322
        %v4451 = vunpack.c.l.b16 %v4323
        %v4452 = vunpack.c.l.b16 %v4324
        %v4453 = vunpack.c.l.b16 %v4325
        %v4454 = vunpack.c.l.b16 %v4326
        %v4455 = vunpack.c.l.b16 %v4327
        %v4456 = vunpack.c.l.b16 %v4328
        %v4457 = vunpack.c.l.b16 %v4329
        %v4458 = vunpack.c.l.b16 %v4330
        %v4459 = vunpack.c.l.b16 %v4331
        %v4460 = vunpack.c.l.b16 %v4332
        %v4461 = vpack.c.b16 %v4446, %v4445
        %v4462 = vpack.c.b16 %v4448, %v4447
        %v4463 = vpack.c.b16 %v4450, %v4449
        %v4464 = vpack.c.b16 %v4452, %v4451
        %v4465 = vpack.c.b16 %v4454, %v4453
        %v4466 = vpack.c.b16 %v4456, %v4455
        %v4467 = vpack.c.b16 %v4458, %v4457
        %v4468 = vpack.c.b16 %v4460, %v4459
        %v4470 = vsel %vm1906, %v4461, 0
        %v4473 = vsel %vm1906, %v4462, 0
        %v4476 = vsel %vm1906, %v4463, 0
        %v4479 = vsel %vm1906, %v4464, 0
        %v4482 = vsel %vm1906, %v4465, 0
        %v4485 = vsel %vm1906, %v4466, 0
        %v4488 = vsel %vm1906, %v4467, 0
        %v4491 = vsel %vm1906, %v4468, 0
        %v4494 = vsel %vm1906, %v318, 0
        %v4497 = vsel %vm1906, %v319, 0
        %v4500 = vsel %vm1906, %v320, 0
        %v4503 = vsel %vm1906, %v321, 0
        %v4506 = vsel %vm1906, %v322, 0
        %v4509 = vsel %vm1906, %v323, 0
        %v4512 = vsel %vm1906, %v324, 0
        %v4515 = vsel %vm1906, %v325, 0
        %4517 = vmatprep.subr.bf16.mxu0 0
        %4518 = vmatpush1.bf16.xpose.msra.mxu0 %v4494
        %4519 = vmatprep.subr.bf16.mxu0 0
        %4520 = vmatpush1.bf16.xpose.msra.mxu0 %v4497
        %4521 = vmatprep.subr.bf16.mxu0 0
        %4522 = vmatpush1.bf16.xpose.msra.mxu0 %v4500
        %4523 = vmatprep.subr.bf16.mxu0 0
        %4524 = vmatpush1.bf16.xpose.msra.mxu0 %v4503
        %4525 = vmatprep.subr.bf16.mxu0 0
        %4526 = vmatpush1.bf16.xpose.msra.mxu0 %v4506
        %4527 = vmatprep.subr.bf16.mxu0 0
        %4528 = vmatpush1.bf16.xpose.msra.mxu0 %v4509
        %4529 = vmatprep.subr.bf16.mxu0 0
        %4530 = vmatpush1.bf16.xpose.msra.mxu0 %v4512
        %4531 = vmatprep.subr.bf16.mxu0 0
        %4532 = vmatpush1.bf16.xpose.msra.mxu0 %v4515
        %4533 = vmatprep.subr.bf16.mxu0 0
        %4534 = vmatpush1.bf16.xpose.msra.mxu0 0
        %4535 = vmatprep.subr.bf16.mxu0 0
        %4536 = vmatpush1.bf16.xpose.msra.mxu0 0
        %4537 = vmatprep.subr.bf16.mxu0 0
        %4538 = vmatpush1.bf16.xpose.msra.mxu0 0
        %4539 = vmatprep.subr.bf16.mxu0 0
        %4540 = vmatpush1.bf16.xpose.msra.mxu0 0
        %4541 = vmatprep.subr.bf16.mxu0 0
        %4542 = vmatpush1.bf16.xpose.msra.mxu0 0
        %4543 = vmatprep.subr.bf16.mxu0 0
        %4544 = vmatpush1.bf16.xpose.msra.mxu0 0
        %4545 = vmatprep.subr.bf16.mxu0 0
        %4546 = vmatpush1.bf16.xpose.msra.mxu0 0
        %4547 = vmatprep.subr.bf16.mxu0 0
        %4548 = vmatpush1.bf16.xpose.msra.mxu0 0
        %4549 = vmatprep.mubr.bf16.mxu0 0
        %4550 = vmatmul.mubr.bf16.gmra.mrb[0].mxu0 %v4470
        %v4551 = vpop.f32.mrb[0].mxu0
        %v4552 = vadd.f32 %v4352, %v4551
        %v4553 = vpop.f32.mrb[0].mxu0
        %v4554 = vpop.f32.mrb[0].mxu0
        %v4555 = vadd.f32 %v4357, %v4554
        %v4556 = vpop.f32.mrb[0].mxu0
        %4557 = vmatprep.mubr.bf16.mxu0 0
        %4558 = vmatmul.mubr.bf16.gmra.mrb[0].mxu0 %v4473
        %v4559 = vpop.f32.mrb[0].mxu0
        %v4560 = vadd.f32 %v4362, %v4559
        %v4561 = vpop.f32.mrb[0].mxu0
        %v4562 = vpop.f32.mrb[0].mxu0
        %v4563 = vadd.f32 %v4367, %v4562
        %v4564 = vpop.f32.mrb[0].mxu0
        %4565 = vmatprep.mubr.bf16.mxu0 0
        %4566 = vmatmul.mubr.bf16.gmra.mrb[0].mxu0 %v4476
        %v4567 = vpop.f32.mrb[0].mxu0
        %v4568 = vadd.f32 %v4372, %v4567
        %v4569 = vpop.f32.mrb[0].mxu0
        %v4570 = vpop.f32.mrb[0].mxu0
        %v4571 = vadd.f32 %v4377, %v4570
        %v4572 = vpop.f32.mrb[0].mxu0
        %4573 = vmatprep.mubr.bf16.mxu0 0
        %4574 = vmatmul.mubr.bf16.gmra.mrb[0].mxu0 %v4479
        %v4575 = vpop.f32.mrb[0].mxu0
        %v4576 = vadd.f32 %v4382, %v4575
        %v4577 = vpop.f32.mrb[0].mxu0
        %v4578 = vpop.f32.mrb[0].mxu0
        %v4579 = vadd.f32 %v4387, %v4578
        %v4580 = vpop.f32.mrb[0].mxu0
        %4581 = vmatprep.mubr.bf16.mxu0 0
        %4582 = vmatmul.mubr.bf16.gmra.mrb[0].mxu0 %v4482
        %v4583 = vpop.f32.mrb[0].mxu0
        %v4584 = vadd.f32 %v4392, %v4583
        %v4585 = vpop.f32.mrb[0].mxu0
        %v4586 = vpop.f32.mrb[0].mxu0
        %v4587 = vadd.f32 %v4397, %v4586
        %v4588 = vpop.f32.mrb[0].mxu0
        %4589 = vmatprep.mubr.bf16.mxu0 0
        %4590 = vmatmul.mubr.bf16.gmra.mrb[0].mxu0 %v4485
        %v4591 = vpop.f32.mrb[0].mxu0
        %v4592 = vadd.f32 %v4402, %v4591
        %v4593 = vpop.f32.mrb[0].mxu0
        %v4594 = vpop.f32.mrb[0].mxu0
        %v4595 = vadd.f32 %v4407, %v4594
        %v4596 = vpop.f32.mrb[0].mxu0
        %4597 = vmatprep.mubr.bf16.mxu0 0
        %4598 = vmatmul.mubr.bf16.gmra.mrb[0].mxu0 %v4488
        %v4599 = vpop.f32.mrb[0].mxu0
        %v4600 = vadd.f32 %v4412, %v4599
        %v4601 = vpop.f32.mrb[0].mxu0
        %v4602 = vpop.f32.mrb[0].mxu0
        %v4603 = vadd.f32 %v4417, %v4602
        %v4604 = vpop.f32.mrb[0].mxu0
        %4605 = vmatprep.mubr.bf16.mxu0 0
        %4606 = vmatmul.mubr.bf16.gmra.mrb[0].mxu0 %v4491
        %v4607 = vpop.f32.mrb[0].mxu0
        %v4608 = vadd.f32 %v4422, %v4607
        %v4609 = vpop.f32.mrb[0].mxu0
        %v4610 = vpop.f32.mrb[0].mxu0
        %v4611 = vadd.f32 %v4427, %v4610
        %v4612 = vpop.f32.mrb[0].mxu0
        %4613 = vdwg.mxu0
        %v4614 = vsub.f32 1.0, %v2961
        %v4615 = vsub.f32 1.0, %v2963
        %v4616 = vsub.f32 1.0, %v2965
        %v4617 = vsub.f32 1.0, %v2967
        %v4618 = vsub.f32 1.0, %v2969
        %v4619 = vsub.f32 1.0, %v2971
        %v4620 = vsub.f32 1.0, %v2973
        %v4621 = vsub.f32 1.0, %v2975
        %v4622 = vsub.f32 1.0, %v2977
        %v4623 = vsub.f32 1.0, %v2979
        %v4624 = vsub.f32 1.0, %v2981
        %v4625 = vsub.f32 1.0, %v2983
        %v4626 = vsub.f32 1.0, %v2985
        %v4627 = vsub.f32 1.0, %v2987
        %v4628 = vsub.f32 1.0, %v2989
        %v4629 = vsub.f32 1.0, %v2991
        %v4630 = vmul.f32 %v4552, %v4614
        %v4631 = vmul.f32 %v4555, %v4615
        %v4632 = vmul.f32 %v4560, %v4616
        %v4633 = vmul.f32 %v4563, %v4617
        %v4634 = vmul.f32 %v4568, %v4618
        %v4635 = vmul.f32 %v4571, %v4619
        %v4636 = vmul.f32 %v4576, %v4620
        %v4637 = vmul.f32 %v4579, %v4621
        %v4638 = vmul.f32 %v4584, %v4622
        %v4639 = vmul.f32 %v4587, %v4623
        %v4640 = vmul.f32 %v4592, %v4624
        %v4641 = vmul.f32 %v4595, %v4625
        %v4642 = vmul.f32 %v4600, %v4626
        %v4643 = vmul.f32 %v4603, %v4627
        %v4644 = vmul.f32 %v4608, %v4628
        %v4645 = vmul.f32 %v4611, %v4629
        %v4646 = vmul.f32 %v2530, %v2961
        %v4647 = vmul.f32 %v2534, %v2963
        %v4648 = vmul.f32 %v2540, %v2965
        %v4649 = vmul.f32 %v2544, %v2967
        %v4650 = vmul.f32 %v2550, %v2969
        %v4651 = vmul.f32 %v2554, %v2971
        %v4652 = vmul.f32 %v2560, %v2973
        %v4653 = vmul.f32 %v2564, %v2975
        %v4654 = vmul.f32 %v2570, %v2977
        %v4655 = vmul.f32 %v2574, %v2979
        %v4656 = vmul.f32 %v2580, %v2981
        %v4657 = vmul.f32 %v2584, %v2983
        %v4658 = vmul.f32 %v2590, %v2985
        %v4659 = vmul.f32 %v2594, %v2987
        %v4660 = vmul.f32 %v2600, %v2989
        %v4661 = vmul.f32 %v2604, %v2991
        %v4662 = vadd.f32 %v4630, %v4646
        %v4663 = vadd.f32 %v4631, %v4647
        %v4664 = vadd.f32 %v4632, %v4648
        %v4665 = vadd.f32 %v4633, %v4649
        %v4666 = vadd.f32 %v4634, %v4650
        %v4667 = vadd.f32 %v4635, %v4651
        %v4668 = vadd.f32 %v4636, %v4652
        %v4669 = vadd.f32 %v4637, %v4653
        %v4670 = vadd.f32 %v4638, %v4654
        %v4671 = vadd.f32 %v4639, %v4655
        %v4672 = vadd.f32 %v4640, %v4656
        %v4673 = vadd.f32 %v4641, %v4657
        %v4674 = vadd.f32 %v4642, %v4658
        %v4675 = vadd.f32 %v4643, %v4659
        %v4676 = vadd.f32 %v4644, %v4660
        %v4677 = vadd.f32 %v4645, %v4661
        %v4678 = vpack.c.bf16 %v4663, %v4662
        %v4679 = vpack.c.bf16 %v4665, %v4664
        %v4680 = vpack.c.bf16 %v4667, %v4666
        %v4681 = vpack.c.bf16 %v4669, %v4668
        %v4682 = vpack.c.bf16 %v4671, %v4670
        %v4683 = vpack.c.bf16 %v4673, %v4672
        %v4684 = vpack.c.bf16 %v4675, %v4674
        %v4685 = vpack.c.bf16 %v4677, %v4676
        %v4694 = vunpack.c.l.b16 %v4678
        %v4695 = vunpack.c.h.b16 %v4678
        %v4696 = vunpack.c.l.b16 %v4679
        %v4697 = vunpack.c.h.b16 %v4679
        %v4698 = vunpack.c.l.b16 %v4680
        %v4699 = vunpack.c.h.b16 %v4680
        %v4700 = vunpack.c.l.b16 %v4681
        %v4701 = vunpack.c.h.b16 %v4681
        %v4702 = vunpack.c.l.b16 %v4682
        %v4703 = vunpack.c.h.b16 %v4682
        %v4704 = vunpack.c.l.b16 %v4683
        %v4705 = vunpack.c.h.b16 %v4683
        %v4706 = vunpack.c.l.b16 %v4684
        %v4707 = vunpack.c.h.b16 %v4684
        %v4708 = vunpack.c.l.b16 %v4685
        %v4709 = vunpack.c.h.b16 %v4685
        %v4710 = vpack.c.b16 %v4694, %v4694
        %v4711 = vpack.c.b16 %v4695, %v4695
        %v4712 = vpack.c.b16 %v4696, %v4696
        %v4713 = vpack.c.b16 %v4697, %v4697
        %v4714 = vpack.c.b16 %v4698, %v4698
        %v4715 = vpack.c.b16 %v4699, %v4699
        %v4716 = vpack.c.b16 %v4700, %v4700
        %v4717 = vpack.c.b16 %v4701, %v4701
        %v4718 = vpack.c.b16 %v4702, %v4702
        %v4719 = vpack.c.b16 %v4703, %v4703
        %v4720 = vpack.c.b16 %v4704, %v4704
        %v4721 = vpack.c.b16 %v4705, %v4705
        %v4722 = vpack.c.b16 %v4706, %v4706
        %v4723 = vpack.c.b16 %v4707, %v4707
        %v4724 = vpack.c.b16 %v4708, %v4708
        %v4725 = vpack.c.b16 %v4709, %v4709
        %s4742 = scalar_lea.vmem %s220, 192 [#allocation3]
        %4743 = vst [vmem:[%s4742] sm:$0xf] %v4710
        %4744 = vst [vmem:[%s4742 + $0x4] sm:$0xf] %v4711
        %4745 = vst [vmem:[%s4742 + $0x8] sm:$0xf] %v4712
        %4746 = vst [vmem:[%s4742 + $0xc] sm:$0xf] %v4713
        %4747 = vst [vmem:[%s4742 + $0x10] sm:$0xf] %v4714
        %4748 = vst [vmem:[%s4742 + $0x14] sm:$0xf] %v4715
        %4749 = vst [vmem:[%s4742 + $0x18] sm:$0xf] %v4716
        %4750 = vst [vmem:[%s4742 + $0x1c] sm:$0xf] %v4717
        %4751 = vst [vmem:[%s4742 + $0x20] sm:$0xf] %v4718
        %4752 = vst [vmem:[%s4742 + $0x24] sm:$0xf] %v4719
        %4753 = vst [vmem:[%s4742 + $0x28] sm:$0xf] %v4720
        %4754 = vst [vmem:[%s4742 + $0x2c] sm:$0xf] %v4721
        %4755 = vst [vmem:[%s4742 + $0x30] sm:$0xf] %v4722
        %4756 = vst [vmem:[%s4742 + $0x34] sm:$0xf] %v4723
        %4757 = vst [vmem:[%s4742 + $0x38] sm:$0xf] %v4724
        %4758 = vst [vmem:[%s4742 + $0x3c] sm:$0xf] %v4725
        %s4759 = sand.u32 %s137, 1
        %s4760 = scalar_lea.sflag [#allocation4], %s4759
        %s4761 = sand.u32 %s137, 1
        %s4762 = smul.addr %s4761, 256
        %s4763 = scalar_lea.vmem [#allocation3], %s4762
        // Predicated region
        $region41: #{tpu_custom_call.1} parent=39 // pred_check
          %p4764 = pneg %p147
        $region42: #{tpu_custom_call.1} parent=39 // pred_check_branch
          %4766 = sbr.rel (%p4764) target = $region44
        $region43: #{tpu_custom_call.1} parent=39 // pred_region
          %s4767 = smul.u32 4, %s19
          %s4769 = ssub.s32 4096, 4096
          %4770 = vsyncadd %s4760, %s4769
          %s4771 = smul.addr %s4767, 16
          %s4772 = smul.addr %s4771, 64
          %s4773 = scalar_lea.hbm %s5, %s4772
          %s4774 = sshll.u32 %s4763, 4
          %s4775 = int_to_ptr.vmem [resolvable:$true] %s4774
          %4780 = dma.vmem_to_hbm [thread:$0]  %s4775, 4096, %s4773, %s4760, 64, 64, 4
        $region44: #{tpu_custom_call.1} parent=39 // pred_fallthru
          _
      $region40: #{tpu_custom_call.1} parent=5 // pred_fallthru
        _
      %p4781 = scmp.le.s32.totalorder 2, %s14
      // Predicated region
      $region45: #{tpu_custom_call.1} parent=5 // pred_check
        %p4782 = pneg %p4781
      $region46: #{tpu_custom_call.1} parent=5 // pred_check_branch
        %4784 = sbr.rel (%p4782) target = $region48
      $region47: #{tpu_custom_call.1} parent=5 // pred_region
        %s4785 = ssub.s32 %s14, 2
        // Predicated region
        $region49: #{tpu_custom_call.1} parent=47 // pred_check
          %p4786 = pneg %p153
        $region50: #{tpu_custom_call.1} parent=47 // pred_check_branch
          %4788 = sbr.rel (%p4786) target = $region52
        $region51: #{tpu_custom_call.1} parent=47 // pred_region
          %s4789 = sand.u32 %s138, 1
          %s4790 = scalar_lea.sflag [#allocation4], %s4789
          %s4791 = sand.u32 %s138, 1
          %s4792 = smul.addr %s4791, 256
          %s4793 = scalar_lea.vmem [#allocation3], %s4792
          %4794 = dma.done %s4790, 4096
        $region52: #{tpu_custom_call.1} parent=47 // pred_fallthru
          _
      $region48: #{tpu_custom_call.1} parent=5 // pred_fallthru
        _
    $region6: #{tpu_custom_call.1} parent=1 // loop_footer
      %s18 = sadd.s32 1, %s14
    $region7: #{tpu_custom_call.1} parent=1 // loop_footer_branch
      %13 = sbr.rel target = $region3
    $region8: #{tpu_custom_call.1} parent=1 // loop_exit
      _
    %4795 = vsyncpa [#allocation4], 1
    %s4796 = scalar_lea.sflag [#allocation4], 1
    %4797 = vsyncpa %s4796, 1

</llo_original>
